<compile_context>
chip_gen: v7x
topology: tpu7x:2x2x1
jax: 0.10.0
libtpu: 0.0.40
codegen_flags: <defaults>
</compile_context>

<pallas_src>
import functools

import jax
import jax.numpy as jnp
import numpy as np
from jax.experimental import pallas as pl
from jax.experimental.pallas import tpu as pltpu


# ----------------------------- Pallas kernel -------------------------------


def _window_attention_kernel(x_ref, wq_ref, wk_ref, wv_ref, qb_ref, vb_ref,
                             scale_ref, hmask_ref, seg_ref, bias_ref,
                             wp_ref, pb_ref, o_ref, *, windows, seq_len,
                             num_heads, mxu_dtype):
    # x_ref:     (W*N, C)  rows of this window-group (W windows, N tokens each)
    # wq/wk/wv:  (C, C)    qkv weight slabs, transposed (x @ W^T layout)
    # qb/vb:     (1, C)    q / v bias (k bias is zero in the module)
    # scale:     (1, H)    exp(clamp(logit_scale)) per head
    # hmask:     (H, C)    1.0 where channel c belongs to head h
    # seg:       (H, M)    1.0 where score lane m belongs to head h  (M = H*N)
    # bias:      (N, M)    16*sigmoid(cpb bias), pre-transposed to (q, h*N+j)
    # wp:        (C, C)    proj weight, transposed
    # pb:        (1, C)    proj bias
    # o_ref:     (W*N, C)
    W, N, H = windows, seq_len, num_heads
    T, C = x_ref.shape
    M = H * N
    cdt = mxu_dtype  # MXU operand dtype (f32 or bf16); accumulation stays f32

    x = x_ref[...].astype(cdt)                                        # (T, C)

    # --- qkv projection: three lane-aligned slabs -------------------------
    q = jnp.dot(x, wq_ref[...].astype(cdt),
                preferred_element_type=jnp.float32) + qb_ref[...]
    k = jnp.dot(x, wk_ref[...].astype(cdt),
                preferred_element_type=jnp.float32)
    v = jnp.dot(x, wv_ref[...].astype(cdt),
                preferred_element_type=jnp.float32) + vb_ref[...]

    # --- per-head L2 normalization: (C->H) reduce + (H->C) broadcast ------
    # (two thin matmuls against hmask instead of a (C,C) block-diag matmul).
    hmask = hmask_ref[...]                                            # (H, C)
    q_ss = jnp.einsum('tc,hc->th', q * q, hmask,
                      preferred_element_type=jnp.float32)             # (T, H)
    k_ss = jnp.einsum('tc,hc->th', k * k, hmask,
                      preferred_element_type=jnp.float32)
    # F.normalize(., eps=1e-12) == x * rsqrt(max(sumsq, 1e-24)); fold the
    # per-head logit scale into q's factor (rsqrt on T*H elems, not T*C).
    q_r = jax.lax.rsqrt(jnp.maximum(q_ss, 1e-24)) * scale_ref[...]    # (T, H)
    k_r = jax.lax.rsqrt(jnp.maximum(k_ss, 1e-24))
    qn = q * jnp.einsum('th,hc->tc', q_r, hmask,
                        preferred_element_type=jnp.float32)
    kn = k * jnp.einsum('th,hc->tc', k_r, hmask,
                        preferred_element_type=jnp.float32)

    qn3 = qn.reshape(W, N, C)
    kn3 = kn.reshape(W, N, C)
    v3 = v.reshape(W, N, C)

    # --- block-diagonal K / V packing --------------------------------------
    # K_blk[w, h*N+j, c] = kn[w, j, c] * (head(c)==h)  (likewise V_blk), so a
    # single (N,C)@(C,M) matmul per window gives all heads' scores lane-dense
    # and P @ V_blk directly produces the multi-head concat.
    km_blk = (kn3[:, None, :, :] * hmask[None, :, None, :]).reshape(W, M, C)
    vm_blk = (v3[:, None, :, :] * hmask[None, :, None, :]).reshape(W, M, C)

    s = jnp.einsum('wqc,wmc->wqm', qn3.astype(cdt), km_blk.astype(cdt),
                   preferred_element_type=jnp.float32)                # (W, N, M)
    s = s + bias_ref[...]                                             # (N, M) bcast

    # Stability shift with the per-row max over all H*N lanes: the constant
    # cancels within each head's segment, so the softmax is exact.
    s = s - jnp.max(s, axis=-1, keepdims=True)
    p = jnp.exp(s)                                                    # lane-dense

    # segmented (per-head) denominator via a thin (M->H) reduce matmul;
    # reciprocal on the small (W,N,H) tensor, applied to the OUTPUT channels.
    seg = seg_ref[...]                                                # (H, M)
    l_seg = jnp.einsum('wqm,hm->wqh', p, seg,
                       preferred_element_type=jnp.float32)            # (W, N, H)
    r_seg = pl.reciprocal(l_seg, approx=True)

    out3 = jnp.einsum('wqm,wmc->wqc', p.astype(cdt), vm_blk.astype(cdt),
                      preferred_element_type=jnp.float32)             # (W, N, C)
    out3 = out3 * jnp.einsum('wqh,hc->wqc', r_seg, hmask,
                             preferred_element_type=jnp.float32)
    out = out3.reshape(T, C)

    # --- output projection --------------------------------------------------
    y = jnp.dot(out.astype(cdt), wp_ref[...].astype(cdt),
                preferred_element_type=jnp.float32) + pb_ref[...]
    o_ref[...] = y.astype(o_ref.dtype)


def window_attention_pallas(x, wq_t, wk_t, wv_t, q_bias, v_bias, scale_h,
                            bias, proj_w_t, proj_b, num_heads,
                            windows_per_step=None, mxu_dtype=jnp.float32):
    B_, N, C = x.shape
    H = num_heads
    d = C // H
    M = H * N

    if windows_per_step is None:
        # ~256 rows per step amortizes the ~0.35us/step cost and fills the MXU
        # sublane dim; at this toy size that collapses to a single step (G=1).
        # At real Swin sizes: keep G>=2 steps/core on v7x and budget W so
        # resident weights + 2x pipelined x/out blocks + (W,M,C) K/V packs fit
        # the 64 MiB (v7x) / 128 MiB (v5e/v6e) VMEM.
        W = min(B_, max(1, 256 // N))
        while B_ % W:
            W -= 1
    else:
        W = windows_per_step
    assert B_ % W == 0
    G = B_ // W
    T = W * N

    # Tiny grid-invariant constants (head channel mask, score-lane segment
    # mask, pre-transposed relative-position bias).
    head_id = jnp.arange(C) // d
    hmask = (jnp.arange(H)[:, None] == head_id[None, :]).astype(jnp.float32)   # (H, C)
    seg_id = jnp.arange(M) // N
    seg = (jnp.arange(H)[:, None] == seg_id[None, :]).astype(jnp.float32)      # (H, M)
    bias_m = bias.transpose(1, 0, 2).reshape(N, M)                             # (N, M)

    x2 = x.reshape(B_ * N, C)   # flat (rows, C) slab -> one load/store per step

    kernel = functools.partial(_window_attention_kernel, windows=W, seq_len=N,
                               num_heads=H, mxu_dtype=mxu_dtype)

    def const_spec(shape):
        # Grid-invariant operand: constant index map + single-buffered (no
        # double-buffer VMEM for weights / masks / bias tables).
        return pl.BlockSpec(shape, lambda g: (0, 0),
                            pipeline_mode=pl.Buffered(1))

    out2 = pl.pallas_call(
        kernel,
        out_shape=jax.ShapeDtypeStruct((B_ * N, C), x.dtype),
        grid=(G,),
        in_specs=[
            pl.BlockSpec((T, C), lambda g: (g, 0)),      # x rows of group g
            const_spec((C, C)),                          # Wq^T
            const_spec((C, C)),                          # Wk^T
            const_spec((C, C)),                          # Wv^T
            const_spec((1, C)),                          # q bias
            const_spec((1, C)),                          # v bias
            const_spec((1, H)),                          # per-head logit scale
            const_spec((H, C)),                          # head channel mask
            const_spec((H, M)),                          # score-lane segment mask
            const_spec((N, M)),                          # rel-pos bias (q, h*N+j)
            const_spec((C, C)),                          # Wproj^T
            const_spec((1, C)),                          # proj bias
        ],
        out_specs=pl.BlockSpec((T, C), lambda g: (g, 0)),
        compiler_params=pltpu.CompilerParams(
            dimension_semantics=("parallel",),
            # Plenty for this config on every generation; re-derive per target
            # (<=48 MiB on v7x) when scaling W / C to real Swin sizes.
            vmem_limit_bytes=32 * 1024 * 1024),
    )(x2, wq_t, wk_t, wv_t, q_bias[None, :], v_bias[None, :],
      scale_h[None, :], hmask, seg, bias_m, proj_w_t, proj_b[None, :])

    return out2.reshape(B_, N, C)


# ----------------------------- JAX glue -------------------------------------


def init_params(key, dim, num_heads):
    ks = jax.random.split(key, 8)
    p = {}
    p["qkv_weight"] = 0.05 * jax.random.normal(ks[0], (3 * dim, dim), jnp.float32)
    p["q_bias"] = 0.05 * jax.random.normal(ks[1], (dim,), jnp.float32)
    p["v_bias"] = 0.05 * jax.random.normal(ks[2], (dim,), jnp.float32)
    p["logit_scale"] = jnp.log(10.0 * jnp.ones((num_heads, 1, 1), jnp.float32))
    p["cpb_w1"] = 0.05 * jax.random.normal(ks[3], (512, 2), jnp.float32)
    p["cpb_b1"] = 0.05 * jax.random.normal(ks[4], (512,), jnp.float32)
    p["cpb_w2"] = 0.05 * jax.random.normal(ks[5], (num_heads, 512), jnp.float32)
    p["proj_weight"] = 0.05 * jax.random.normal(ks[6], (dim, dim), jnp.float32)
    p["proj_bias"] = 0.05 * jax.random.normal(ks[7], (dim,), jnp.float32)
    return p


def relative_position_bias(p, window_size, num_heads):
    """Data-independent (H, N, N) bias: cpb MLP + index gather + 16*sigmoid."""
    Wh, Ww = window_size
    rh = jnp.arange(-(Wh - 1), Wh, dtype=jnp.float32)
    rw = jnp.arange(-(Ww - 1), Ww, dtype=jnp.float32)
    tbl = jnp.stack(jnp.meshgrid(rh, rw, indexing="ij"), axis=-1)  # (2Wh-1,2Ww-1,2)
    tbl = tbl / jnp.array([max(Wh - 1, 1), max(Ww - 1, 1)], jnp.float32)
    tbl = jnp.sign(tbl) * jnp.log2(8.0 * jnp.abs(tbl) + 1.0) / 3.0

    flat = tbl.reshape(-1, 2)
    h1 = jax.nn.relu(flat @ p["cpb_w1"].T + p["cpb_b1"])
    bias_table = h1 @ p["cpb_w2"].T                        # ((2Wh-1)(2Ww-1), H)

    coords = jnp.stack(jnp.meshgrid(jnp.arange(Wh), jnp.arange(Ww), indexing="ij"))
    cf = coords.reshape(2, -1)                             # (2, N)
    rel = cf[:, :, None] - cf[:, None, :]                  # (2, N, N)
    rel = rel.transpose(1, 2, 0)                           # (N, N, 2)
    rel = rel + jnp.array([Wh - 1, Ww - 1])
    rel = rel.at[:, :, 0].multiply(2 * Ww - 1)
    idx = rel.sum(-1)                                      # (N, N)

    N = Wh * Ww
    rpb = bias_table[idx.reshape(-1)].reshape(N, N, num_heads)
    rpb = rpb.transpose(2, 0, 1)                           # (H, N, N)
    return 16.0 * jax.nn.sigmoid(rpb)


def reference_forward(x, p, bias, num_heads):
    """Pure-JAX reference matching the PyTorch forward (mask=None, no dropout)."""
    B_, N, C = x.shape
    H = num_heads
    d = C // H
    qkv_bias = jnp.concatenate(
        [p["q_bias"], jnp.zeros_like(p["v_bias"]), p["v_bias"]])
    qkv = x @ p["qkv_weight"].T + qkv_bias
    qkv = qkv.reshape(B_, N, 3, H, d).transpose(2, 0, 3, 1, 4)
    q, k, v = qkv[0], qkv[1], qkv[2]
    qn = q / jnp.maximum(jnp.linalg.norm(q, axis=-1, keepdims=True), 1e-12)
    kn = k / jnp.maximum(jnp.linalg.norm(k, axis=-1, keepdims=True), 1e-12)
    attn = qn @ kn.transpose(0, 1, 3, 2)
    scale = jnp.exp(jnp.minimum(p["logit_scale"], 4.605170185988091))
    attn = attn * scale[None]
    attn = attn + bias[None]
    attn = jax.nn.softmax(attn, axis=-1)
    out = (attn @ v).transpose(0, 2, 1, 3).reshape(B_, N, C)
    return out @ p["proj_weight"].T + p["proj_bias"]


# ----------------------------- main ------------------------------------------


if __name__ == "__main__":
    dim = 32
    window_size = (4, 4)
    num_heads = 4
    N = window_size[0] * window_size[1]     # 16 tokens per window
    B_ = 8                                   # number of windows

    key = jax.random.PRNGKey(0)
    xkey, pkey = jax.random.split(key)
    x = jax.random.normal(xkey, (B_, N, dim), jnp.float32)
    params = init_params(pkey, dim, num_heads)

    # Glue: data-independent constants fed to the kernel.
    bias = relative_position_bias(params, window_size, num_heads)      # (H, N, N)
    scale_h = jnp.exp(jnp.minimum(params["logit_scale"].reshape(num_heads),
                                  4.605170185988091))                  # (H,)

    qkv_w = params["qkv_weight"]                                       # (3C, C)
    wq_t = qkv_w[:dim].T                                               # (C, C)
    wk_t = qkv_w[dim:2 * dim].T
    wv_t = qkv_w[2 * dim:].T
    proj_w_t = params["proj_weight"].T                                 # (C, C)

    ref = reference_forward(x, params, bias, num_heads)

    # Primary check: f32 MXU path against the module's 2e-3 tolerance.
    out = window_attention_pallas(
        x, wq_t, wk_t, wv_t, params["q_bias"], params["v_bias"], scale_h,
        bias, proj_w_t, params["proj_bias"], num_heads)
    out = jax.block_until_ready(out)
    np.testing.assert_allclose(np.asarray(out), np.asarray(ref),
                               rtol=2e-3, atol=2e-3)

    # bf16-MXU path (per perf review for v5e/v6e/v7x): same kernel with matmul
    # operands cast to bf16 and f32 accumulation / normalization / softmax.
    # Validated at a bf16-appropriate tolerance (dim=32 leaves no headroom for
    # bf16 logits inside the 2e-3 budget, hence the separate check).
    out_bf16 = window_attention_pallas(
        x, wq_t, wk_t, wv_t, params["q_bias"], params["v_bias"], scale_h,
        bias, proj_w_t, params["proj_bias"], num_heads,
        mxu_dtype=jnp.bfloat16)
    out_bf16 = jax.block_until_ready(out_bf16)
    np.testing.assert_allclose(np.asarray(out_bf16), np.asarray(ref),
                               rtol=2e-2, atol=2e-2)

    print("KERNEL_OK")
</pallas_src>

<mosaic_0001>
module attributes {stable_mosaic.version = 11 : i64} {
  func.func @_window_attention_kernel(%arg0: i32, %arg1: memref<128x32xf32, #tpu.memory_space<vmem>>, %arg2: memref<32x32xf32, #tpu.memory_space<vmem>>, %arg3: memref<32x32xf32, #tpu.memory_space<vmem>>, %arg4: memref<32x32xf32, #tpu.memory_space<vmem>>, %arg5: memref<1x32xf32, #tpu.memory_space<vmem>>, %arg6: memref<1x32xf32, #tpu.memory_space<vmem>>, %arg7: memref<1x4xf32, #tpu.memory_space<vmem>>, %arg8: memref<4x32xf32, #tpu.memory_space<vmem>>, %arg9: memref<4x64xf32, #tpu.memory_space<vmem>>, %arg10: memref<16x64xf32, #tpu.memory_space<vmem>>, %arg11: memref<32x32xf32, #tpu.memory_space<vmem>>, %arg12: memref<1x32xf32, #tpu.memory_space<vmem>>, %arg13: memref<128x32xf32, #tpu.memory_space<vmem>>) attributes {dimension_semantics = [#tpu.dimension_semantics<parallel>], iteration_bounds = array<i64: 1>, scalar_prefetch = 0 : i64, scratch_operands = 0 : i64, tpu.core_type = #tpu.core_type<tc>, window_params = [{transform_indices = @transform_0, window_bounds = array<i64: 128, 32>}, {pipeline_mode = #tpu.pipeline_mode<synchronous>, transform_indices = @transform_1, window_bounds = array<i64: 32, 32>}, {pipeline_mode = #tpu.pipeline_mode<synchronous>, transform_indices = @transform_2, window_bounds = array<i64: 32, 32>}, {pipeline_mode = #tpu.pipeline_mode<synchronous>, transform_indices = @transform_3, window_bounds = array<i64: 32, 32>}, {pipeline_mode = #tpu.pipeline_mode<synchronous>, transform_indices = @transform_4, window_bounds = array<i64: 1, 32>}, {pipeline_mode = #tpu.pipeline_mode<synchronous>, transform_indices = @transform_5, window_bounds = array<i64: 1, 32>}, {pipeline_mode = #tpu.pipeline_mode<synchronous>, transform_indices = @transform_6, window_bounds = array<i64: 1, 4>}, {pipeline_mode = #tpu.pipeline_mode<synchronous>, transform_indices = @transform_7, window_bounds = array<i64: 4, 32>}, {pipeline_mode = #tpu.pipeline_mode<synchronous>, transform_indices = @transform_8, window_bounds = array<i64: 4, 64>}, {pipeline_mode = #tpu.pipeline_mode<synchronous>, transform_indices = @transform_9, window_bounds = array<i64: 16, 64>}, {pipeline_mode = #tpu.pipeline_mode<synchronous>, transform_indices = @transform_10, window_bounds = array<i64: 32, 32>}, {pipeline_mode = #tpu.pipeline_mode<synchronous>, transform_indices = @transform_11, window_bounds = array<i64: 1, 32>}, {transform_indices = @transform_12, window_bounds = array<i64: 128, 32>}]} {
    %c0 = arith.constant 0 : index
    %c0_0 = arith.constant 0 : index
    %0 = vector.load %arg1[%c0, %c0_0] : memref<128x32xf32, #tpu.memory_space<vmem>>, vector<128x32xf32>
    %c0_1 = arith.constant 0 : index
    %c0_2 = arith.constant 0 : index
    %1 = vector.load %arg2[%c0_1, %c0_2] : memref<32x32xf32, #tpu.memory_space<vmem>>, vector<32x32xf32>
    %cst = arith.constant dense<0.000000e+00> : vector<128x32xf32>
    %2 = tpu.matmul %0, %1, %cst {dimension_numbers = #tpu.dot_dimension_numbers<[1], [0], [0], [1], [0, 0, 1, 1], [], []>} : vector<128x32xf32>, vector<32x32xf32>, vector<128x32xf32> -> vector<128x32xf32>
    %c0_3 = arith.constant 0 : index
    %c0_4 = arith.constant 0 : index
    %3 = vector.load %arg5[%c0_3, %c0_4] : memref<1x32xf32, #tpu.memory_space<vmem>>, vector<1x32xf32>
    %4 = vector.broadcast %3 : vector<1x32xf32> to vector<128x32xf32>
    %5 = arith.addf %2, %4 : vector<128x32xf32>
    %c0_5 = arith.constant 0 : index
    %c0_6 = arith.constant 0 : index
    %6 = vector.load %arg3[%c0_5, %c0_6] : memref<32x32xf32, #tpu.memory_space<vmem>>, vector<32x32xf32>
    %cst_7 = arith.constant dense<0.000000e+00> : vector<128x32xf32>
    %7 = tpu.matmul %0, %6, %cst_7 {dimension_numbers = #tpu.dot_dimension_numbers<[1], [0], [0], [1], [0, 0, 1, 1], [], []>} : vector<128x32xf32>, vector<32x32xf32>, vector<128x32xf32> -> vector<128x32xf32>
    %c0_8 = arith.constant 0 : index
    %c0_9 = arith.constant 0 : index
    %8 = vector.load %arg4[%c0_8, %c0_9] : memref<32x32xf32, #tpu.memory_space<vmem>>, vector<32x32xf32>
    %cst_10 = arith.constant dense<0.000000e+00> : vector<128x32xf32>
    %9 = tpu.matmul %0, %8, %cst_10 {dimension_numbers = #tpu.dot_dimension_numbers<[1], [0], [0], [1], [0, 0, 1, 1], [], []>} : vector<128x32xf32>, vector<32x32xf32>, vector<128x32xf32> -> vector<128x32xf32>
    %c0_11 = arith.constant 0 : index
    %c0_12 = arith.constant 0 : index
    %10 = vector.load %arg6[%c0_11, %c0_12] : memref<1x32xf32, #tpu.memory_space<vmem>>, vector<1x32xf32>
    %11 = vector.broadcast %10 : vector<1x32xf32> to vector<128x32xf32>
    %12 = arith.addf %9, %11 : vector<128x32xf32>
    %c0_13 = arith.constant 0 : index
    %c0_14 = arith.constant 0 : index
    %13 = vector.load %arg8[%c0_13, %c0_14] : memref<4x32xf32, #tpu.memory_space<vmem>>, vector<4x32xf32>
    %14 = arith.mulf %5, %5 : vector<128x32xf32>
    "tpu.trace_start"() <{level = 10 : i32, message = "tc,hc->th"}> : () -> ()
    %cst_15 = arith.constant dense<0.000000e+00> : vector<128x4xf32>
    %15 = tpu.matmul %14, %13, %cst_15 {dimension_numbers = #tpu.dot_dimension_numbers<[1], [1], [0], [0], [0, 0, 1, 0], [], []>} : vector<128x32xf32>, vector<4x32xf32>, vector<128x4xf32> -> vector<128x4xf32>
    "tpu.trace_stop"() : () -> ()
    %16 = arith.mulf %7, %7 : vector<128x32xf32>
    "tpu.trace_start"() <{level = 10 : i32, message = "tc,hc->th"}> : () -> ()
    %cst_16 = arith.constant dense<0.000000e+00> : vector<128x4xf32>
    %17 = tpu.matmul %16, %13, %cst_16 {dimension_numbers = #tpu.dot_dimension_numbers<[1], [1], [0], [0], [0, 0, 1, 0], [], []>} : vector<128x32xf32>, vector<4x32xf32>, vector<128x4xf32> -> vector<128x4xf32>
    "tpu.trace_stop"() : () -> ()
    %cst_17 = arith.constant 1.000000e-24 : f32
    %18 = vector.broadcast %cst_17 : f32 to vector<128x4xf32>
    %19 = arith.maximumf %15, %18 : vector<128x4xf32>
    %20 = math.rsqrt %19 : vector<128x4xf32>
    %c0_18 = arith.constant 0 : index
    %c0_19 = arith.constant 0 : index
    %21 = vector.load %arg7[%c0_18, %c0_19] : memref<1x4xf32, #tpu.memory_space<vmem>>, vector<1x4xf32>
    %22 = vector.broadcast %21 : vector<1x4xf32> to vector<128x4xf32>
    %23 = arith.mulf %20, %22 : vector<128x4xf32>
    %cst_20 = arith.constant 1.000000e-24 : f32
    %24 = vector.broadcast %cst_20 : f32 to vector<128x4xf32>
    %25 = arith.maximumf %17, %24 : vector<128x4xf32>
    %26 = math.rsqrt %25 : vector<128x4xf32>
    "tpu.trace_start"() <{level = 10 : i32, message = "th,hc->tc"}> : () -> ()
    %cst_21 = arith.constant dense<0.000000e+00> : vector<128x32xf32>
    %27 = tpu.matmul %23, %13, %cst_21 {dimension_numbers = #tpu.dot_dimension_numbers<[1], [0], [0], [1], [0, 0, 1, 1], [], []>} : vector<128x4xf32>, vector<4x32xf32>, vector<128x32xf32> -> vector<128x32xf32>
    "tpu.trace_stop"() : () -> ()
    %28 = arith.mulf %5, %27 : vector<128x32xf32>
    "tpu.trace_start"() <{level = 10 : i32, message = "th,hc->tc"}> : () -> ()
    %cst_22 = arith.constant dense<0.000000e+00> : vector<128x32xf32>
    %29 = tpu.matmul %26, %13, %cst_22 {dimension_numbers = #tpu.dot_dimension_numbers<[1], [0], [0], [1], [0, 0, 1, 1], [], []>} : vector<128x4xf32>, vector<4x32xf32>, vector<128x32xf32> -> vector<128x32xf32>
    "tpu.trace_stop"() : () -> ()
    %30 = arith.mulf %7, %29 : vector<128x32xf32>
    %31 = vector.shape_cast %28 : vector<128x32xf32> to vector<8x16x32xf32>
    %32 = vector.shape_cast %30 : vector<128x32xf32> to vector<8x16x32xf32>
    %33 = vector.shape_cast %12 : vector<128x32xf32> to vector<8x16x32xf32>
    %34 = vector.shape_cast %32 : vector<8x16x32xf32> to vector<8x1x16x32xf32>
    %35 = vector.shape_cast %13 : vector<4x32xf32> to vector<1x4x1x32xf32>
    %36 = vector.broadcast %34 : vector<8x1x16x32xf32> to vector<8x4x16x32xf32>
    %37 = vector.broadcast %35 : vector<1x4x1x32xf32> to vector<8x4x16x32xf32>
    %38 = arith.mulf %36, %37 : vector<8x4x16x32xf32>
    %39 = vector.shape_cast %38 : vector<8x4x16x32xf32> to vector<8x64x32xf32>
    %40 = vector.shape_cast %33 : vector<8x16x32xf32> to vector<8x1x16x32xf32>
    %41 = vector.shape_cast %13 : vector<4x32xf32> to vector<1x4x1x32xf32>
    %42 = vector.broadcast %40 : vector<8x1x16x32xf32> to vector<8x4x16x32xf32>
    %43 = vector.broadcast %41 : vector<1x4x1x32xf32> to vector<8x4x16x32xf32>
    %44 = arith.mulf %42, %43 : vector<8x4x16x32xf32>
    %45 = vector.shape_cast %44 : vector<8x4x16x32xf32> to vector<8x64x32xf32>
    "tpu.trace_start"() <{level = 10 : i32, message = "wqc,wmc->wqm"}> : () -> ()
    %cst_23 = arith.constant dense<0.000000e+00> : vector<8x16x64xf32>
    %46 = tpu.matmul %31, %39, %cst_23 {dimension_numbers = #tpu.dot_dimension_numbers<[2], [2], [1], [1], [0, 0, 0, 1, 1, 1], [0], [0]>} : vector<8x16x32xf32>, vector<8x64x32xf32>, vector<8x16x64xf32> -> vector<8x16x64xf32>
    "tpu.trace_stop"() : () -> ()
    %c0_24 = arith.constant 0 : index
    %c0_25 = arith.constant 0 : index
    %47 = vector.load %arg10[%c0_24, %c0_25] : memref<16x64xf32, #tpu.memory_space<vmem>>, vector<16x64xf32>
    %48 = vector.shape_cast %47 : vector<16x64xf32> to vector<1x16x64xf32>
    %49 = vector.broadcast %48 : vector<1x16x64xf32> to vector<8x16x64xf32>
    %50 = arith.addf %46, %49 : vector<8x16x64xf32>
    %cst_26 = arith.constant dense<0xFF800000> : vector<8x16xf32>
    %51 = vector.multi_reduction <maximumf>, %50, %cst_26 [2] : vector<8x16x64xf32> to vector<8x16xf32>
    %52 = vector.shape_cast %51 : vector<8x16xf32> to vector<8x16x1xf32>
    %53 = vector.broadcast %52 : vector<8x16x1xf32> to vector<8x16x64xf32>
    %54 = arith.subf %50, %53 : vector<8x16x64xf32>
    %55 = math.exp %54 : vector<8x16x64xf32>
    %c0_27 = arith.constant 0 : index
    %c0_28 = arith.constant 0 : index
    %56 = vector.load %arg9[%c0_27, %c0_28] : memref<4x64xf32, #tpu.memory_space<vmem>>, vector<4x64xf32>
    "tpu.trace_start"() <{level = 10 : i32, message = "wqm,hm->wqh"}> : () -> ()
    %cst_29 = arith.constant dense<0.000000e+00> : vector<8x16x4xf32>
    %57 = tpu.matmul %55, %56, %cst_29 {dimension_numbers = #tpu.dot_dimension_numbers<[2], [1], [0, 1], [0], [0, 0, 0, 1, 1, 0], [], []>} : vector<8x16x64xf32>, vector<4x64xf32>, vector<8x16x4xf32> -> vector<8x16x4xf32>
    "tpu.trace_stop"() : () -> ()
    %58 = tpu.reciprocal %57 {approx = true} : vector<8x16x4xf32> -> vector<8x16x4xf32>
    "tpu.trace_start"() <{level = 10 : i32, message = "wqm,wmc->wqc"}> : () -> ()
    %cst_30 = arith.constant dense<0.000000e+00> : vector<8x16x32xf32>
    %59 = tpu.matmul %55, %45, %cst_30 {dimension_numbers = #tpu.dot_dimension_numbers<[2], [1], [1], [2], [0, 0, 0, 1, 1, 2], [0], [0]>} : vector<8x16x64xf32>, vector<8x64x32xf32>, vector<8x16x32xf32> -> vector<8x16x32xf32>
    "tpu.trace_stop"() : () -> ()
    "tpu.trace_start"() <{level = 10 : i32, message = "wqh,hc->wqc"}> : () -> ()
    %cst_31 = arith.constant dense<0.000000e+00> : vector<8x16x32xf32>
    %60 = tpu.matmul %58, %13, %cst_31 {dimension_numbers = #tpu.dot_dimension_numbers<[2], [0], [0, 1], [1], [0, 0, 0, 1, 1, 1], [], []>} : vector<8x16x4xf32>, vector<4x32xf32>, vector<8x16x32xf32> -> vector<8x16x32xf32>
    "tpu.trace_stop"() : () -> ()
    %61 = arith.mulf %59, %60 : vector<8x16x32xf32>
    %62 = vector.shape_cast %61 : vector<8x16x32xf32> to vector<128x32xf32>
    %c0_32 = arith.constant 0 : index
    %c0_33 = arith.constant 0 : index
    %63 = vector.load %arg11[%c0_32, %c0_33] : memref<32x32xf32, #tpu.memory_space<vmem>>, vector<32x32xf32>
    %cst_34 = arith.constant dense<0.000000e+00> : vector<128x32xf32>
    %64 = tpu.matmul %62, %63, %cst_34 {dimension_numbers = #tpu.dot_dimension_numbers<[1], [0], [0], [1], [0, 0, 1, 1], [], []>} : vector<128x32xf32>, vector<32x32xf32>, vector<128x32xf32> -> vector<128x32xf32>
    %c0_35 = arith.constant 0 : index
    %c0_36 = arith.constant 0 : index
    %65 = vector.load %arg12[%c0_35, %c0_36] : memref<1x32xf32, #tpu.memory_space<vmem>>, vector<1x32xf32>
    %66 = vector.broadcast %65 : vector<1x32xf32> to vector<128x32xf32>
    %67 = arith.addf %64, %66 : vector<128x32xf32>
    %c0_37 = arith.constant 0 : index
    %c0_38 = arith.constant 0 : index
    %68 = vector.load %arg13[%c0_37, %c0_38] : memref<128x32xf32, #tpu.memory_space<vmem>>, vector<128x32xf32>
    tpu.vector_store %arg13[%c0_37, %c0_38], %67 {strides = array<i32>} : memref<128x32xf32, #tpu.memory_space<vmem>>, vector<128x32xf32>,
    return
  }
  func.func @transform_0(%arg0: i32) -> (i32, i32) {
    %c0_i32 = arith.constant 0 : i32
    %c0_i32_0 = arith.constant 0 : i32
    return %arg0, %c0_i32 : i32, i32
  }
  func.func @transform_1(%arg0: i32) -> (i32, i32) {
    %c0_i32 = arith.constant 0 : i32
    %c0_i32_0 = arith.constant 0 : i32
    %c0_i32_1 = arith.constant 0 : i32
    return %c0_i32, %c0_i32_0 : i32, i32
  }
  func.func @transform_2(%arg0: i32) -> (i32, i32) {
    %c0_i32 = arith.constant 0 : i32
    %c0_i32_0 = arith.constant 0 : i32
    %c0_i32_1 = arith.constant 0 : i32
    return %c0_i32, %c0_i32_0 : i32, i32
  }
  func.func @transform_3(%arg0: i32) -> (i32, i32) {
    %c0_i32 = arith.constant 0 : i32
    %c0_i32_0 = arith.constant 0 : i32
    %c0_i32_1 = arith.constant 0 : i32
    return %c0_i32, %c0_i32_0 : i32, i32
  }
  func.func @transform_4(%arg0: i32) -> (i32, i32) {
    %c0_i32 = arith.constant 0 : i32
    %c0_i32_0 = arith.constant 0 : i32
    %c0_i32_1 = arith.constant 0 : i32
    return %c0_i32, %c0_i32_0 : i32, i32
  }
  func.func @transform_5(%arg0: i32) -> (i32, i32) {
    %c0_i32 = arith.constant 0 : i32
    %c0_i32_0 = arith.constant 0 : i32
    %c0_i32_1 = arith.constant 0 : i32
    return %c0_i32, %c0_i32_0 : i32, i32
  }
  func.func @transform_6(%arg0: i32) -> (i32, i32) {
    %c0_i32 = arith.constant 0 : i32
    %c0_i32_0 = arith.constant 0 : i32
    %c0_i32_1 = arith.constant 0 : i32
    return %c0_i32, %c0_i32_0 : i32, i32
  }
  func.func @transform_7(%arg0: i32) -> (i32, i32) {
    %c0_i32 = arith.constant 0 : i32
    %c0_i32_0 = arith.constant 0 : i32
    %c0_i32_1 = arith.constant 0 : i32
    return %c0_i32, %c0_i32_0 : i32, i32
  }
  func.func @transform_8(%arg0: i32) -> (i32, i32) {
    %c0_i32 = arith.constant 0 : i32
    %c0_i32_0 = arith.constant 0 : i32
    %c0_i32_1 = arith.constant 0 : i32
    return %c0_i32, %c0_i32_0 : i32, i32
  }
  func.func @transform_9(%arg0: i32) -> (i32, i32) {
    %c0_i32 = arith.constant 0 : i32
    %c0_i32_0 = arith.constant 0 : i32
    %c0_i32_1 = arith.constant 0 : i32
    return %c0_i32, %c0_i32_0 : i32, i32
  }
  func.func @transform_10(%arg0: i32) -> (i32, i32) {
    %c0_i32 = arith.constant 0 : i32
    %c0_i32_0 = arith.constant 0 : i32
    %c0_i32_1 = arith.constant 0 : i32
    return %c0_i32, %c0_i32_0 : i32, i32
  }
  func.func @transform_11(%arg0: i32) -> (i32, i32) {
    %c0_i32 = arith.constant 0 : i32
    %c0_i32_0 = arith.constant 0 : i32
    %c0_i32_1 = arith.constant 0 : i32
    return %c0_i32, %c0_i32_0 : i32, i32
  }
  func.func @transform_12(%arg0: i32) -> (i32, i32) {
    %c0_i32 = arith.constant 0 : i32
    %c0_i32_0 = arith.constant 0 : i32
    return %arg0, %c0_i32 : i32, i32
  }
}

</mosaic_0001>

<llo_original>
// kernel: tpu_custom_call.1
$region0: #{tpu_custom_call.1}
  #allocation0 [shape = 'u32[]', space=smem, size = 0x4, offset = 0x4, fixed_abs, tag = 'smem constant byte address 0x4 - core index']
  #allocation1 [shape = 'u32[144,128]{1,0:T(1,128)}', space=vmem, size = 0x12000, scoped, tag = 'internal scratch']
  %s0 = inlined_call_operand.vmem [shape: f32[128,32], index: 0, kind: input, shape index: {}]
  %s1 = inlined_call_operand.vmem [shape: f32[32,32], index: 1, kind: input, shape index: {}]
  %s2 = inlined_call_operand.vmem [shape: f32[32,32], index: 2, kind: input, shape index: {}]
  %s3 = inlined_call_operand.vmem [shape: f32[32,32], index: 3, kind: input, shape index: {}]
  %s4 = inlined_call_operand.vmem [shape: f32[1,32], index: 4, kind: input, shape index: {}]
  %s5 = inlined_call_operand.vmem [shape: f32[1,32], index: 5, kind: input, shape index: {}]
  %s6 = inlined_call_operand.vmem [shape: f32[1,4], index: 6, kind: input, shape index: {}]
  %s7 = inlined_call_operand.vmem [shape: f32[4,32], index: 7, kind: input, shape index: {}]
  %s8 = inlined_call_operand.vmem [shape: f32[4,64], index: 8, kind: input, shape index: {}]
  %s9 = inlined_call_operand.vmem [shape: f32[16,64], index: 9, kind: input, shape index: {}]
  %s10 = inlined_call_operand.vmem [shape: f32[32,32], index: 10, kind: input, shape index: {}]
  %s11 = inlined_call_operand.vmem [shape: f32[1,32], index: 11, kind: input, shape index: {}]
  %s12 = inlined_call_operand.vmem [shape: f32[128,32], index: 12, kind: output, shape index: {}]
  %s13 = sld [smem:[#allocation0]]
  $region58: #{tpu_custom_call.1} parent=0
    _
  %s15 = ssub.s32 1, %s13
  %s16 = scalar_select 0, %s15, %s13
  // Predicated region
  $region2: #{tpu_custom_call.1} parent=0 // pred_check
    _
  $region3: #{tpu_custom_call.1} parent=0 // pred_check_branch
    %18 = sbr.rel (0) target = $region5
  $region4: #{tpu_custom_call.1} parent=0 // pred_region
    _
  $region5: #{tpu_custom_call.1} parent=0 // pred_fallthru
    _
  // Predicated region
  $region6: #{tpu_custom_call.1} parent=0 // pred_check
    _
  $region7: #{tpu_custom_call.1} parent=0 // pred_check_branch
    %20 = sbr.rel (0) target = $region9
  $region8: #{tpu_custom_call.1} parent=0 // pred_region
    _
  $region9: #{tpu_custom_call.1} parent=0 // pred_fallthru
    _
  // Predicated region
  $region10: #{tpu_custom_call.1} parent=0 // pred_check
    _
  $region11: #{tpu_custom_call.1} parent=0 // pred_check_branch
    %22 = sbr.rel (0) target = $region13
  $region12: #{tpu_custom_call.1} parent=0 // pred_region
    _
  $region13: #{tpu_custom_call.1} parent=0 // pred_fallthru
    _
  // Predicated region
  $region14: #{tpu_custom_call.1} parent=0 // pred_check
    _
  $region15: #{tpu_custom_call.1} parent=0 // pred_check_branch
    %24 = sbr.rel (0) target = $region17
  $region16: #{tpu_custom_call.1} parent=0 // pred_region
    _
  $region17: #{tpu_custom_call.1} parent=0 // pred_fallthru
    _
  // Predicated region
  $region18: #{tpu_custom_call.1} parent=0 // pred_check
    _
  $region19: #{tpu_custom_call.1} parent=0 // pred_check_branch
    %26 = sbr.rel (0) target = $region21
  $region20: #{tpu_custom_call.1} parent=0 // pred_region
    _
  $region21: #{tpu_custom_call.1} parent=0 // pred_fallthru
    _
  // Predicated region
  $region22: #{tpu_custom_call.1} parent=0 // pred_check
    _
  $region23: #{tpu_custom_call.1} parent=0 // pred_check_branch
    %28 = sbr.rel (0) target = $region25
  $region24: #{tpu_custom_call.1} parent=0 // pred_region
    _
  $region25: #{tpu_custom_call.1} parent=0 // pred_fallthru
    _
  // Predicated region
  $region26: #{tpu_custom_call.1} parent=0 // pred_check
    _
  $region27: #{tpu_custom_call.1} parent=0 // pred_check_branch
    %30 = sbr.rel (0) target = $region29
  $region28: #{tpu_custom_call.1} parent=0 // pred_region
    _
  $region29: #{tpu_custom_call.1} parent=0 // pred_fallthru
    _
  // Predicated region
  $region30: #{tpu_custom_call.1} parent=0 // pred_check
    _
  $region31: #{tpu_custom_call.1} parent=0 // pred_check_branch
    %32 = sbr.rel (0) target = $region33
  $region32: #{tpu_custom_call.1} parent=0 // pred_region
    _
  $region33: #{tpu_custom_call.1} parent=0 // pred_fallthru
    _
  // Predicated region
  $region34: #{tpu_custom_call.1} parent=0 // pred_check
    _
  $region35: #{tpu_custom_call.1} parent=0 // pred_check_branch
    %34 = sbr.rel (0) target = $region37
  $region36: #{tpu_custom_call.1} parent=0 // pred_region
    _
  $region37: #{tpu_custom_call.1} parent=0 // pred_fallthru
    _
  // Predicated region
  $region38: #{tpu_custom_call.1} parent=0 // pred_check
    _
  $region39: #{tpu_custom_call.1} parent=0 // pred_check_branch
    %36 = sbr.rel (0) target = $region41
  $region40: #{tpu_custom_call.1} parent=0 // pred_region
    _
  $region41: #{tpu_custom_call.1} parent=0 // pred_fallthru
    _
  // Predicated region
  $region42: #{tpu_custom_call.1} parent=0 // pred_check
    _
  $region43: #{tpu_custom_call.1} parent=0 // pred_check_branch
    %38 = sbr.rel (0) target = $region45
  $region44: #{tpu_custom_call.1} parent=0 // pred_region
    _
  $region45: #{tpu_custom_call.1} parent=0 // pred_fallthru
    _
  // Predicated region
  $region46: #{tpu_custom_call.1} parent=0 // pred_check
    _
  $region47: #{tpu_custom_call.1} parent=0 // pred_check_branch
    %40 = sbr.rel (0) target = $region49
  $region48: #{tpu_custom_call.1} parent=0 // pred_region
    _
  $region49: #{tpu_custom_call.1} parent=0 // pred_fallthru
    _
  %v41 = vld [vmem:[%s0] sm:$0xff]
  %v42 = vld [vmem:[%s0 + $0x8] sm:$0xff]
  %v43 = vld [vmem:[%s0 + $0x10] sm:$0xff]
  %v44 = vld [vmem:[%s0 + $0x18] sm:$0xff]
  %v45 = vld [vmem:[%s0 + $0x20] sm:$0xff]
  %v46 = vld [vmem:[%s0 + $0x28] sm:$0xff]
  %v47 = vld [vmem:[%s0 + $0x30] sm:$0xff]
  %v48 = vld [vmem:[%s0 + $0x38] sm:$0xff]
  %v49 = vld [vmem:[%s0 + $0x40] sm:$0xff]
  %v50 = vld [vmem:[%s0 + $0x48] sm:$0xff]
  %v51 = vld [vmem:[%s0 + $0x50] sm:$0xff]
  %v52 = vld [vmem:[%s0 + $0x58] sm:$0xff]
  %v53 = vld [vmem:[%s0 + $0x60] sm:$0xff]
  %v54 = vld [vmem:[%s0 + $0x68] sm:$0xff]
  %v55 = vld [vmem:[%s0 + $0x70] sm:$0xff]
  %v56 = vld [vmem:[%s0 + $0x78] sm:$0xff]
  %v57 = vld [vmem:[%s1] sm:$0xff]
  %v58 = vld [vmem:[%s1 + $0x8] sm:$0xff]
  %v59 = vld [vmem:[%s1 + $0x10] sm:$0xff]
  %v60 = vld [vmem:[%s1 + $0x18] sm:$0xff]
  %v61 = vld [vmem:[%s4] sm:$0x1]
  %v63 = vlaneseq
  %v64 = vshrl.u32 %v63, 7
  %v65 = vsub.s32 0, %v64
  %v66 = vrot.slane %v61, %v65
  %vm68 = vcmask 261120
  %v70 = vsel %vm68, %v41, 0
  %v73 = vsel %vm68, %v42, 0
  %v76 = vsel %vm68, %v43, 0
  %v79 = vsel %vm68, %v44, 0
  %v82 = vsel %vm68, %v45, 0
  %v85 = vsel %vm68, %v46, 0
  %v88 = vsel %vm68, %v47, 0
  %v91 = vsel %vm68, %v48, 0
  %v94 = vsel %vm68, %v49, 0
  %v97 = vsel %vm68, %v50, 0
  %v100 = vsel %vm68, %v51, 0
  %v103 = vsel %vm68, %v52, 0
  %v106 = vsel %vm68, %v53, 0
  %v109 = vsel %vm68, %v54, 0
  %v112 = vsel %vm68, %v55, 0
  %v115 = vsel %vm68, %v56, 0
  %117 = vmatprep.subr.mxu0 0.0
  %118 = vmatpush1.msra.mxu0 %v57
  %119 = vmatprep.subr.mxu0 0.0
  %120 = vmatpush1.msra.mxu0 %v58
  %121 = vmatprep.subr.mxu0 0.0
  %122 = vmatpush1.msra.mxu0 %v59
  %123 = vmatprep.subr.mxu0 0.0
  %124 = vmatpush1.msra.mxu0 %v60
  %125 = vmatprep.subr.mxu0 0.0
  %126 = vmatpush1.msra.mxu0 0.0
  %127 = vmatprep.subr.mxu0 0.0
  %128 = vmatpush1.msra.mxu0 0.0
  %129 = vmatprep.subr.mxu0 0.0
  %130 = vmatpush1.msra.mxu0 0.0
  %131 = vmatprep.subr.mxu0 0.0
  %132 = vmatpush1.msra.mxu0 0.0
  %133 = vmatprep.subr.mxu0 0.0
  %134 = vmatpush1.msra.mxu0 0.0
  %135 = vmatprep.subr.mxu0 0.0
  %136 = vmatpush1.msra.mxu0 0.0
  %137 = vmatprep.subr.mxu0 0.0
  %138 = vmatpush1.msra.mxu0 0.0
  %139 = vmatprep.subr.mxu0 0.0
  %140 = vmatpush1.msra.mxu0 0.0
  %141 = vmatprep.subr.mxu0 0.0
  %142 = vmatpush1.msra.mxu0 0.0
  %143 = vmatprep.subr.mxu0 0.0
  %144 = vmatpush1.msra.mxu0 0.0
  %145 = vmatprep.subr.mxu0 0.0
  %146 = vmatpush1.msra.mxu0 0.0
  %147 = vmatprep.subr.mxu0 0.0
  %148 = vmatpush1.msra.mxu0 0.0
  %149 = vmatprep.subr.mxu0 0.0
  %150 = vmatpush1.msra.mxu0 0.0
  %151 = vmatprep.subr.mxu0 0.0
  %152 = vmatpush1.msra.mxu0 0.0
  %153 = vmatprep.subr.mxu0 0.0
  %154 = vmatpush1.msra.mxu0 0.0
  %155 = vmatprep.subr.mxu0 0.0
  %156 = vmatpush1.msra.mxu0 0.0
  %157 = vmatprep.subr.mxu0 0.0
  %158 = vmatpush1.msra.mxu0 0.0
  %159 = vmatprep.subr.mxu0 0.0
  %160 = vmatpush1.msra.mxu0 0.0
  %161 = vmatprep.subr.mxu0 0.0
  %162 = vmatpush1.msra.mxu0 0.0
  %163 = vmatprep.subr.mxu0 0.0
  %164 = vmatpush1.msra.mxu0 0.0
  %165 = vmatprep.subr.mxu0 0.0
  %166 = vmatpush1.msra.mxu0 0.0
  %167 = vmatprep.subr.mxu0 0.0
  %168 = vmatpush1.msra.mxu0 0.0
  %169 = vmatprep.subr.mxu0 0.0
  %170 = vmatpush1.msra.mxu0 0.0
  %171 = vmatprep.subr.mxu0 0.0
  %172 = vmatpush1.msra.mxu0 0.0
  %173 = vmatprep.subr.mxu0 0.0
  %174 = vmatpush1.msra.mxu0 0.0
  %175 = vmatprep.subr.mxu0 0.0
  %176 = vmatpush1.msra.mxu0 0.0
  %177 = vmatprep.subr.mxu0 0.0
  %178 = vmatpush1.msra.mxu0 0.0
  %179 = vmatprep.subr.mxu0 0.0
  %180 = vmatpush1.msra.mxu0 0.0
  %181 = vmatprep.mubr.f32.mxu0 0.0
  %182 = vmatmul.mubr.f32.gmra.mrb[0].mxu0 %v70
  %v183 = vpop.f32.mrb[0].mxu0
  %v184 = vadd.f32 %v66, %v183
  %v185 = vpop.f32.mrb[0].mxu0
  %186 = vmatprep.mubr.f32.mxu0 0.0
  %187 = vmatmul.mubr.f32.gmra.mrb[0].mxu0 %v73
  %v188 = vpop.f32.mrb[0].mxu0
  %v189 = vadd.f32 %v66, %v188
  %v190 = vpop.f32.mrb[0].mxu0
  %191 = vmatprep.mubr.f32.mxu0 0.0
  %192 = vmatmul.mubr.f32.gmra.mrb[0].mxu0 %v76
  %v193 = vpop.f32.mrb[0].mxu0
  %v194 = vadd.f32 %v66, %v193
  %v195 = vpop.f32.mrb[0].mxu0
  %196 = vmatprep.mubr.f32.mxu0 0.0
  %197 = vmatmul.mubr.f32.gmra.mrb[0].mxu0 %v79
  %v198 = vpop.f32.mrb[0].mxu0
  %v199 = vadd.f32 %v66, %v198
  %v200 = vpop.f32.mrb[0].mxu0
  %201 = vmatprep.mubr.f32.mxu0 0.0
  %202 = vmatmul.mubr.f32.gmra.mrb[0].mxu0 %v82
  %v203 = vpop.f32.mrb[0].mxu0
  %v204 = vadd.f32 %v66, %v203
  %v205 = vpop.f32.mrb[0].mxu0
  %206 = vmatprep.mubr.f32.mxu0 0.0
  %207 = vmatmul.mubr.f32.gmra.mrb[0].mxu0 %v85
  %v208 = vpop.f32.mrb[0].mxu0
  %v209 = vadd.f32 %v66, %v208
  %v210 = vpop.f32.mrb[0].mxu0
  %211 = vmatprep.mubr.f32.mxu0 0.0
  %212 = vmatmul.mubr.f32.gmra.mrb[0].mxu0 %v88
  %v213 = vpop.f32.mrb[0].mxu0
  %v214 = vadd.f32 %v66, %v213
  %v215 = vpop.f32.mrb[0].mxu0
  %216 = vmatprep.mubr.f32.mxu0 0.0
  %217 = vmatmul.mubr.f32.gmra.mrb[0].mxu0 %v91
  %v218 = vpop.f32.mrb[0].mxu0
  %v219 = vadd.f32 %v66, %v218
  %v220 = vpop.f32.mrb[0].mxu0
  %221 = vmatprep.mubr.f32.mxu0 0.0
  %222 = vmatmul.mubr.f32.gmra.mrb[0].mxu0 %v94
  %v223 = vpop.f32.mrb[0].mxu0
  %v224 = vadd.f32 %v66, %v223
  %v225 = vpop.f32.mrb[0].mxu0
  %226 = vmatprep.mubr.f32.mxu0 0.0
  %227 = vmatmul.mubr.f32.gmra.mrb[0].mxu0 %v97
  %v228 = vpop.f32.mrb[0].mxu0
  %v229 = vadd.f32 %v66, %v228
  %v230 = vpop.f32.mrb[0].mxu0
  %231 = vmatprep.mubr.f32.mxu0 0.0
  %232 = vmatmul.mubr.f32.gmra.mrb[0].mxu0 %v100
  %v233 = vpop.f32.mrb[0].mxu0
  %v234 = vadd.f32 %v66, %v233
  %v235 = vpop.f32.mrb[0].mxu0
  %236 = vmatprep.mubr.f32.mxu0 0.0
  %237 = vmatmul.mubr.f32.gmra.mrb[0].mxu0 %v103
  %v238 = vpop.f32.mrb[0].mxu0
  %v239 = vadd.f32 %v66, %v238
  %v240 = vpop.f32.mrb[0].mxu0
  %241 = vmatprep.mubr.f32.mxu0 0.0
  %242 = vmatmul.mubr.f32.gmra.mrb[0].mxu0 %v106
  %v243 = vpop.f32.mrb[0].mxu0
  %v244 = vadd.f32 %v66, %v243
  %v245 = vpop.f32.mrb[0].mxu0
  %246 = vmatprep.mubr.f32.mxu0 0.0
  %247 = vmatmul.mubr.f32.gmra.mrb[0].mxu0 %v109
  %v248 = vpop.f32.mrb[0].mxu0
  %v249 = vadd.f32 %v66, %v248
  %v250 = vpop.f32.mrb[0].mxu0
  %251 = vmatprep.mubr.f32.mxu0 0.0
  %252 = vmatmul.mubr.f32.gmra.mrb[0].mxu0 %v112
  %v253 = vpop.f32.mrb[0].mxu0
  %v254 = vadd.f32 %v66, %v253
  %v255 = vpop.f32.mrb[0].mxu0
  %256 = vmatprep.mubr.f32.mxu0 0.0
  %257 = vmatmul.mubr.f32.gmra.mrb[0].mxu0 %v115
  %v258 = vpop.f32.mrb[0].mxu0
  %v259 = vadd.f32 %v66, %v258
  %v260 = vpop.f32.mrb[0].mxu0
  %261 = vdwg.mxu0
  %v262 = vld [vmem:[%s2] sm:$0xff]
  %v263 = vld [vmem:[%s2 + $0x8] sm:$0xff]
  %v264 = vld [vmem:[%s2 + $0x10] sm:$0xff]
  %v265 = vld [vmem:[%s2 + $0x18] sm:$0xff]
  %266 = vmatprep.subr.mxu0 0.0
  %267 = vmatpush1.msra.mxu0 %v262
  %268 = vmatprep.subr.mxu0 0.0
  %269 = vmatpush1.msra.mxu0 %v263
  %270 = vmatprep.subr.mxu0 0.0
  %271 = vmatpush1.msra.mxu0 %v264
  %272 = vmatprep.subr.mxu0 0.0
  %273 = vmatpush1.msra.mxu0 %v265
  %274 = vmatprep.subr.mxu0 0.0
  %275 = vmatpush1.msra.mxu0 0.0
  %276 = vmatprep.subr.mxu0 0.0
  %277 = vmatpush1.msra.mxu0 0.0
  %278 = vmatprep.subr.mxu0 0.0
  %279 = vmatpush1.msra.mxu0 0.0
  %280 = vmatprep.subr.mxu0 0.0
  %281 = vmatpush1.msra.mxu0 0.0
  %282 = vmatprep.subr.mxu0 0.0
  %283 = vmatpush1.msra.mxu0 0.0
  %284 = vmatprep.subr.mxu0 0.0
  %285 = vmatpush1.msra.mxu0 0.0
  %286 = vmatprep.subr.mxu0 0.0
  %287 = vmatpush1.msra.mxu0 0.0
  %288 = vmatprep.subr.mxu0 0.0
  %289 = vmatpush1.msra.mxu0 0.0
  %290 = vmatprep.subr.mxu0 0.0
  %291 = vmatpush1.msra.mxu0 0.0
  %292 = vmatprep.subr.mxu0 0.0
  %293 = vmatpush1.msra.mxu0 0.0
  %294 = vmatprep.subr.mxu0 0.0
  %295 = vmatpush1.msra.mxu0 0.0
  %296 = vmatprep.subr.mxu0 0.0
  %297 = vmatpush1.msra.mxu0 0.0
  %298 = vmatprep.subr.mxu0 0.0
  %299 = vmatpush1.msra.mxu0 0.0
  %300 = vmatprep.subr.mxu0 0.0
  %301 = vmatpush1.msra.mxu0 0.0
  %302 = vmatprep.subr.mxu0 0.0
  %303 = vmatpush1.msra.mxu0 0.0
  %304 = vmatprep.subr.mxu0 0.0
  %305 = vmatpush1.msra.mxu0 0.0
  %306 = vmatprep.subr.mxu0 0.0
  %307 = vmatpush1.msra.mxu0 0.0
  %308 = vmatprep.subr.mxu0 0.0
  %309 = vmatpush1.msra.mxu0 0.0
  %310 = vmatprep.subr.mxu0 0.0
  %311 = vmatpush1.msra.mxu0 0.0
  %312 = vmatprep.subr.mxu0 0.0
  %313 = vmatpush1.msra.mxu0 0.0
  %314 = vmatprep.subr.mxu0 0.0
  %315 = vmatpush1.msra.mxu0 0.0
  %316 = vmatprep.subr.mxu0 0.0
  %317 = vmatpush1.msra.mxu0 0.0
  %318 = vmatprep.subr.mxu0 0.0
  %319 = vmatpush1.msra.mxu0 0.0
  %320 = vmatprep.subr.mxu0 0.0
  %321 = vmatpush1.msra.mxu0 0.0
  %322 = vmatprep.subr.mxu0 0.0
  %323 = vmatpush1.msra.mxu0 0.0
  %324 = vmatprep.subr.mxu0 0.0
  %325 = vmatpush1.msra.mxu0 0.0
  %326 = vmatprep.subr.mxu0 0.0
  %327 = vmatpush1.msra.mxu0 0.0
  %328 = vmatprep.subr.mxu0 0.0
  %329 = vmatpush1.msra.mxu0 0.0
  %330 = vmatprep.mubr.f32.mxu0 0.0
  %331 = vmatmul.mubr.f32.gmra.mrb[0].mxu0 %v70
  %v332 = vpop.f32.mrb[0].mxu0
  %v333 = vadd.f32 0.0, %v332
  %v334 = vpop.f32.mrb[0].mxu0
  %335 = vmatprep.mubr.f32.mxu0 0.0
  %336 = vmatmul.mubr.f32.gmra.mrb[0].mxu0 %v73
  %v337 = vpop.f32.mrb[0].mxu0
  %v338 = vadd.f32 0.0, %v337
  %v339 = vpop.f32.mrb[0].mxu0
  %340 = vmatprep.mubr.f32.mxu0 0.0
  %341 = vmatmul.mubr.f32.gmra.mrb[0].mxu0 %v76
  %v342 = vpop.f32.mrb[0].mxu0
  %v343 = vadd.f32 0.0, %v342
  %v344 = vpop.f32.mrb[0].mxu0
  %345 = vmatprep.mubr.f32.mxu0 0.0
  %346 = vmatmul.mubr.f32.gmra.mrb[0].mxu0 %v79
  %v347 = vpop.f32.mrb[0].mxu0
  %v348 = vadd.f32 0.0, %v347
  %v349 = vpop.f32.mrb[0].mxu0
  %350 = vmatprep.mubr.f32.mxu0 0.0
  %351 = vmatmul.mubr.f32.gmra.mrb[0].mxu0 %v82
  %v352 = vpop.f32.mrb[0].mxu0
  %v353 = vadd.f32 0.0, %v352
  %v354 = vpop.f32.mrb[0].mxu0
  %355 = vmatprep.mubr.f32.mxu0 0.0
  %356 = vmatmul.mubr.f32.gmra.mrb[0].mxu0 %v85
  %v357 = vpop.f32.mrb[0].mxu0
  %v358 = vadd.f32 0.0, %v357
  %v359 = vpop.f32.mrb[0].mxu0
  %360 = vmatprep.mubr.f32.mxu0 0.0
  %361 = vmatmul.mubr.f32.gmra.mrb[0].mxu0 %v88
  %v362 = vpop.f32.mrb[0].mxu0
  %v363 = vadd.f32 0.0, %v362
  %v364 = vpop.f32.mrb[0].mxu0
  %365 = vmatprep.mubr.f32.mxu0 0.0
  %366 = vmatmul.mubr.f32.gmra.mrb[0].mxu0 %v91
  %v367 = vpop.f32.mrb[0].mxu0
  %v368 = vadd.f32 0.0, %v367
  %v369 = vpop.f32.mrb[0].mxu0
  %370 = vmatprep.mubr.f32.mxu0 0.0
  %371 = vmatmul.mubr.f32.gmra.mrb[0].mxu0 %v94
  %v372 = vpop.f32.mrb[0].mxu0
  %v373 = vadd.f32 0.0, %v372
  %v374 = vpop.f32.mrb[0].mxu0
  %375 = vmatprep.mubr.f32.mxu0 0.0
  %376 = vmatmul.mubr.f32.gmra.mrb[0].mxu0 %v97
  %v377 = vpop.f32.mrb[0].mxu0
  %v378 = vadd.f32 0.0, %v377
  %v379 = vpop.f32.mrb[0].mxu0
  %380 = vmatprep.mubr.f32.mxu0 0.0
  %381 = vmatmul.mubr.f32.gmra.mrb[0].mxu0 %v100
  %v382 = vpop.f32.mrb[0].mxu0
  %v383 = vadd.f32 0.0, %v382
  %v384 = vpop.f32.mrb[0].mxu0
  %385 = vmatprep.mubr.f32.mxu0 0.0
  %386 = vmatmul.mubr.f32.gmra.mrb[0].mxu0 %v103
  %v387 = vpop.f32.mrb[0].mxu0
  %v388 = vadd.f32 0.0, %v387
  %v389 = vpop.f32.mrb[0].mxu0
  %390 = vmatprep.mubr.f32.mxu0 0.0
  %391 = vmatmul.mubr.f32.gmra.mrb[0].mxu0 %v106
  %v392 = vpop.f32.mrb[0].mxu0
  %v393 = vadd.f32 0.0, %v392
  %v394 = vpop.f32.mrb[0].mxu0
  %395 = vmatprep.mubr.f32.mxu0 0.0
  %396 = vmatmul.mubr.f32.gmra.mrb[0].mxu0 %v109
  %v397 = vpop.f32.mrb[0].mxu0
  %v398 = vadd.f32 0.0, %v397
  %v399 = vpop.f32.mrb[0].mxu0
  %400 = vmatprep.mubr.f32.mxu0 0.0
  %401 = vmatmul.mubr.f32.gmra.mrb[0].mxu0 %v112
  %v402 = vpop.f32.mrb[0].mxu0
  %v403 = vadd.f32 0.0, %v402
  %v404 = vpop.f32.mrb[0].mxu0
  %405 = vmatprep.mubr.f32.mxu0 0.0
  %406 = vmatmul.mubr.f32.gmra.mrb[0].mxu0 %v115
  %v407 = vpop.f32.mrb[0].mxu0
  %v408 = vadd.f32 0.0, %v407
  %v409 = vpop.f32.mrb[0].mxu0
  %410 = vdwg.mxu0
  %v411 = vld [vmem:[%s3] sm:$0xff]
  %v412 = vld [vmem:[%s3 + $0x8] sm:$0xff]
  %v413 = vld [vmem:[%s3 + $0x10] sm:$0xff]
  %v414 = vld [vmem:[%s3 + $0x18] sm:$0xff]
  %v415 = vld [vmem:[%s5] sm:$0x1]
  %v417 = vlaneseq
  %v418 = vshrl.u32 %v417, 7
  %v419 = vsub.s32 0, %v418
  %v420 = vrot.slane %v415, %v419
  %422 = vmatprep.subr.mxu0 0.0
  %423 = vmatpush1.msra.mxu0 %v411
  %424 = vmatprep.subr.mxu0 0.0
  %425 = vmatpush1.msra.mxu0 %v412
  %426 = vmatprep.subr.mxu0 0.0
  %427 = vmatpush1.msra.mxu0 %v413
  %428 = vmatprep.subr.mxu0 0.0
  %429 = vmatpush1.msra.mxu0 %v414
  %430 = vmatprep.subr.mxu0 0.0
  %431 = vmatpush1.msra.mxu0 0.0
  %432 = vmatprep.subr.mxu0 0.0
  %433 = vmatpush1.msra.mxu0 0.0
  %434 = vmatprep.subr.mxu0 0.0
  %435 = vmatpush1.msra.mxu0 0.0
  %436 = vmatprep.subr.mxu0 0.0
  %437 = vmatpush1.msra.mxu0 0.0
  %438 = vmatprep.subr.mxu0 0.0
  %439 = vmatpush1.msra.mxu0 0.0
  %440 = vmatprep.subr.mxu0 0.0
  %441 = vmatpush1.msra.mxu0 0.0
  %442 = vmatprep.subr.mxu0 0.0
  %443 = vmatpush1.msra.mxu0 0.0
  %444 = vmatprep.subr.mxu0 0.0
  %445 = vmatpush1.msra.mxu0 0.0
  %446 = vmatprep.subr.mxu0 0.0
  %447 = vmatpush1.msra.mxu0 0.0
  %448 = vmatprep.subr.mxu0 0.0
  %449 = vmatpush1.msra.mxu0 0.0
  %450 = vmatprep.subr.mxu0 0.0
  %451 = vmatpush1.msra.mxu0 0.0
  %452 = vmatprep.subr.mxu0 0.0
  %453 = vmatpush1.msra.mxu0 0.0
  %454 = vmatprep.subr.mxu0 0.0
  %455 = vmatpush1.msra.mxu0 0.0
  %456 = vmatprep.subr.mxu0 0.0
  %457 = vmatpush1.msra.mxu0 0.0
  %458 = vmatprep.subr.mxu0 0.0
  %459 = vmatpush1.msra.mxu0 0.0
  %460 = vmatprep.subr.mxu0 0.0
  %461 = vmatpush1.msra.mxu0 0.0
  %462 = vmatprep.subr.mxu0 0.0
  %463 = vmatpush1.msra.mxu0 0.0
  %464 = vmatprep.subr.mxu0 0.0
  %465 = vmatpush1.msra.mxu0 0.0
  %466 = vmatprep.subr.mxu0 0.0
  %467 = vmatpush1.msra.mxu0 0.0
  %468 = vmatprep.subr.mxu0 0.0
  %469 = vmatpush1.msra.mxu0 0.0
  %470 = vmatprep.subr.mxu0 0.0
  %471 = vmatpush1.msra.mxu0 0.0
  %472 = vmatprep.subr.mxu0 0.0
  %473 = vmatpush1.msra.mxu0 0.0
  %474 = vmatprep.subr.mxu0 0.0
  %475 = vmatpush1.msra.mxu0 0.0
  %476 = vmatprep.subr.mxu0 0.0
  %477 = vmatpush1.msra.mxu0 0.0
  %478 = vmatprep.subr.mxu0 0.0
  %479 = vmatpush1.msra.mxu0 0.0
  %480 = vmatprep.subr.mxu0 0.0
  %481 = vmatpush1.msra.mxu0 0.0
  %482 = vmatprep.subr.mxu0 0.0
  %483 = vmatpush1.msra.mxu0 0.0
  %484 = vmatprep.subr.mxu0 0.0
  %485 = vmatpush1.msra.mxu0 0.0
  %486 = vmatprep.mubr.f32.mxu0 0.0
  %487 = vmatmul.mubr.f32.gmra.mrb[0].mxu0 %v70
  %v488 = vpop.f32.mrb[0].mxu0
  %v489 = vadd.f32 %v420, %v488
  %v490 = vpop.f32.mrb[0].mxu0
  %491 = vmatprep.mubr.f32.mxu0 0.0
  %492 = vmatmul.mubr.f32.gmra.mrb[0].mxu0 %v73
  %v493 = vpop.f32.mrb[0].mxu0
  %v494 = vadd.f32 %v420, %v493
  %v495 = vpop.f32.mrb[0].mxu0
  %496 = vmatprep.mubr.f32.mxu0 0.0
  %497 = vmatmul.mubr.f32.gmra.mrb[0].mxu0 %v76
  %v498 = vpop.f32.mrb[0].mxu0
  %v499 = vadd.f32 %v420, %v498
  %v500 = vpop.f32.mrb[0].mxu0
  %501 = vmatprep.mubr.f32.mxu0 0.0
  %502 = vmatmul.mubr.f32.gmra.mrb[0].mxu0 %v79
  %v503 = vpop.f32.mrb[0].mxu0
  %v504 = vadd.f32 %v420, %v503
  %v505 = vpop.f32.mrb[0].mxu0
  %506 = vmatprep.mubr.f32.mxu0 0.0
  %507 = vmatmul.mubr.f32.gmra.mrb[0].mxu0 %v82
  %v508 = vpop.f32.mrb[0].mxu0
  %v509 = vadd.f32 %v420, %v508
  %v510 = vpop.f32.mrb[0].mxu0
  %511 = vmatprep.mubr.f32.mxu0 0.0
  %512 = vmatmul.mubr.f32.gmra.mrb[0].mxu0 %v85
  %v513 = vpop.f32.mrb[0].mxu0
  %v514 = vadd.f32 %v420, %v513
  %v515 = vpop.f32.mrb[0].mxu0
  %516 = vmatprep.mubr.f32.mxu0 0.0
  %517 = vmatmul.mubr.f32.gmra.mrb[0].mxu0 %v88
  %v518 = vpop.f32.mrb[0].mxu0
  %v519 = vadd.f32 %v420, %v518
  %v520 = vpop.f32.mrb[0].mxu0
  %521 = vmatprep.mubr.f32.mxu0 0.0
  %522 = vmatmul.mubr.f32.gmra.mrb[0].mxu0 %v91
  %v523 = vpop.f32.mrb[0].mxu0
  %v524 = vadd.f32 %v420, %v523
  %v525 = vpop.f32.mrb[0].mxu0
  %526 = vmatprep.mubr.f32.mxu0 0.0
  %527 = vmatmul.mubr.f32.gmra.mrb[0].mxu0 %v94
  %v528 = vpop.f32.mrb[0].mxu0
  %v529 = vadd.f32 %v420, %v528
  %v530 = vpop.f32.mrb[0].mxu0
  %531 = vmatprep.mubr.f32.mxu0 0.0
  %532 = vmatmul.mubr.f32.gmra.mrb[0].mxu0 %v97
  %v533 = vpop.f32.mrb[0].mxu0
  %v534 = vadd.f32 %v420, %v533
  %v535 = vpop.f32.mrb[0].mxu0
  %536 = vmatprep.mubr.f32.mxu0 0.0
  %537 = vmatmul.mubr.f32.gmra.mrb[0].mxu0 %v100
  %v538 = vpop.f32.mrb[0].mxu0
  %v539 = vadd.f32 %v420, %v538
  %v540 = vpop.f32.mrb[0].mxu0
  %541 = vmatprep.mubr.f32.mxu0 0.0
  %542 = vmatmul.mubr.f32.gmra.mrb[0].mxu0 %v103
  %v543 = vpop.f32.mrb[0].mxu0
  %v544 = vadd.f32 %v420, %v543
  %v545 = vpop.f32.mrb[0].mxu0
  %546 = vmatprep.mubr.f32.mxu0 0.0
  %547 = vmatmul.mubr.f32.gmra.mrb[0].mxu0 %v106
  %v548 = vpop.f32.mrb[0].mxu0
  %v549 = vadd.f32 %v420, %v548
  %v550 = vpop.f32.mrb[0].mxu0
  %551 = vmatprep.mubr.f32.mxu0 0.0
  %552 = vmatmul.mubr.f32.gmra.mrb[0].mxu0 %v109
  %v553 = vpop.f32.mrb[0].mxu0
  %v554 = vadd.f32 %v420, %v553
  %v555 = vpop.f32.mrb[0].mxu0
  %556 = vmatprep.mubr.f32.mxu0 0.0
  %557 = vmatmul.mubr.f32.gmra.mrb[0].mxu0 %v112
  %v558 = vpop.f32.mrb[0].mxu0
  %v559 = vadd.f32 %v420, %v558
  %v560 = vpop.f32.mrb[0].mxu0
  %561 = vmatprep.mubr.f32.mxu0 0.0
  %562 = vmatmul.mubr.f32.gmra.mrb[0].mxu0 %v115
  %v563 = vpop.f32.mrb[0].mxu0
  %v564 = vadd.f32 %v420, %v563
  %v565 = vpop.f32.mrb[0].mxu0
  %566 = vdwg.mxu0
  %v567 = vld [vmem:[%s7] sm:$0xf]
  %v568 = vmul.f32 %v184, %v184
  %v569 = vmul.f32 %v189, %v189
  %v570 = vmul.f32 %v194, %v194
  %v571 = vmul.f32 %v199, %v199
  %v572 = vmul.f32 %v204, %v204
  %v573 = vmul.f32 %v209, %v209
  %v574 = vmul.f32 %v214, %v214
  %v575 = vmul.f32 %v219, %v219
  %v576 = vmul.f32 %v224, %v224
  %v577 = vmul.f32 %v229, %v229
  %v578 = vmul.f32 %v234, %v234
  %v579 = vmul.f32 %v239, %v239
  %v580 = vmul.f32 %v244, %v244
  %v581 = vmul.f32 %v249, %v249
  %v582 = vmul.f32 %v254, %v254
  %v583 = vmul.f32 %v259, %v259
  %v585 = vsel %vm68, %v568, 0
  %v588 = vsel %vm68, %v569, 0
  %v591 = vsel %vm68, %v570, 0
  %v594 = vsel %vm68, %v571, 0
  %v597 = vsel %vm68, %v572, 0
  %v600 = vsel %vm68, %v573, 0
  %v603 = vsel %vm68, %v574, 0
  %v606 = vsel %vm68, %v575, 0
  %v609 = vsel %vm68, %v576, 0
  %v612 = vsel %vm68, %v577, 0
  %v615 = vsel %vm68, %v578, 0
  %v618 = vsel %vm68, %v579, 0
  %v621 = vsel %vm68, %v580, 0
  %v624 = vsel %vm68, %v581, 0
  %v627 = vsel %vm68, %v582, 0
  %v630 = vsel %vm68, %v583, 0
  %v633 = vsel %vm68, %v567, 0
  %635 = vmatprep.subr.mxu0 0.0
  %636 = vmatpush1.xpose.msra.mxu0 %v633
  %637 = vmatprep.subr.mxu0 0.0
  %638 = vmatpush1.xpose.msra.mxu0 0.0
  %639 = vmatprep.subr.mxu0 0.0
  %640 = vmatpush1.xpose.msra.mxu0 0.0
  %641 = vmatprep.subr.mxu0 0.0
  %642 = vmatpush1.xpose.msra.mxu0 0.0
  %643 = vmatprep.subr.mxu0 0.0
  %644 = vmatpush1.xpose.msra.mxu0 0.0
  %645 = vmatprep.subr.mxu0 0.0
  %646 = vmatpush1.xpose.msra.mxu0 0.0
  %647 = vmatprep.subr.mxu0 0.0
  %648 = vmatpush1.xpose.msra.mxu0 0.0
  %649 = vmatprep.subr.mxu0 0.0
  %650 = vmatpush1.xpose.msra.mxu0 0.0
  %651 = vmatprep.subr.mxu0 0.0
  %652 = vmatpush1.xpose.msra.mxu0 0.0
  %653 = vmatprep.subr.mxu0 0.0
  %654 = vmatpush1.xpose.msra.mxu0 0.0
  %655 = vmatprep.subr.mxu0 0.0
  %656 = vmatpush1.xpose.msra.mxu0 0.0
  %657 = vmatprep.subr.mxu0 0.0
  %658 = vmatpush1.xpose.msra.mxu0 0.0
  %659 = vmatprep.subr.mxu0 0.0
  %660 = vmatpush1.xpose.msra.mxu0 0.0
  %661 = vmatprep.subr.mxu0 0.0
  %662 = vmatpush1.xpose.msra.mxu0 0.0
  %663 = vmatprep.subr.mxu0 0.0
  %664 = vmatpush1.xpose.msra.mxu0 0.0
  %665 = vmatprep.subr.mxu0 0.0
  %666 = vmatpush1.xpose.msra.mxu0 0.0
  %667 = vmatprep.subr.mxu0 0.0
  %668 = vmatpush1.xpose.msra.mxu0 0.0
  %669 = vmatprep.subr.mxu0 0.0
  %670 = vmatpush1.xpose.msra.mxu0 0.0
  %671 = vmatprep.subr.mxu0 0.0
  %672 = vmatpush1.xpose.msra.mxu0 0.0
  %673 = vmatprep.subr.mxu0 0.0
  %674 = vmatpush1.xpose.msra.mxu0 0.0
  %675 = vmatprep.subr.mxu0 0.0
  %676 = vmatpush1.xpose.msra.mxu0 0.0
  %677 = vmatprep.subr.mxu0 0.0
  %678 = vmatpush1.xpose.msra.mxu0 0.0
  %679 = vmatprep.subr.mxu0 0.0
  %680 = vmatpush1.xpose.msra.mxu0 0.0
  %681 = vmatprep.subr.mxu0 0.0
  %682 = vmatpush1.xpose.msra.mxu0 0.0
  %683 = vmatprep.subr.mxu0 0.0
  %684 = vmatpush1.xpose.msra.mxu0 0.0
  %685 = vmatprep.subr.mxu0 0.0
  %686 = vmatpush1.xpose.msra.mxu0 0.0
  %687 = vmatprep.subr.mxu0 0.0
  %688 = vmatpush1.xpose.msra.mxu0 0.0
  %689 = vmatprep.subr.mxu0 0.0
  %690 = vmatpush1.xpose.msra.mxu0 0.0
  %691 = vmatprep.subr.mxu0 0.0
  %692 = vmatpush1.xpose.msra.mxu0 0.0
  %693 = vmatprep.subr.mxu0 0.0
  %694 = vmatpush1.xpose.msra.mxu0 0.0
  %695 = vmatprep.subr.mxu0 0.0
  %696 = vmatpush1.xpose.msra.mxu0 0.0
  %697 = vmatprep.subr.mxu0 0.0
  %698 = vmatpush1.xpose.msra.mxu0 0.0
  %699 = vmatprep.mubr.f32.mxu0 0.0
  %700 = vmatmul.mubr.f32.gmra.mrb[0].mxu0 %v585
  %v701 = vpop.f32.mrb[0].mxu0
  %v702 = vadd.f32 0.0, %v701
  %v703 = vpop.f32.mrb[0].mxu0
  %704 = vmatprep.mubr.f32.mxu0 0.0
  %705 = vmatmul.mubr.f32.gmra.mrb[0].mxu0 %v588
  %v706 = vpop.f32.mrb[0].mxu0
  %v707 = vadd.f32 0.0, %v706
  %v708 = vpop.f32.mrb[0].mxu0
  %709 = vmatprep.mubr.f32.mxu0 0.0
  %710 = vmatmul.mubr.f32.gmra.mrb[0].mxu0 %v591
  %v711 = vpop.f32.mrb[0].mxu0
  %v712 = vadd.f32 0.0, %v711
  %v713 = vpop.f32.mrb[0].mxu0
  %714 = vmatprep.mubr.f32.mxu0 0.0
  %715 = vmatmul.mubr.f32.gmra.mrb[0].mxu0 %v594
  %v716 = vpop.f32.mrb[0].mxu0
  %v717 = vadd.f32 0.0, %v716
  %v718 = vpop.f32.mrb[0].mxu0
  %719 = vmatprep.mubr.f32.mxu0 0.0
  %720 = vmatmul.mubr.f32.gmra.mrb[0].mxu0 %v597
  %v721 = vpop.f32.mrb[0].mxu0
  %v722 = vadd.f32 0.0, %v721
  %v723 = vpop.f32.mrb[0].mxu0
  %724 = vmatprep.mubr.f32.mxu0 0.0
  %725 = vmatmul.mubr.f32.gmra.mrb[0].mxu0 %v600
  %v726 = vpop.f32.mrb[0].mxu0
  %v727 = vadd.f32 0.0, %v726
  %v728 = vpop.f32.mrb[0].mxu0
  %729 = vmatprep.mubr.f32.mxu0 0.0
  %730 = vmatmul.mubr.f32.gmra.mrb[0].mxu0 %v603
  %v731 = vpop.f32.mrb[0].mxu0
  %v732 = vadd.f32 0.0, %v731
  %v733 = vpop.f32.mrb[0].mxu0
  %734 = vmatprep.mubr.f32.mxu0 0.0
  %735 = vmatmul.mubr.f32.gmra.mrb[0].mxu0 %v606
  %v736 = vpop.f32.mrb[0].mxu0
  %v737 = vadd.f32 0.0, %v736
  %v738 = vpop.f32.mrb[0].mxu0
  %739 = vmatprep.mubr.f32.mxu0 0.0
  %740 = vmatmul.mubr.f32.gmra.mrb[0].mxu0 %v609
  %v741 = vpop.f32.mrb[0].mxu0
  %v742 = vadd.f32 0.0, %v741
  %v743 = vpop.f32.mrb[0].mxu0
  %744 = vmatprep.mubr.f32.mxu0 0.0
  %745 = vmatmul.mubr.f32.gmra.mrb[0].mxu0 %v612
  %v746 = vpop.f32.mrb[0].mxu0
  %v747 = vadd.f32 0.0, %v746
  %v748 = vpop.f32.mrb[0].mxu0
  %749 = vmatprep.mubr.f32.mxu0 0.0
  %750 = vmatmul.mubr.f32.gmra.mrb[0].mxu0 %v615
  %v751 = vpop.f32.mrb[0].mxu0
  %v752 = vadd.f32 0.0, %v751
  %v753 = vpop.f32.mrb[0].mxu0
  %754 = vmatprep.mubr.f32.mxu0 0.0
  %755 = vmatmul.mubr.f32.gmra.mrb[0].mxu0 %v618
  %v756 = vpop.f32.mrb[0].mxu0
  %v757 = vadd.f32 0.0, %v756
  %v758 = vpop.f32.mrb[0].mxu0
  %759 = vmatprep.mubr.f32.mxu0 0.0
  %760 = vmatmul.mubr.f32.gmra.mrb[0].mxu0 %v621
  %v761 = vpop.f32.mrb[0].mxu0
  %v762 = vadd.f32 0.0, %v761
  %v763 = vpop.f32.mrb[0].mxu0
  %764 = vmatprep.mubr.f32.mxu0 0.0
  %765 = vmatmul.mubr.f32.gmra.mrb[0].mxu0 %v624
  %v766 = vpop.f32.mrb[0].mxu0
  %v767 = vadd.f32 0.0, %v766
  %v768 = vpop.f32.mrb[0].mxu0
  %769 = vmatprep.mubr.f32.mxu0 0.0
  %770 = vmatmul.mubr.f32.gmra.mrb[0].mxu0 %v627
  %v771 = vpop.f32.mrb[0].mxu0
  %v772 = vadd.f32 0.0, %v771
  %v773 = vpop.f32.mrb[0].mxu0
  %774 = vmatprep.mubr.f32.mxu0 0.0
  %775 = vmatmul.mubr.f32.gmra.mrb[0].mxu0 %v630
  %v776 = vpop.f32.mrb[0].mxu0
  %v777 = vadd.f32 0.0, %v776
  %v778 = vpop.f32.mrb[0].mxu0
  %779 = vdwg.mxu0
  %v780 = vmul.f32 %v333, %v333
  %v781 = vmul.f32 %v338, %v338
  %v782 = vmul.f32 %v343, %v343
  %v783 = vmul.f32 %v348, %v348
  %v784 = vmul.f32 %v353, %v353
  %v785 = vmul.f32 %v358, %v358
  %v786 = vmul.f32 %v363, %v363
  %v787 = vmul.f32 %v368, %v368
  %v788 = vmul.f32 %v373, %v373
  %v789 = vmul.f32 %v378, %v378
  %v790 = vmul.f32 %v383, %v383
  %v791 = vmul.f32 %v388, %v388
  %v792 = vmul.f32 %v393, %v393
  %v793 = vmul.f32 %v398, %v398
  %v794 = vmul.f32 %v403, %v403
  %v795 = vmul.f32 %v408, %v408
  %v797 = vsel %vm68, %v780, 0
  %v800 = vsel %vm68, %v781, 0
  %v803 = vsel %vm68, %v782, 0
  %v806 = vsel %vm68, %v783, 0
  %v809 = vsel %vm68, %v784, 0
  %v812 = vsel %vm68, %v785, 0
  %v815 = vsel %vm68, %v786, 0
  %v818 = vsel %vm68, %v787, 0
  %v821 = vsel %vm68, %v788, 0
  %v824 = vsel %vm68, %v789, 0
  %v827 = vsel %vm68, %v790, 0
  %v830 = vsel %vm68, %v791, 0
  %v833 = vsel %vm68, %v792, 0
  %v836 = vsel %vm68, %v793, 0
  %v839 = vsel %vm68, %v794, 0
  %v842 = vsel %vm68, %v795, 0
  %844 = vmatprep.subr.mxu0 0.0
  %845 = vmatpush1.xpose.msra.mxu0 %v633
  %846 = vmatprep.subr.mxu0 0.0
  %847 = vmatpush1.xpose.msra.mxu0 0.0
  %848 = vmatprep.subr.mxu0 0.0
  %849 = vmatpush1.xpose.msra.mxu0 0.0
  %850 = vmatprep.subr.mxu0 0.0
  %851 = vmatpush1.xpose.msra.mxu0 0.0
  %852 = vmatprep.subr.mxu0 0.0
  %853 = vmatpush1.xpose.msra.mxu0 0.0
  %854 = vmatprep.subr.mxu0 0.0
  %855 = vmatpush1.xpose.msra.mxu0 0.0
  %856 = vmatprep.subr.mxu0 0.0
  %857 = vmatpush1.xpose.msra.mxu0 0.0
  %858 = vmatprep.subr.mxu0 0.0
  %859 = vmatpush1.xpose.msra.mxu0 0.0
  %860 = vmatprep.subr.mxu0 0.0
  %861 = vmatpush1.xpose.msra.mxu0 0.0
  %862 = vmatprep.subr.mxu0 0.0
  %863 = vmatpush1.xpose.msra.mxu0 0.0
  %864 = vmatprep.subr.mxu0 0.0
  %865 = vmatpush1.xpose.msra.mxu0 0.0
  %866 = vmatprep.subr.mxu0 0.0
  %867 = vmatpush1.xpose.msra.mxu0 0.0
  %868 = vmatprep.subr.mxu0 0.0
  %869 = vmatpush1.xpose.msra.mxu0 0.0
  %870 = vmatprep.subr.mxu0 0.0
  %871 = vmatpush1.xpose.msra.mxu0 0.0
  %872 = vmatprep.subr.mxu0 0.0
  %873 = vmatpush1.xpose.msra.mxu0 0.0
  %874 = vmatprep.subr.mxu0 0.0
  %875 = vmatpush1.xpose.msra.mxu0 0.0
  %876 = vmatprep.subr.mxu0 0.0
  %877 = vmatpush1.xpose.msra.mxu0 0.0
  %878 = vmatprep.subr.mxu0 0.0
  %879 = vmatpush1.xpose.msra.mxu0 0.0
  %880 = vmatprep.subr.mxu0 0.0
  %881 = vmatpush1.xpose.msra.mxu0 0.0
  %882 = vmatprep.subr.mxu0 0.0
  %883 = vmatpush1.xpose.msra.mxu0 0.0
  %884 = vmatprep.subr.mxu0 0.0
  %885 = vmatpush1.xpose.msra.mxu0 0.0
  %886 = vmatprep.subr.mxu0 0.0
  %887 = vmatpush1.xpose.msra.mxu0 0.0
  %888 = vmatprep.subr.mxu0 0.0
  %889 = vmatpush1.xpose.msra.mxu0 0.0
  %890 = vmatprep.subr.mxu0 0.0
  %891 = vmatpush1.xpose.msra.mxu0 0.0
  %892 = vmatprep.subr.mxu0 0.0
  %893 = vmatpush1.xpose.msra.mxu0 0.0
  %894 = vmatprep.subr.mxu0 0.0
  %895 = vmatpush1.xpose.msra.mxu0 0.0
  %896 = vmatprep.subr.mxu0 0.0
  %897 = vmatpush1.xpose.msra.mxu0 0.0
  %898 = vmatprep.subr.mxu0 0.0
  %899 = vmatpush1.xpose.msra.mxu0 0.0
  %900 = vmatprep.subr.mxu0 0.0
  %901 = vmatpush1.xpose.msra.mxu0 0.0
  %902 = vmatprep.subr.mxu0 0.0
  %903 = vmatpush1.xpose.msra.mxu0 0.0
  %904 = vmatprep.subr.mxu0 0.0
  %905 = vmatpush1.xpose.msra.mxu0 0.0
  %906 = vmatprep.subr.mxu0 0.0
  %907 = vmatpush1.xpose.msra.mxu0 0.0
  %908 = vmatprep.mubr.f32.mxu0 0.0
  %909 = vmatmul.mubr.f32.gmra.mrb[0].mxu0 %v797
  %v910 = vpop.f32.mrb[0].mxu0
  %v911 = vadd.f32 0.0, %v910
  %v912 = vpop.f32.mrb[0].mxu0
  %913 = vmatprep.mubr.f32.mxu0 0.0
  %914 = vmatmul.mubr.f32.gmra.mrb[0].mxu0 %v800
  %v915 = vpop.f32.mrb[0].mxu0
  %v916 = vadd.f32 0.0, %v915
  %v917 = vpop.f32.mrb[0].mxu0
  %918 = vmatprep.mubr.f32.mxu0 0.0
  %919 = vmatmul.mubr.f32.gmra.mrb[0].mxu0 %v803
  %v920 = vpop.f32.mrb[0].mxu0
  %v921 = vadd.f32 0.0, %v920
  %v922 = vpop.f32.mrb[0].mxu0
  %923 = vmatprep.mubr.f32.mxu0 0.0
  %924 = vmatmul.mubr.f32.gmra.mrb[0].mxu0 %v806
  %v925 = vpop.f32.mrb[0].mxu0
  %v926 = vadd.f32 0.0, %v925
  %v927 = vpop.f32.mrb[0].mxu0
  %928 = vmatprep.mubr.f32.mxu0 0.0
  %929 = vmatmul.mubr.f32.gmra.mrb[0].mxu0 %v809
  %v930 = vpop.f32.mrb[0].mxu0
  %v931 = vadd.f32 0.0, %v930
  %v932 = vpop.f32.mrb[0].mxu0
  %933 = vmatprep.mubr.f32.mxu0 0.0
  %934 = vmatmul.mubr.f32.gmra.mrb[0].mxu0 %v812
  %v935 = vpop.f32.mrb[0].mxu0
  %v936 = vadd.f32 0.0, %v935
  %v937 = vpop.f32.mrb[0].mxu0
  %938 = vmatprep.mubr.f32.mxu0 0.0
  %939 = vmatmul.mubr.f32.gmra.mrb[0].mxu0 %v815
  %v940 = vpop.f32.mrb[0].mxu0
  %v941 = vadd.f32 0.0, %v940
  %v942 = vpop.f32.mrb[0].mxu0
  %943 = vmatprep.mubr.f32.mxu0 0.0
  %944 = vmatmul.mubr.f32.gmra.mrb[0].mxu0 %v818
  %v945 = vpop.f32.mrb[0].mxu0
  %v946 = vadd.f32 0.0, %v945
  %v947 = vpop.f32.mrb[0].mxu0
  %948 = vmatprep.mubr.f32.mxu0 0.0
  %949 = vmatmul.mubr.f32.gmra.mrb[0].mxu0 %v821
  %v950 = vpop.f32.mrb[0].mxu0
  %v951 = vadd.f32 0.0, %v950
  %v952 = vpop.f32.mrb[0].mxu0
  %953 = vmatprep.mubr.f32.mxu0 0.0
  %954 = vmatmul.mubr.f32.gmra.mrb[0].mxu0 %v824
  %v955 = vpop.f32.mrb[0].mxu0
  %v956 = vadd.f32 0.0, %v955
  %v957 = vpop.f32.mrb[0].mxu0
  %958 = vmatprep.mubr.f32.mxu0 0.0
  %959 = vmatmul.mubr.f32.gmra.mrb[0].mxu0 %v827
  %v960 = vpop.f32.mrb[0].mxu0
  %v961 = vadd.f32 0.0, %v960
  %v962 = vpop.f32.mrb[0].mxu0
  %963 = vmatprep.mubr.f32.mxu0 0.0
  %964 = vmatmul.mubr.f32.gmra.mrb[0].mxu0 %v830
  %v965 = vpop.f32.mrb[0].mxu0
  %v966 = vadd.f32 0.0, %v965
  %v967 = vpop.f32.mrb[0].mxu0
  %968 = vmatprep.mubr.f32.mxu0 0.0
  %969 = vmatmul.mubr.f32.gmra.mrb[0].mxu0 %v833
  %v970 = vpop.f32.mrb[0].mxu0
  %v971 = vadd.f32 0.0, %v970
  %v972 = vpop.f32.mrb[0].mxu0
  %973 = vmatprep.mubr.f32.mxu0 0.0
  %974 = vmatmul.mubr.f32.gmra.mrb[0].mxu0 %v836
  %v975 = vpop.f32.mrb[0].mxu0
  %v976 = vadd.f32 0.0, %v975
  %v977 = vpop.f32.mrb[0].mxu0
  %978 = vmatprep.mubr.f32.mxu0 0.0
  %979 = vmatmul.mubr.f32.gmra.mrb[0].mxu0 %v839
  %v980 = vpop.f32.mrb[0].mxu0
  %v981 = vadd.f32 0.0, %v980
  %v982 = vpop.f32.mrb[0].mxu0
  %983 = vmatprep.mubr.f32.mxu0 0.0
  %984 = vmatmul.mubr.f32.gmra.mrb[0].mxu0 %v842
  %v985 = vpop.f32.mrb[0].mxu0
  %v986 = vadd.f32 0.0, %v985
  %v987 = vpop.f32.mrb[0].mxu0
  %988 = vdwg.mxu0
  %v989 = vmax.f32 %v702, 1e-24
  %v990 = vmax.f32 %v707, 1e-24
  %v991 = vmax.f32 %v712, 1e-24
  %v992 = vmax.f32 %v717, 1e-24
  %v993 = vmax.f32 %v722, 1e-24
  %v994 = vmax.f32 %v727, 1e-24
  %v995 = vmax.f32 %v732, 1e-24
  %v996 = vmax.f32 %v737, 1e-24
  %v997 = vmax.f32 %v742, 1e-24
  %v998 = vmax.f32 %v747, 1e-24
  %v999 = vmax.f32 %v752, 1e-24
  %v1000 = vmax.f32 %v757, 1e-24
  %v1001 = vmax.f32 %v762, 1e-24
  %v1002 = vmax.f32 %v767, 1e-24
  %v1003 = vmax.f32 %v772, 1e-24
  %v1004 = vmax.f32 %v777, 1e-24
  %v1005 = vrsqrt.pop %v989
  %v1006 = vrsqrt.pop %v990
  %v1007 = vrsqrt.pop %v991
  %v1008 = vrsqrt.pop %v992
  %v1009 = vrsqrt.pop %v993
  %v1010 = vrsqrt.pop %v994
  %v1011 = vrsqrt.pop %v995
  %v1012 = vrsqrt.pop %v996
  %v1013 = vrsqrt.pop %v997
  %v1014 = vrsqrt.pop %v998
  %v1015 = vrsqrt.pop %v999
  %v1016 = vrsqrt.pop %v1000
  %v1017 = vrsqrt.pop %v1001
  %v1018 = vrsqrt.pop %v1002
  %v1019 = vrsqrt.pop %v1003
  %v1020 = vrsqrt.pop %v1004
  %v1021 = vld [vmem:[%s6] sm:$0x1]
  %v1023 = vlaneseq
  %v1024 = vshrl.u32 %v1023, 7
  %v1025 = vsub.s32 0, %v1024
  %v1026 = vrot.slane %v1021, %v1025
  %v1028 = vmul.f32 %v1005, %v1026
  %v1029 = vmul.f32 %v1006, %v1026
  %v1030 = vmul.f32 %v1007, %v1026
  %v1031 = vmul.f32 %v1008, %v1026
  %v1032 = vmul.f32 %v1009, %v1026
  %v1033 = vmul.f32 %v1010, %v1026
  %v1034 = vmul.f32 %v1011, %v1026
  %v1035 = vmul.f32 %v1012, %v1026
  %v1036 = vmul.f32 %v1013, %v1026
  %v1037 = vmul.f32 %v1014, %v1026
  %v1038 = vmul.f32 %v1015, %v1026
  %v1039 = vmul.f32 %v1016, %v1026
  %v1040 = vmul.f32 %v1017, %v1026
  %v1041 = vmul.f32 %v1018, %v1026
  %v1042 = vmul.f32 %v1019, %v1026
  %v1043 = vmul.f32 %v1020, %v1026
  %v1044 = vmax.f32 %v911, 1e-24
  %v1045 = vmax.f32 %v916, 1e-24
  %v1046 = vmax.f32 %v921, 1e-24
  %v1047 = vmax.f32 %v926, 1e-24
  %v1048 = vmax.f32 %v931, 1e-24
  %v1049 = vmax.f32 %v936, 1e-24
  %v1050 = vmax.f32 %v941, 1e-24
  %v1051 = vmax.f32 %v946, 1e-24
  %v1052 = vmax.f32 %v951, 1e-24
  %v1053 = vmax.f32 %v956, 1e-24
  %v1054 = vmax.f32 %v961, 1e-24
  %v1055 = vmax.f32 %v966, 1e-24
  %v1056 = vmax.f32 %v971, 1e-24
  %v1057 = vmax.f32 %v976, 1e-24
  %v1058 = vmax.f32 %v981, 1e-24
  %v1059 = vmax.f32 %v986, 1e-24
  %v1060 = vrsqrt.pop %v1044
  %v1061 = vrsqrt.pop %v1045
  %v1062 = vrsqrt.pop %v1046
  %v1063 = vrsqrt.pop %v1047
  %v1064 = vrsqrt.pop %v1048
  %v1065 = vrsqrt.pop %v1049
  %v1066 = vrsqrt.pop %v1050
  %v1067 = vrsqrt.pop %v1051
  %v1068 = vrsqrt.pop %v1052
  %v1069 = vrsqrt.pop %v1053
  %v1070 = vrsqrt.pop %v1054
  %v1071 = vrsqrt.pop %v1055
  %v1072 = vrsqrt.pop %v1056
  %v1073 = vrsqrt.pop %v1057
  %v1074 = vrsqrt.pop %v1058
  %v1075 = vrsqrt.pop %v1059
  %vm1076 = vcmask 31744
  %v1078 = vsel %vm1076, %v1028, 0
  %v1081 = vsel %vm1076, %v1029, 0
  %v1084 = vsel %vm1076, %v1030, 0
  %v1087 = vsel %vm1076, %v1031, 0
  %v1090 = vsel %vm1076, %v1032, 0
  %v1093 = vsel %vm1076, %v1033, 0
  %v1096 = vsel %vm1076, %v1034, 0
  %v1099 = vsel %vm1076, %v1035, 0
  %v1102 = vsel %vm1076, %v1036, 0
  %v1105 = vsel %vm1076, %v1037, 0
  %v1108 = vsel %vm1076, %v1038, 0
  %v1111 = vsel %vm1076, %v1039, 0
  %v1114 = vsel %vm1076, %v1040, 0
  %v1117 = vsel %vm1076, %v1041, 0
  %v1120 = vsel %vm1076, %v1042, 0
  %v1123 = vsel %vm1076, %v1043, 0
  %vm1125 = vcmask 1043456
  %v1126 = vsel %vm1125, %v567, 0
  %1128 = vmatprep.subr.mxu0 0.0
  %1129 = vmatpush1.msra.mxu0 %v1126
  %1130 = vmatprep.subr.mxu0 0.0
  %1131 = vmatpush1.msra.mxu0 0.0
  %1132 = vmatprep.subr.mxu0 0.0
  %1133 = vmatpush1.msra.mxu0 0.0
  %1134 = vmatprep.subr.mxu0 0.0
  %1135 = vmatpush1.msra.mxu0 0.0
  %1136 = vmatprep.subr.mxu0 0.0
  %1137 = vmatpush1.msra.mxu0 0.0
  %1138 = vmatprep.subr.mxu0 0.0
  %1139 = vmatpush1.msra.mxu0 0.0
  %1140 = vmatprep.subr.mxu0 0.0
  %1141 = vmatpush1.msra.mxu0 0.0
  %1142 = vmatprep.subr.mxu0 0.0
  %1143 = vmatpush1.msra.mxu0 0.0
  %1144 = vmatprep.subr.mxu0 0.0
  %1145 = vmatpush1.msra.mxu0 0.0
  %1146 = vmatprep.subr.mxu0 0.0
  %1147 = vmatpush1.msra.mxu0 0.0
  %1148 = vmatprep.subr.mxu0 0.0
  %1149 = vmatpush1.msra.mxu0 0.0
  %1150 = vmatprep.subr.mxu0 0.0
  %1151 = vmatpush1.msra.mxu0 0.0
  %1152 = vmatprep.subr.mxu0 0.0
  %1153 = vmatpush1.msra.mxu0 0.0
  %1154 = vmatprep.subr.mxu0 0.0
  %1155 = vmatpush1.msra.mxu0 0.0
  %1156 = vmatprep.subr.mxu0 0.0
  %1157 = vmatpush1.msra.mxu0 0.0
  %1158 = vmatprep.subr.mxu0 0.0
  %1159 = vmatpush1.msra.mxu0 0.0
  %1160 = vmatprep.subr.mxu0 0.0
  %1161 = vmatpush1.msra.mxu0 0.0
  %1162 = vmatprep.subr.mxu0 0.0
  %1163 = vmatpush1.msra.mxu0 0.0
  %1164 = vmatprep.subr.mxu0 0.0
  %1165 = vmatpush1.msra.mxu0 0.0
  %1166 = vmatprep.subr.mxu0 0.0
  %1167 = vmatpush1.msra.mxu0 0.0
  %1168 = vmatprep.subr.mxu0 0.0
  %1169 = vmatpush1.msra.mxu0 0.0
  %1170 = vmatprep.subr.mxu0 0.0
  %1171 = vmatpush1.msra.mxu0 0.0
  %1172 = vmatprep.subr.mxu0 0.0
  %1173 = vmatpush1.msra.mxu0 0.0
  %1174 = vmatprep.subr.mxu0 0.0
  %1175 = vmatpush1.msra.mxu0 0.0
  %1176 = vmatprep.subr.mxu0 0.0
  %1177 = vmatpush1.msra.mxu0 0.0
  %1178 = vmatprep.subr.mxu0 0.0
  %1179 = vmatpush1.msra.mxu0 0.0
  %1180 = vmatprep.subr.mxu0 0.0
  %1181 = vmatpush1.msra.mxu0 0.0
  %1182 = vmatprep.subr.mxu0 0.0
  %1183 = vmatpush1.msra.mxu0 0.0
  %1184 = vmatprep.subr.mxu0 0.0
  %1185 = vmatpush1.msra.mxu0 0.0
  %1186 = vmatprep.subr.mxu0 0.0
  %1187 = vmatpush1.msra.mxu0 0.0
  %1188 = vmatprep.subr.mxu0 0.0
  %1189 = vmatpush1.msra.mxu0 0.0
  %1190 = vmatprep.subr.mxu0 0.0
  %1191 = vmatpush1.msra.mxu0 0.0
  %1192 = vmatprep.mubr.f32.mxu0 0.0
  %1193 = vmatmul.mubr.f32.gmra.mrb[0].mxu0 %v1078
  %v1194 = vpop.f32.mrb[0].mxu0
  %v1195 = vadd.f32 0.0, %v1194
  %v1196 = vpop.f32.mrb[0].mxu0
  %1197 = vmatprep.mubr.f32.mxu0 0.0
  %1198 = vmatmul.mubr.f32.gmra.mrb[0].mxu0 %v1081
  %v1199 = vpop.f32.mrb[0].mxu0
  %v1200 = vadd.f32 0.0, %v1199
  %v1201 = vpop.f32.mrb[0].mxu0
  %1202 = vmatprep.mubr.f32.mxu0 0.0
  %1203 = vmatmul.mubr.f32.gmra.mrb[0].mxu0 %v1084
  %v1204 = vpop.f32.mrb[0].mxu0
  %v1205 = vadd.f32 0.0, %v1204
  %v1206 = vpop.f32.mrb[0].mxu0
  %1207 = vmatprep.mubr.f32.mxu0 0.0
  %1208 = vmatmul.mubr.f32.gmra.mrb[0].mxu0 %v1087
  %v1209 = vpop.f32.mrb[0].mxu0
  %v1210 = vadd.f32 0.0, %v1209
  %v1211 = vpop.f32.mrb[0].mxu0
  %1212 = vmatprep.mubr.f32.mxu0 0.0
  %1213 = vmatmul.mubr.f32.gmra.mrb[0].mxu0 %v1090
  %v1214 = vpop.f32.mrb[0].mxu0
  %v1215 = vadd.f32 0.0, %v1214
  %v1216 = vpop.f32.mrb[0].mxu0
  %1217 = vmatprep.mubr.f32.mxu0 0.0
  %1218 = vmatmul.mubr.f32.gmra.mrb[0].mxu0 %v1093
  %v1219 = vpop.f32.mrb[0].mxu0
  %v1220 = vadd.f32 0.0, %v1219
  %v1221 = vpop.f32.mrb[0].mxu0
  %1222 = vmatprep.mubr.f32.mxu0 0.0
  %1223 = vmatmul.mubr.f32.gmra.mrb[0].mxu0 %v1096
  %v1224 = vpop.f32.mrb[0].mxu0
  %v1225 = vadd.f32 0.0, %v1224
  %v1226 = vpop.f32.mrb[0].mxu0
  %1227 = vmatprep.mubr.f32.mxu0 0.0
  %1228 = vmatmul.mubr.f32.gmra.mrb[0].mxu0 %v1099
  %v1229 = vpop.f32.mrb[0].mxu0
  %v1230 = vadd.f32 0.0, %v1229
  %v1231 = vpop.f32.mrb[0].mxu0
  %1232 = vmatprep.mubr.f32.mxu0 0.0
  %1233 = vmatmul.mubr.f32.gmra.mrb[0].mxu0 %v1102
  %v1234 = vpop.f32.mrb[0].mxu0
  %v1235 = vadd.f32 0.0, %v1234
  %v1236 = vpop.f32.mrb[0].mxu0
  %1237 = vmatprep.mubr.f32.mxu0 0.0
  %1238 = vmatmul.mubr.f32.gmra.mrb[0].mxu0 %v1105
  %v1239 = vpop.f32.mrb[0].mxu0
  %v1240 = vadd.f32 0.0, %v1239
  %v1241 = vpop.f32.mrb[0].mxu0
  %1242 = vmatprep.mubr.f32.mxu0 0.0
  %1243 = vmatmul.mubr.f32.gmra.mrb[0].mxu0 %v1108
  %v1244 = vpop.f32.mrb[0].mxu0
  %v1245 = vadd.f32 0.0, %v1244
  %v1246 = vpop.f32.mrb[0].mxu0
  %1247 = vmatprep.mubr.f32.mxu0 0.0
  %1248 = vmatmul.mubr.f32.gmra.mrb[0].mxu0 %v1111
  %v1249 = vpop.f32.mrb[0].mxu0
  %v1250 = vadd.f32 0.0, %v1249
  %v1251 = vpop.f32.mrb[0].mxu0
  %1252 = vmatprep.mubr.f32.mxu0 0.0
  %1253 = vmatmul.mubr.f32.gmra.mrb[0].mxu0 %v1114
  %v1254 = vpop.f32.mrb[0].mxu0
  %v1255 = vadd.f32 0.0, %v1254
  %v1256 = vpop.f32.mrb[0].mxu0
  %1257 = vmatprep.mubr.f32.mxu0 0.0
  %1258 = vmatmul.mubr.f32.gmra.mrb[0].mxu0 %v1117
  %v1259 = vpop.f32.mrb[0].mxu0
  %v1260 = vadd.f32 0.0, %v1259
  %v1261 = vpop.f32.mrb[0].mxu0
  %1262 = vmatprep.mubr.f32.mxu0 0.0
  %1263 = vmatmul.mubr.f32.gmra.mrb[0].mxu0 %v1120
  %v1264 = vpop.f32.mrb[0].mxu0
  %v1265 = vadd.f32 0.0, %v1264
  %v1266 = vpop.f32.mrb[0].mxu0
  %1267 = vmatprep.mubr.f32.mxu0 0.0
  %1268 = vmatmul.mubr.f32.gmra.mrb[0].mxu0 %v1123
  %v1269 = vpop.f32.mrb[0].mxu0
  %v1270 = vadd.f32 0.0, %v1269
  %v1271 = vpop.f32.mrb[0].mxu0
  %1272 = vdwg.mxu0
  %v1273 = vmul.f32 %v184, %v1195
  %v1274 = vmul.f32 %v189, %v1200
  %v1275 = vmul.f32 %v194, %v1205
  %v1276 = vmul.f32 %v199, %v1210
  %v1277 = vmul.f32 %v204, %v1215
  %v1278 = vmul.f32 %v209, %v1220
  %v1279 = vmul.f32 %v214, %v1225
  %v1280 = vmul.f32 %v219, %v1230
  %v1281 = vmul.f32 %v224, %v1235
  %v1282 = vmul.f32 %v229, %v1240
  %v1283 = vmul.f32 %v234, %v1245
  %v1284 = vmul.f32 %v239, %v1250
  %v1285 = vmul.f32 %v244, %v1255
  %v1286 = vmul.f32 %v249, %v1260
  %v1287 = vmul.f32 %v254, %v1265
  %v1288 = vmul.f32 %v259, %v1270
  %v1290 = vsel %vm1076, %v1060, 0
  %v1293 = vsel %vm1076, %v1061, 0
  %v1296 = vsel %vm1076, %v1062, 0
  %v1299 = vsel %vm1076, %v1063, 0
  %v1302 = vsel %vm1076, %v1064, 0
  %v1305 = vsel %vm1076, %v1065, 0
  %v1308 = vsel %vm1076, %v1066, 0
  %v1311 = vsel %vm1076, %v1067, 0
  %v1314 = vsel %vm1076, %v1068, 0
  %v1317 = vsel %vm1076, %v1069, 0
  %v1320 = vsel %vm1076, %v1070, 0
  %v1323 = vsel %vm1076, %v1071, 0
  %v1326 = vsel %vm1076, %v1072, 0
  %v1329 = vsel %vm1076, %v1073, 0
  %v1332 = vsel %vm1076, %v1074, 0
  %v1335 = vsel %vm1076, %v1075, 0
  %1337 = vmatprep.subr.mxu0 0.0
  %1338 = vmatpush1.msra.mxu0 %v1126
  %1339 = vmatprep.subr.mxu0 0.0
  %1340 = vmatpush1.msra.mxu0 0.0
  %1341 = vmatprep.subr.mxu0 0.0
  %1342 = vmatpush1.msra.mxu0 0.0
  %1343 = vmatprep.subr.mxu0 0.0
  %1344 = vmatpush1.msra.mxu0 0.0
  %1345 = vmatprep.subr.mxu0 0.0
  %1346 = vmatpush1.msra.mxu0 0.0
  %1347 = vmatprep.subr.mxu0 0.0
  %1348 = vmatpush1.msra.mxu0 0.0
  %1349 = vmatprep.subr.mxu0 0.0
  %1350 = vmatpush1.msra.mxu0 0.0
  %1351 = vmatprep.subr.mxu0 0.0
  %1352 = vmatpush1.msra.mxu0 0.0
  %1353 = vmatprep.subr.mxu0 0.0
  %1354 = vmatpush1.msra.mxu0 0.0
  %1355 = vmatprep.subr.mxu0 0.0
  %1356 = vmatpush1.msra.mxu0 0.0
  %1357 = vmatprep.subr.mxu0 0.0
  %1358 = vmatpush1.msra.mxu0 0.0
  %1359 = vmatprep.subr.mxu0 0.0
  %1360 = vmatpush1.msra.mxu0 0.0
  %1361 = vmatprep.subr.mxu0 0.0
  %1362 = vmatpush1.msra.mxu0 0.0
  %1363 = vmatprep.subr.mxu0 0.0
  %1364 = vmatpush1.msra.mxu0 0.0
  %1365 = vmatprep.subr.mxu0 0.0
  %1366 = vmatpush1.msra.mxu0 0.0
  %1367 = vmatprep.subr.mxu0 0.0
  %1368 = vmatpush1.msra.mxu0 0.0
  %1369 = vmatprep.subr.mxu0 0.0
  %1370 = vmatpush1.msra.mxu0 0.0
  %1371 = vmatprep.subr.mxu0 0.0
  %1372 = vmatpush1.msra.mxu0 0.0
  %1373 = vmatprep.subr.mxu0 0.0
  %1374 = vmatpush1.msra.mxu0 0.0
  %1375 = vmatprep.subr.mxu0 0.0
  %1376 = vmatpush1.msra.mxu0 0.0
  %1377 = vmatprep.subr.mxu0 0.0
  %1378 = vmatpush1.msra.mxu0 0.0
  %1379 = vmatprep.subr.mxu0 0.0
  %1380 = vmatpush1.msra.mxu0 0.0
  %1381 = vmatprep.subr.mxu0 0.0
  %1382 = vmatpush1.msra.mxu0 0.0
  %1383 = vmatprep.subr.mxu0 0.0
  %1384 = vmatpush1.msra.mxu0 0.0
  %1385 = vmatprep.subr.mxu0 0.0
  %1386 = vmatpush1.msra.mxu0 0.0
  %1387 = vmatprep.subr.mxu0 0.0
  %1388 = vmatpush1.msra.mxu0 0.0
  %1389 = vmatprep.subr.mxu0 0.0
  %1390 = vmatpush1.msra.mxu0 0.0
  %1391 = vmatprep.subr.mxu0 0.0
  %1392 = vmatpush1.msra.mxu0 0.0
  %1393 = vmatprep.subr.mxu0 0.0
  %1394 = vmatpush1.msra.mxu0 0.0
  %1395 = vmatprep.subr.mxu0 0.0
  %1396 = vmatpush1.msra.mxu0 0.0
  %1397 = vmatprep.subr.mxu0 0.0
  %1398 = vmatpush1.msra.mxu0 0.0
  %1399 = vmatprep.subr.mxu0 0.0
  %1400 = vmatpush1.msra.mxu0 0.0
  %1401 = vmatprep.mubr.f32.mxu0 0.0
  %1402 = vmatmul.mubr.f32.gmra.mrb[0].mxu0 %v1290
  %v1403 = vpop.f32.mrb[0].mxu0
  %v1404 = vadd.f32 0.0, %v1403
  %v1405 = vpop.f32.mrb[0].mxu0
  %1406 = vmatprep.mubr.f32.mxu0 0.0
  %1407 = vmatmul.mubr.f32.gmra.mrb[0].mxu0 %v1293
  %v1408 = vpop.f32.mrb[0].mxu0
  %v1409 = vadd.f32 0.0, %v1408
  %v1410 = vpop.f32.mrb[0].mxu0
  %1411 = vmatprep.mubr.f32.mxu0 0.0
  %1412 = vmatmul.mubr.f32.gmra.mrb[0].mxu0 %v1296
  %v1413 = vpop.f32.mrb[0].mxu0
  %v1414 = vadd.f32 0.0, %v1413
  %v1415 = vpop.f32.mrb[0].mxu0
  %1416 = vmatprep.mubr.f32.mxu0 0.0
  %1417 = vmatmul.mubr.f32.gmra.mrb[0].mxu0 %v1299
  %v1418 = vpop.f32.mrb[0].mxu0
  %v1419 = vadd.f32 0.0, %v1418
  %v1420 = vpop.f32.mrb[0].mxu0
  %1421 = vmatprep.mubr.f32.mxu0 0.0
  %1422 = vmatmul.mubr.f32.gmra.mrb[0].mxu0 %v1302
  %v1423 = vpop.f32.mrb[0].mxu0
  %v1424 = vadd.f32 0.0, %v1423
  %v1425 = vpop.f32.mrb[0].mxu0
  %1426 = vmatprep.mubr.f32.mxu0 0.0
  %1427 = vmatmul.mubr.f32.gmra.mrb[0].mxu0 %v1305
  %v1428 = vpop.f32.mrb[0].mxu0
  %v1429 = vadd.f32 0.0, %v1428
  %v1430 = vpop.f32.mrb[0].mxu0
  %1431 = vmatprep.mubr.f32.mxu0 0.0
  %1432 = vmatmul.mubr.f32.gmra.mrb[0].mxu0 %v1308
  %v1433 = vpop.f32.mrb[0].mxu0
  %v1434 = vadd.f32 0.0, %v1433
  %v1435 = vpop.f32.mrb[0].mxu0
  %1436 = vmatprep.mubr.f32.mxu0 0.0
  %1437 = vmatmul.mubr.f32.gmra.mrb[0].mxu0 %v1311
  %v1438 = vpop.f32.mrb[0].mxu0
  %v1439 = vadd.f32 0.0, %v1438
  %v1440 = vpop.f32.mrb[0].mxu0
  %1441 = vmatprep.mubr.f32.mxu0 0.0
  %1442 = vmatmul.mubr.f32.gmra.mrb[0].mxu0 %v1314
  %v1443 = vpop.f32.mrb[0].mxu0
  %v1444 = vadd.f32 0.0, %v1443
  %v1445 = vpop.f32.mrb[0].mxu0
  %1446 = vmatprep.mubr.f32.mxu0 0.0
  %1447 = vmatmul.mubr.f32.gmra.mrb[0].mxu0 %v1317
  %v1448 = vpop.f32.mrb[0].mxu0
  %v1449 = vadd.f32 0.0, %v1448
  %v1450 = vpop.f32.mrb[0].mxu0
  %1451 = vmatprep.mubr.f32.mxu0 0.0
  %1452 = vmatmul.mubr.f32.gmra.mrb[0].mxu0 %v1320
  %v1453 = vpop.f32.mrb[0].mxu0
  %v1454 = vadd.f32 0.0, %v1453
  %v1455 = vpop.f32.mrb[0].mxu0
  %1456 = vmatprep.mubr.f32.mxu0 0.0
  %1457 = vmatmul.mubr.f32.gmra.mrb[0].mxu0 %v1323
  %v1458 = vpop.f32.mrb[0].mxu0
  %v1459 = vadd.f32 0.0, %v1458
  %v1460 = vpop.f32.mrb[0].mxu0
  %1461 = vmatprep.mubr.f32.mxu0 0.0
  %1462 = vmatmul.mubr.f32.gmra.mrb[0].mxu0 %v1326
  %v1463 = vpop.f32.mrb[0].mxu0
  %v1464 = vadd.f32 0.0, %v1463
  %v1465 = vpop.f32.mrb[0].mxu0
  %1466 = vmatprep.mubr.f32.mxu0 0.0
  %1467 = vmatmul.mubr.f32.gmra.mrb[0].mxu0 %v1329
  %v1468 = vpop.f32.mrb[0].mxu0
  %v1469 = vadd.f32 0.0, %v1468
  %v1470 = vpop.f32.mrb[0].mxu0
  %1471 = vmatprep.mubr.f32.mxu0 0.0
  %1472 = vmatmul.mubr.f32.gmra.mrb[0].mxu0 %v1332
  %v1473 = vpop.f32.mrb[0].mxu0
  %v1474 = vadd.f32 0.0, %v1473
  %v1475 = vpop.f32.mrb[0].mxu0
  %1476 = vmatprep.mubr.f32.mxu0 0.0
  %1477 = vmatmul.mubr.f32.gmra.mrb[0].mxu0 %v1335
  %v1478 = vpop.f32.mrb[0].mxu0
  %v1479 = vadd.f32 0.0, %v1478
  %v1480 = vpop.f32.mrb[0].mxu0
  %1481 = vdwg.mxu0
  %v1482 = vmul.f32 %v333, %v1404
  %v1483 = vmul.f32 %v338, %v1409
  %v1484 = vmul.f32 %v343, %v1414
  %v1485 = vmul.f32 %v348, %v1419
  %v1486 = vmul.f32 %v353, %v1424
  %v1487 = vmul.f32 %v358, %v1429
  %v1488 = vmul.f32 %v363, %v1434
  %v1489 = vmul.f32 %v368, %v1439
  %v1490 = vmul.f32 %v373, %v1444
  %v1491 = vmul.f32 %v378, %v1449
  %v1492 = vmul.f32 %v383, %v1454
  %v1493 = vmul.f32 %v388, %v1459
  %v1494 = vmul.f32 %v393, %v1464
  %v1495 = vmul.f32 %v398, %v1469
  %v1496 = vmul.f32 %v403, %v1474
  %v1497 = vmul.f32 %v408, %v1479
  %v1499 = vunpack.c.l.s4 1966171168
  %v1500 = vunpack.c.0.s8 %v1499
  %v1501 = vlaneseq
  %v1502 = vshrl.u32 %v1501, 7
  %v1503 = vsub.s32 %v1500, %v1502
  %v1504 = vrot.slane %v567, %v1503
  %v1505 = vcombine.high %v1504, %v1504
  %v1507 = vunpack.c.l.s4 1966171168
  %v1508 = vunpack.c.0.s8 %v1507
  %v1509 = vlaneseq
  %v1510 = vshrl.u32 %v1509, 7
  %v1511 = vsub.s32 %v1508, %v1510
  %v1512 = vrot.slane %v1504, %v1511
  %v1514 = vunpack.c.l.s4 1966171168
  %v1515 = vunpack.c.0.s8 %v1514
  %v1516 = vlaneseq
  %v1517 = vshrl.u32 %v1516, 7
  %v1518 = vsub.s32 %v1515, %v1517
  %v1519 = vrot.slane %v1505, %v1518
  %v1520 = vcombine.high %v1512, %v1512
  %v1521 = vcombine.high %v1519, %v1519
  %v1522 = vlaneseq
  %v1523 = vshrl.u32 %v1522, 7
  %v1524 = vsub.s32 0, %v1523
  %v1525 = vrot.slane %v1512, %v1524
  %v1526 = vlaneseq
  %v1527 = vshrl.u32 %v1526, 7
  %v1528 = vsub.s32 0, %v1527
  %v1529 = vrot.slane %v1519, %v1528
  %v1530 = vlaneseq
  %v1531 = vshrl.u32 %v1530, 7
  %v1532 = vsub.s32 0, %v1531
  %v1533 = vrot.slane %v1520, %v1532
  %v1534 = vlaneseq
  %v1535 = vshrl.u32 %v1534, 7
  %v1536 = vsub.s32 0, %v1535
  %v1537 = vrot.slane %v1521, %v1536
  %v1542 = vmul.f32 %v1482, %v1525
  %v1543 = vmul.f32 %v1483, %v1525
  %v1544 = vmul.f32 %v1482, %v1529
  %v1545 = vmul.f32 %v1483, %v1529
  %v1546 = vmul.f32 %v1482, %v1533
  %v1547 = vmul.f32 %v1483, %v1533
  %v1548 = vmul.f32 %v1482, %v1537
  %v1549 = vmul.f32 %v1483, %v1537
  %v1550 = vmul.f32 %v1484, %v1525
  %v1551 = vmul.f32 %v1485, %v1525
  %v1552 = vmul.f32 %v1484, %v1529
  %v1553 = vmul.f32 %v1485, %v1529
  %v1554 = vmul.f32 %v1484, %v1533
  %v1555 = vmul.f32 %v1485, %v1533
  %v1556 = vmul.f32 %v1484, %v1537
  %v1557 = vmul.f32 %v1485, %v1537
  %v1558 = vmul.f32 %v1486, %v1525
  %v1559 = vmul.f32 %v1487, %v1525
  %v1560 = vmul.f32 %v1486, %v1529
  %v1561 = vmul.f32 %v1487, %v1529
  %v1562 = vmul.f32 %v1486, %v1533
  %v1563 = vmul.f32 %v1487, %v1533
  %v1564 = vmul.f32 %v1486, %v1537
  %v1565 = vmul.f32 %v1487, %v1537
  %v1566 = vmul.f32 %v1488, %v1525
  %v1567 = vmul.f32 %v1489, %v1525
  %v1568 = vmul.f32 %v1488, %v1529
  %v1569 = vmul.f32 %v1489, %v1529
  %v1570 = vmul.f32 %v1488, %v1533
  %v1571 = vmul.f32 %v1489, %v1533
  %v1572 = vmul.f32 %v1488, %v1537
  %v1573 = vmul.f32 %v1489, %v1537
  %v1574 = vmul.f32 %v1490, %v1525
  %v1575 = vmul.f32 %v1491, %v1525
  %v1576 = vmul.f32 %v1490, %v1529
  %v1577 = vmul.f32 %v1491, %v1529
  %v1578 = vmul.f32 %v1490, %v1533
  %v1579 = vmul.f32 %v1491, %v1533
  %v1580 = vmul.f32 %v1490, %v1537
  %v1581 = vmul.f32 %v1491, %v1537
  %v1582 = vmul.f32 %v1492, %v1525
  %v1583 = vmul.f32 %v1493, %v1525
  %v1584 = vmul.f32 %v1492, %v1529
  %v1585 = vmul.f32 %v1493, %v1529
  %v1586 = vmul.f32 %v1492, %v1533
  %v1587 = vmul.f32 %v1493, %v1533
  %v1588 = vmul.f32 %v1492, %v1537
  %v1589 = vmul.f32 %v1493, %v1537
  %v1590 = vmul.f32 %v1494, %v1525
  %v1591 = vmul.f32 %v1495, %v1525
  %v1592 = vmul.f32 %v1494, %v1529
  %v1593 = vmul.f32 %v1495, %v1529
  %v1594 = vmul.f32 %v1494, %v1533
  %v1595 = vmul.f32 %v1495, %v1533
  %v1596 = vmul.f32 %v1494, %v1537
  %v1597 = vmul.f32 %v1495, %v1537
  %v1598 = vmul.f32 %v1496, %v1525
  %v1599 = vmul.f32 %v1497, %v1525
  %v1600 = vmul.f32 %v1496, %v1529
  %v1601 = vmul.f32 %v1497, %v1529
  %v1602 = vmul.f32 %v1496, %v1533
  %v1603 = vmul.f32 %v1497, %v1533
  %v1604 = vmul.f32 %v1496, %v1537
  %v1605 = vmul.f32 %v1497, %v1537
  %v1606 = vmul.f32 %v489, %v1525
  %v1607 = vmul.f32 %v494, %v1525
  %v1608 = vmul.f32 %v489, %v1529
  %v1609 = vmul.f32 %v494, %v1529
  %v1610 = vmul.f32 %v489, %v1533
  %v1611 = vmul.f32 %v494, %v1533
  %v1612 = vmul.f32 %v489, %v1537
  %v1613 = vmul.f32 %v494, %v1537
  %v1614 = vmul.f32 %v499, %v1525
  %v1615 = vmul.f32 %v504, %v1525
  %v1616 = vmul.f32 %v499, %v1529
  %v1617 = vmul.f32 %v504, %v1529
  %v1618 = vmul.f32 %v499, %v1533
  %v1619 = vmul.f32 %v504, %v1533
  %v1620 = vmul.f32 %v499, %v1537
  %v1621 = vmul.f32 %v504, %v1537
  %v1622 = vmul.f32 %v509, %v1525
  %v1623 = vmul.f32 %v514, %v1525
  %v1624 = vmul.f32 %v509, %v1529
  %v1625 = vmul.f32 %v514, %v1529
  %v1626 = vmul.f32 %v509, %v1533
  %v1627 = vmul.f32 %v514, %v1533
  %v1628 = vmul.f32 %v509, %v1537
  %v1629 = vmul.f32 %v514, %v1537
  %v1630 = vmul.f32 %v519, %v1525
  %v1631 = vmul.f32 %v524, %v1525
  %v1632 = vmul.f32 %v519, %v1529
  %v1633 = vmul.f32 %v524, %v1529
  %v1634 = vmul.f32 %v519, %v1533
  %v1635 = vmul.f32 %v524, %v1533
  %v1636 = vmul.f32 %v519, %v1537
  %v1637 = vmul.f32 %v524, %v1537
  %v1638 = vmul.f32 %v529, %v1525
  %v1639 = vmul.f32 %v534, %v1525
  %v1640 = vmul.f32 %v529, %v1529
  %v1641 = vmul.f32 %v534, %v1529
  %v1642 = vmul.f32 %v529, %v1533
  %v1643 = vmul.f32 %v534, %v1533
  %v1644 = vmul.f32 %v529, %v1537
  %v1645 = vmul.f32 %v534, %v1537
  %v1646 = vmul.f32 %v539, %v1525
  %v1647 = vmul.f32 %v544, %v1525
  %v1648 = vmul.f32 %v539, %v1529
  %v1649 = vmul.f32 %v544, %v1529
  %v1650 = vmul.f32 %v539, %v1533
  %v1651 = vmul.f32 %v544, %v1533
  %v1652 = vmul.f32 %v539, %v1537
  %v1653 = vmul.f32 %v544, %v1537
  %v1654 = vmul.f32 %v549, %v1525
  %v1655 = vmul.f32 %v554, %v1525
  %v1656 = vmul.f32 %v549, %v1529
  %v1657 = vmul.f32 %v554, %v1529
  %v1658 = vmul.f32 %v549, %v1533
  %v1659 = vmul.f32 %v554, %v1533
  %v1660 = vmul.f32 %v549, %v1537
  %v1661 = vmul.f32 %v554, %v1537
  %v1662 = vmul.f32 %v559, %v1525
  %v1663 = vmul.f32 %v564, %v1525
  %v1664 = vmul.f32 %v559, %v1529
  %v1665 = vmul.f32 %v564, %v1529
  %v1666 = vmul.f32 %v559, %v1533
  %v1667 = vmul.f32 %v564, %v1533
  %v1668 = vmul.f32 %v559, %v1537
  %v1669 = vmul.f32 %v564, %v1537
  %v1670 = vld [vmem:[%s9] sm:$0xff]
  %v1671 = vld [vmem:[%s9 + $0x8] sm:$0xff]
  %v1673 = vsel %vm68, %v1273, 0
  %v1676 = vsel %vm68, %v1274, 0
  %v1679 = vsel %vm68, %v1542, 0
  %v1682 = vsel %vm68, %v1543, 0
  %v1685 = vsel %vm68, %v1544, 0
  %v1688 = vsel %vm68, %v1545, 0
  %v1691 = vsel %vm68, %v1546, 0
  %v1694 = vsel %vm68, %v1547, 0
  %v1697 = vsel %vm68, %v1548, 0
  %v1700 = vsel %vm68, %v1549, 0
  %1702 = vmatprep.subr.mxu0 0.0
  %1703 = vmatpush1.xpose.msra.mxu0 %v1679
  %1704 = vmatprep.subr.mxu0 0.0
  %1705 = vmatpush1.xpose.msra.mxu0 %v1682
  %1706 = vmatprep.subr.mxu0 0.0
  %1707 = vmatpush1.xpose.msra.mxu0 %v1685
  %1708 = vmatprep.subr.mxu0 0.0
  %1709 = vmatpush1.xpose.msra.mxu0 %v1688
  %1710 = vmatprep.subr.mxu0 0.0
  %1711 = vmatpush1.xpose.msra.mxu0 %v1691
  %1712 = vmatprep.subr.mxu0 0.0
  %1713 = vmatpush1.xpose.msra.mxu0 %v1694
  %1714 = vmatprep.subr.mxu0 0.0
  %1715 = vmatpush1.xpose.msra.mxu0 %v1697
  %1716 = vmatprep.subr.mxu0 0.0
  %1717 = vmatpush1.xpose.msra.mxu0 %v1700
  %1718 = vmatprep.subr.mxu0 0.0
  %1719 = vmatpush1.xpose.msra.mxu0 0.0
  %1720 = vmatprep.subr.mxu0 0.0
  %1721 = vmatpush1.xpose.msra.mxu0 0.0
  %1722 = vmatprep.subr.mxu0 0.0
  %1723 = vmatpush1.xpose.msra.mxu0 0.0
  %1724 = vmatprep.subr.mxu0 0.0
  %1725 = vmatpush1.xpose.msra.mxu0 0.0
  %1726 = vmatprep.subr.mxu0 0.0
  %1727 = vmatpush1.xpose.msra.mxu0 0.0
  %1728 = vmatprep.subr.mxu0 0.0
  %1729 = vmatpush1.xpose.msra.mxu0 0.0
  %1730 = vmatprep.subr.mxu0 0.0
  %1731 = vmatpush1.xpose.msra.mxu0 0.0
  %1732 = vmatprep.subr.mxu0 0.0
  %1733 = vmatpush1.xpose.msra.mxu0 0.0
  %1734 = vmatprep.subr.mxu0 0.0
  %1735 = vmatpush1.xpose.msra.mxu0 0.0
  %1736 = vmatprep.subr.mxu0 0.0
  %1737 = vmatpush1.xpose.msra.mxu0 0.0
  %1738 = vmatprep.subr.mxu0 0.0
  %1739 = vmatpush1.xpose.msra.mxu0 0.0
  %1740 = vmatprep.subr.mxu0 0.0
  %1741 = vmatpush1.xpose.msra.mxu0 0.0
  %1742 = vmatprep.subr.mxu0 0.0
  %1743 = vmatpush1.xpose.msra.mxu0 0.0
  %1744 = vmatprep.subr.mxu0 0.0
  %1745 = vmatpush1.xpose.msra.mxu0 0.0
  %1746 = vmatprep.subr.mxu0 0.0
  %1747 = vmatpush1.xpose.msra.mxu0 0.0
  %1748 = vmatprep.subr.mxu0 0.0
  %1749 = vmatpush1.xpose.msra.mxu0 0.0
  %1750 = vmatprep.subr.mxu0 0.0
  %1751 = vmatpush1.xpose.msra.mxu0 0.0
  %1752 = vmatprep.subr.mxu0 0.0
  %1753 = vmatpush1.xpose.msra.mxu0 0.0
  %1754 = vmatprep.subr.mxu0 0.0
  %1755 = vmatpush1.xpose.msra.mxu0 0.0
  %1756 = vmatprep.subr.mxu0 0.0
  %1757 = vmatpush1.xpose.msra.mxu0 0.0
  %1758 = vmatprep.subr.mxu0 0.0
  %1759 = vmatpush1.xpose.msra.mxu0 0.0
  %1760 = vmatprep.subr.mxu0 0.0
  %1761 = vmatpush1.xpose.msra.mxu0 0.0
  %1762 = vmatprep.subr.mxu0 0.0
  %1763 = vmatpush1.xpose.msra.mxu0 0.0
  %1764 = vmatprep.subr.mxu0 0.0
  %1765 = vmatpush1.xpose.msra.mxu0 0.0
  %1766 = vmatprep.mubr.f32.mxu0 0.0
  %1767 = vmatmul.mubr.f32.gmra.mrb[0].mxu0 %v1673
  %v1768 = vpop.f32.mrb[0].mxu0
  %v1769 = vadd.f32 %v1670, %v1768
  %v1770 = vpop.f32.mrb[0].mxu0
  %1771 = vmatprep.mubr.f32.mxu0 0.0
  %1772 = vmatmul.mubr.f32.gmra.mrb[0].mxu0 %v1676
  %v1773 = vpop.f32.mrb[0].mxu0
  %v1774 = vadd.f32 %v1671, %v1773
  %v1775 = vpop.f32.mrb[0].mxu0
  %1776 = vdwg.mxu0
  %v1778 = vsel %vm68, %v1275, 0
  %v1781 = vsel %vm68, %v1276, 0
  %v1784 = vsel %vm68, %v1550, 0
  %v1787 = vsel %vm68, %v1551, 0
  %v1790 = vsel %vm68, %v1552, 0
  %v1793 = vsel %vm68, %v1553, 0
  %v1796 = vsel %vm68, %v1554, 0
  %v1799 = vsel %vm68, %v1555, 0
  %v1802 = vsel %vm68, %v1556, 0
  %v1805 = vsel %vm68, %v1557, 0
  %1807 = vmatprep.subr.mxu0 0.0
  %1808 = vmatpush1.xpose.msra.mxu0 %v1784
  %1809 = vmatprep.subr.mxu0 0.0
  %1810 = vmatpush1.xpose.msra.mxu0 %v1787
  %1811 = vmatprep.subr.mxu0 0.0
  %1812 = vmatpush1.xpose.msra.mxu0 %v1790
  %1813 = vmatprep.subr.mxu0 0.0
  %1814 = vmatpush1.xpose.msra.mxu0 %v1793
  %1815 = vmatprep.subr.mxu0 0.0
  %1816 = vmatpush1.xpose.msra.mxu0 %v1796
  %1817 = vmatprep.subr.mxu0 0.0
  %1818 = vmatpush1.xpose.msra.mxu0 %v1799
  %1819 = vmatprep.subr.mxu0 0.0
  %1820 = vmatpush1.xpose.msra.mxu0 %v1802
  %1821 = vmatprep.subr.mxu0 0.0
  %1822 = vmatpush1.xpose.msra.mxu0 %v1805
  %1823 = vmatprep.subr.mxu0 0.0
  %1824 = vmatpush1.xpose.msra.mxu0 0.0
  %1825 = vmatprep.subr.mxu0 0.0
  %1826 = vmatpush1.xpose.msra.mxu0 0.0
  %1827 = vmatprep.subr.mxu0 0.0
  %1828 = vmatpush1.xpose.msra.mxu0 0.0
  %1829 = vmatprep.subr.mxu0 0.0
  %1830 = vmatpush1.xpose.msra.mxu0 0.0
  %1831 = vmatprep.subr.mxu0 0.0
  %1832 = vmatpush1.xpose.msra.mxu0 0.0
  %1833 = vmatprep.subr.mxu0 0.0
  %1834 = vmatpush1.xpose.msra.mxu0 0.0
  %1835 = vmatprep.subr.mxu0 0.0
  %1836 = vmatpush1.xpose.msra.mxu0 0.0
  %1837 = vmatprep.subr.mxu0 0.0
  %1838 = vmatpush1.xpose.msra.mxu0 0.0
  %1839 = vmatprep.subr.mxu0 0.0
  %1840 = vmatpush1.xpose.msra.mxu0 0.0
  %1841 = vmatprep.subr.mxu0 0.0
  %1842 = vmatpush1.xpose.msra.mxu0 0.0
  %1843 = vmatprep.subr.mxu0 0.0
  %1844 = vmatpush1.xpose.msra.mxu0 0.0
  %1845 = vmatprep.subr.mxu0 0.0
  %1846 = vmatpush1.xpose.msra.mxu0 0.0
  %1847 = vmatprep.subr.mxu0 0.0
  %1848 = vmatpush1.xpose.msra.mxu0 0.0
  %1849 = vmatprep.subr.mxu0 0.0
  %1850 = vmatpush1.xpose.msra.mxu0 0.0
  %1851 = vmatprep.subr.mxu0 0.0
  %1852 = vmatpush1.xpose.msra.mxu0 0.0
  %1853 = vmatprep.subr.mxu0 0.0
  %1854 = vmatpush1.xpose.msra.mxu0 0.0
  %1855 = vmatprep.subr.mxu0 0.0
  %1856 = vmatpush1.xpose.msra.mxu0 0.0
  %1857 = vmatprep.subr.mxu0 0.0
  %1858 = vmatpush1.xpose.msra.mxu0 0.0
  %1859 = vmatprep.subr.mxu0 0.0
  %1860 = vmatpush1.xpose.msra.mxu0 0.0
  %1861 = vmatprep.subr.mxu0 0.0
  %1862 = vmatpush1.xpose.msra.mxu0 0.0
  %1863 = vmatprep.subr.mxu0 0.0
  %1864 = vmatpush1.xpose.msra.mxu0 0.0
  %1865 = vmatprep.subr.mxu0 0.0
  %1866 = vmatpush1.xpose.msra.mxu0 0.0
  %1867 = vmatprep.subr.mxu0 0.0
  %1868 = vmatpush1.xpose.msra.mxu0 0.0
  %1869 = vmatprep.subr.mxu0 0.0
  %1870 = vmatpush1.xpose.msra.mxu0 0.0
  %1871 = vmatprep.mubr.f32.mxu0 0.0
  %1872 = vmatmul.mubr.f32.gmra.mrb[0].mxu0 %v1778
  %v1873 = vpop.f32.mrb[0].mxu0
  %v1874 = vadd.f32 %v1670, %v1873
  %v1875 = vpop.f32.mrb[0].mxu0
  %1876 = vmatprep.mubr.f32.mxu0 0.0
  %1877 = vmatmul.mubr.f32.gmra.mrb[0].mxu0 %v1781
  %v1878 = vpop.f32.mrb[0].mxu0
  %v1879 = vadd.f32 %v1671, %v1878
  %v1880 = vpop.f32.mrb[0].mxu0
  %1881 = vdwg.mxu0
  %v1883 = vsel %vm68, %v1277, 0
  %v1886 = vsel %vm68, %v1278, 0
  %v1889 = vsel %vm68, %v1558, 0
  %v1892 = vsel %vm68, %v1559, 0
  %v1895 = vsel %vm68, %v1560, 0
  %v1898 = vsel %vm68, %v1561, 0
  %v1901 = vsel %vm68, %v1562, 0
  %v1904 = vsel %vm68, %v1563, 0
  %v1907 = vsel %vm68, %v1564, 0
  %v1910 = vsel %vm68, %v1565, 0
  %1912 = vmatprep.subr.mxu0 0.0
  %1913 = vmatpush1.xpose.msra.mxu0 %v1889
  %1914 = vmatprep.subr.mxu0 0.0
  %1915 = vmatpush1.xpose.msra.mxu0 %v1892
  %1916 = vmatprep.subr.mxu0 0.0
  %1917 = vmatpush1.xpose.msra.mxu0 %v1895
  %1918 = vmatprep.subr.mxu0 0.0
  %1919 = vmatpush1.xpose.msra.mxu0 %v1898
  %1920 = vmatprep.subr.mxu0 0.0
  %1921 = vmatpush1.xpose.msra.mxu0 %v1901
  %1922 = vmatprep.subr.mxu0 0.0
  %1923 = vmatpush1.xpose.msra.mxu0 %v1904
  %1924 = vmatprep.subr.mxu0 0.0
  %1925 = vmatpush1.xpose.msra.mxu0 %v1907
  %1926 = vmatprep.subr.mxu0 0.0
  %1927 = vmatpush1.xpose.msra.mxu0 %v1910
  %1928 = vmatprep.subr.mxu0 0.0
  %1929 = vmatpush1.xpose.msra.mxu0 0.0
  %1930 = vmatprep.subr.mxu0 0.0
  %1931 = vmatpush1.xpose.msra.mxu0 0.0
  %1932 = vmatprep.subr.mxu0 0.0
  %1933 = vmatpush1.xpose.msra.mxu0 0.0
  %1934 = vmatprep.subr.mxu0 0.0
  %1935 = vmatpush1.xpose.msra.mxu0 0.0
  %1936 = vmatprep.subr.mxu0 0.0
  %1937 = vmatpush1.xpose.msra.mxu0 0.0
  %1938 = vmatprep.subr.mxu0 0.0
  %1939 = vmatpush1.xpose.msra.mxu0 0.0
  %1940 = vmatprep.subr.mxu0 0.0
  %1941 = vmatpush1.xpose.msra.mxu0 0.0
  %1942 = vmatprep.subr.mxu0 0.0
  %1943 = vmatpush1.xpose.msra.mxu0 0.0
  %1944 = vmatprep.subr.mxu0 0.0
  %1945 = vmatpush1.xpose.msra.mxu0 0.0
  %1946 = vmatprep.subr.mxu0 0.0
  %1947 = vmatpush1.xpose.msra.mxu0 0.0
  %1948 = vmatprep.subr.mxu0 0.0
  %1949 = vmatpush1.xpose.msra.mxu0 0.0
  %1950 = vmatprep.subr.mxu0 0.0
  %1951 = vmatpush1.xpose.msra.mxu0 0.0
  %1952 = vmatprep.subr.mxu0 0.0
  %1953 = vmatpush1.xpose.msra.mxu0 0.0
  %1954 = vmatprep.subr.mxu0 0.0
  %1955 = vmatpush1.xpose.msra.mxu0 0.0
  %1956 = vmatprep.subr.mxu0 0.0
  %1957 = vmatpush1.xpose.msra.mxu0 0.0
  %1958 = vmatprep.subr.mxu0 0.0
  %1959 = vmatpush1.xpose.msra.mxu0 0.0
  %1960 = vmatprep.subr.mxu0 0.0
  %1961 = vmatpush1.xpose.msra.mxu0 0.0
  %1962 = vmatprep.subr.mxu0 0.0
  %1963 = vmatpush1.xpose.msra.mxu0 0.0
  %1964 = vmatprep.subr.mxu0 0.0
  %1965 = vmatpush1.xpose.msra.mxu0 0.0
  %1966 = vmatprep.subr.mxu0 0.0
  %1967 = vmatpush1.xpose.msra.mxu0 0.0
  %1968 = vmatprep.subr.mxu0 0.0
  %1969 = vmatpush1.xpose.msra.mxu0 0.0
  %1970 = vmatprep.subr.mxu0 0.0
  %1971 = vmatpush1.xpose.msra.mxu0 0.0
  %1972 = vmatprep.subr.mxu0 0.0
  %1973 = vmatpush1.xpose.msra.mxu0 0.0
  %1974 = vmatprep.subr.mxu0 0.0
  %1975 = vmatpush1.xpose.msra.mxu0 0.0
  %1976 = vmatprep.mubr.f32.mxu0 0.0
  %1977 = vmatmul.mubr.f32.gmra.mrb[0].mxu0 %v1883
  %v1978 = vpop.f32.mrb[0].mxu0
  %v1979 = vadd.f32 %v1670, %v1978
  %v1980 = vpop.f32.mrb[0].mxu0
  %1981 = vmatprep.mubr.f32.mxu0 0.0
  %1982 = vmatmul.mubr.f32.gmra.mrb[0].mxu0 %v1886
  %v1983 = vpop.f32.mrb[0].mxu0
  %v1984 = vadd.f32 %v1671, %v1983
  %v1985 = vpop.f32.mrb[0].mxu0
  %1986 = vdwg.mxu0
  %v1988 = vsel %vm68, %v1279, 0
  %v1991 = vsel %vm68, %v1280, 0
  %v1994 = vsel %vm68, %v1566, 0
  %v1997 = vsel %vm68, %v1567, 0
  %v2000 = vsel %vm68, %v1568, 0
  %v2003 = vsel %vm68, %v1569, 0
  %v2006 = vsel %vm68, %v1570, 0
  %v2009 = vsel %vm68, %v1571, 0
  %v2012 = vsel %vm68, %v1572, 0
  %v2015 = vsel %vm68, %v1573, 0
  %2017 = vmatprep.subr.mxu0 0.0
  %2018 = vmatpush1.xpose.msra.mxu0 %v1994
  %2019 = vmatprep.subr.mxu0 0.0
  %2020 = vmatpush1.xpose.msra.mxu0 %v1997
  %2021 = vmatprep.subr.mxu0 0.0
  %2022 = vmatpush1.xpose.msra.mxu0 %v2000
  %2023 = vmatprep.subr.mxu0 0.0
  %2024 = vmatpush1.xpose.msra.mxu0 %v2003
  %2025 = vmatprep.subr.mxu0 0.0
  %2026 = vmatpush1.xpose.msra.mxu0 %v2006
  %2027 = vmatprep.subr.mxu0 0.0
  %2028 = vmatpush1.xpose.msra.mxu0 %v2009
  %2029 = vmatprep.subr.mxu0 0.0
  %2030 = vmatpush1.xpose.msra.mxu0 %v2012
  %2031 = vmatprep.subr.mxu0 0.0
  %2032 = vmatpush1.xpose.msra.mxu0 %v2015
  %2033 = vmatprep.subr.mxu0 0.0
  %2034 = vmatpush1.xpose.msra.mxu0 0.0
  %2035 = vmatprep.subr.mxu0 0.0
  %2036 = vmatpush1.xpose.msra.mxu0 0.0
  %2037 = vmatprep.subr.mxu0 0.0
  %2038 = vmatpush1.xpose.msra.mxu0 0.0
  %2039 = vmatprep.subr.mxu0 0.0
  %2040 = vmatpush1.xpose.msra.mxu0 0.0
  %2041 = vmatprep.subr.mxu0 0.0
  %2042 = vmatpush1.xpose.msra.mxu0 0.0
  %2043 = vmatprep.subr.mxu0 0.0
  %2044 = vmatpush1.xpose.msra.mxu0 0.0
  %2045 = vmatprep.subr.mxu0 0.0
  %2046 = vmatpush1.xpose.msra.mxu0 0.0
  %2047 = vmatprep.subr.mxu0 0.0
  %2048 = vmatpush1.xpose.msra.mxu0 0.0
  %2049 = vmatprep.subr.mxu0 0.0
  %2050 = vmatpush1.xpose.msra.mxu0 0.0
  %2051 = vmatprep.subr.mxu0 0.0
  %2052 = vmatpush1.xpose.msra.mxu0 0.0
  %2053 = vmatprep.subr.mxu0 0.0
  %2054 = vmatpush1.xpose.msra.mxu0 0.0
  %2055 = vmatprep.subr.mxu0 0.0
  %2056 = vmatpush1.xpose.msra.mxu0 0.0
  %2057 = vmatprep.subr.mxu0 0.0
  %2058 = vmatpush1.xpose.msra.mxu0 0.0
  %2059 = vmatprep.subr.mxu0 0.0
  %2060 = vmatpush1.xpose.msra.mxu0 0.0
  %2061 = vmatprep.subr.mxu0 0.0
  %2062 = vmatpush1.xpose.msra.mxu0 0.0
  %2063 = vmatprep.subr.mxu0 0.0
  %2064 = vmatpush1.xpose.msra.mxu0 0.0
  %2065 = vmatprep.subr.mxu0 0.0
  %2066 = vmatpush1.xpose.msra.mxu0 0.0
  %2067 = vmatprep.subr.mxu0 0.0
  %2068 = vmatpush1.xpose.msra.mxu0 0.0
  %2069 = vmatprep.subr.mxu0 0.0
  %2070 = vmatpush1.xpose.msra.mxu0 0.0
  %2071 = vmatprep.subr.mxu0 0.0
  %2072 = vmatpush1.xpose.msra.mxu0 0.0
  %2073 = vmatprep.subr.mxu0 0.0
  %2074 = vmatpush1.xpose.msra.mxu0 0.0
  %2075 = vmatprep.subr.mxu0 0.0
  %2076 = vmatpush1.xpose.msra.mxu0 0.0
  %2077 = vmatprep.subr.mxu0 0.0
  %2078 = vmatpush1.xpose.msra.mxu0 0.0
  %2079 = vmatprep.subr.mxu0 0.0
  %2080 = vmatpush1.xpose.msra.mxu0 0.0
  %2081 = vmatprep.mubr.f32.mxu0 0.0
  %2082 = vmatmul.mubr.f32.gmra.mrb[0].mxu0 %v1988
  %v2083 = vpop.f32.mrb[0].mxu0
  %v2084 = vadd.f32 %v1670, %v2083
  %v2085 = vpop.f32.mrb[0].mxu0
  %2086 = vmatprep.mubr.f32.mxu0 0.0
  %2087 = vmatmul.mubr.f32.gmra.mrb[0].mxu0 %v1991
  %v2088 = vpop.f32.mrb[0].mxu0
  %v2089 = vadd.f32 %v1671, %v2088
  %v2090 = vpop.f32.mrb[0].mxu0
  %2091 = vdwg.mxu0
  %v2093 = vsel %vm68, %v1281, 0
  %v2096 = vsel %vm68, %v1282, 0
  %v2099 = vsel %vm68, %v1574, 0
  %v2102 = vsel %vm68, %v1575, 0
  %v2105 = vsel %vm68, %v1576, 0
  %v2108 = vsel %vm68, %v1577, 0
  %v2111 = vsel %vm68, %v1578, 0
  %v2114 = vsel %vm68, %v1579, 0
  %v2117 = vsel %vm68, %v1580, 0
  %v2120 = vsel %vm68, %v1581, 0
  %2122 = vmatprep.subr.mxu0 0.0
  %2123 = vmatpush1.xpose.msra.mxu0 %v2099
  %2124 = vmatprep.subr.mxu0 0.0
  %2125 = vmatpush1.xpose.msra.mxu0 %v2102
  %2126 = vmatprep.subr.mxu0 0.0
  %2127 = vmatpush1.xpose.msra.mxu0 %v2105
  %2128 = vmatprep.subr.mxu0 0.0
  %2129 = vmatpush1.xpose.msra.mxu0 %v2108
  %2130 = vmatprep.subr.mxu0 0.0
  %2131 = vmatpush1.xpose.msra.mxu0 %v2111
  %2132 = vmatprep.subr.mxu0 0.0
  %2133 = vmatpush1.xpose.msra.mxu0 %v2114
  %2134 = vmatprep.subr.mxu0 0.0
  %2135 = vmatpush1.xpose.msra.mxu0 %v2117
  %2136 = vmatprep.subr.mxu0 0.0
  %2137 = vmatpush1.xpose.msra.mxu0 %v2120
  %2138 = vmatprep.subr.mxu0 0.0
  %2139 = vmatpush1.xpose.msra.mxu0 0.0
  %2140 = vmatprep.subr.mxu0 0.0
  %2141 = vmatpush1.xpose.msra.mxu0 0.0
  %2142 = vmatprep.subr.mxu0 0.0
  %2143 = vmatpush1.xpose.msra.mxu0 0.0
  %2144 = vmatprep.subr.mxu0 0.0
  %2145 = vmatpush1.xpose.msra.mxu0 0.0
  %2146 = vmatprep.subr.mxu0 0.0
  %2147 = vmatpush1.xpose.msra.mxu0 0.0
  %2148 = vmatprep.subr.mxu0 0.0
  %2149 = vmatpush1.xpose.msra.mxu0 0.0
  %2150 = vmatprep.subr.mxu0 0.0
  %2151 = vmatpush1.xpose.msra.mxu0 0.0
  %2152 = vmatprep.subr.mxu0 0.0
  %2153 = vmatpush1.xpose.msra.mxu0 0.0
  %2154 = vmatprep.subr.mxu0 0.0
  %2155 = vmatpush1.xpose.msra.mxu0 0.0
  %2156 = vmatprep.subr.mxu0 0.0
  %2157 = vmatpush1.xpose.msra.mxu0 0.0
  %2158 = vmatprep.subr.mxu0 0.0
  %2159 = vmatpush1.xpose.msra.mxu0 0.0
  %2160 = vmatprep.subr.mxu0 0.0
  %2161 = vmatpush1.xpose.msra.mxu0 0.0
  %2162 = vmatprep.subr.mxu0 0.0
  %2163 = vmatpush1.xpose.msra.mxu0 0.0
  %2164 = vmatprep.subr.mxu0 0.0
  %2165 = vmatpush1.xpose.msra.mxu0 0.0
  %2166 = vmatprep.subr.mxu0 0.0
  %2167 = vmatpush1.xpose.msra.mxu0 0.0
  %2168 = vmatprep.subr.mxu0 0.0
  %2169 = vmatpush1.xpose.msra.mxu0 0.0
  %2170 = vmatprep.subr.mxu0 0.0
  %2171 = vmatpush1.xpose.msra.mxu0 0.0
  %2172 = vmatprep.subr.mxu0 0.0
  %2173 = vmatpush1.xpose.msra.mxu0 0.0
  %2174 = vmatprep.subr.mxu0 0.0
  %2175 = vmatpush1.xpose.msra.mxu0 0.0
  %2176 = vmatprep.subr.mxu0 0.0
  %2177 = vmatpush1.xpose.msra.mxu0 0.0
  %2178 = vmatprep.subr.mxu0 0.0
  %2179 = vmatpush1.xpose.msra.mxu0 0.0
  %2180 = vmatprep.subr.mxu0 0.0
  %2181 = vmatpush1.xpose.msra.mxu0 0.0
  %2182 = vmatprep.subr.mxu0 0.0
  %2183 = vmatpush1.xpose.msra.mxu0 0.0
  %2184 = vmatprep.subr.mxu0 0.0
  %2185 = vmatpush1.xpose.msra.mxu0 0.0
  %2186 = vmatprep.mubr.f32.mxu0 0.0
  %2187 = vmatmul.mubr.f32.gmra.mrb[0].mxu0 %v2093
  %v2188 = vpop.f32.mrb[0].mxu0
  %v2189 = vadd.f32 %v1670, %v2188
  %v2190 = vpop.f32.mrb[0].mxu0
  %2191 = vmatprep.mubr.f32.mxu0 0.0
  %2192 = vmatmul.mubr.f32.gmra.mrb[0].mxu0 %v2096
  %v2193 = vpop.f32.mrb[0].mxu0
  %v2194 = vadd.f32 %v1671, %v2193
  %v2195 = vpop.f32.mrb[0].mxu0
  %2196 = vdwg.mxu0
  %v2198 = vsel %vm68, %v1283, 0
  %v2201 = vsel %vm68, %v1284, 0
  %v2204 = vsel %vm68, %v1582, 0
  %v2207 = vsel %vm68, %v1583, 0
  %v2210 = vsel %vm68, %v1584, 0
  %v2213 = vsel %vm68, %v1585, 0
  %v2216 = vsel %vm68, %v1586, 0
  %v2219 = vsel %vm68, %v1587, 0
  %v2222 = vsel %vm68, %v1588, 0
  %v2225 = vsel %vm68, %v1589, 0
  %2227 = vmatprep.subr.mxu0 0.0
  %2228 = vmatpush1.xpose.msra.mxu0 %v2204
  %2229 = vmatprep.subr.mxu0 0.0
  %2230 = vmatpush1.xpose.msra.mxu0 %v2207
  %2231 = vmatprep.subr.mxu0 0.0
  %2232 = vmatpush1.xpose.msra.mxu0 %v2210
  %2233 = vmatprep.subr.mxu0 0.0
  %2234 = vmatpush1.xpose.msra.mxu0 %v2213
  %2235 = vmatprep.subr.mxu0 0.0
  %2236 = vmatpush1.xpose.msra.mxu0 %v2216
  %2237 = vmatprep.subr.mxu0 0.0
  %2238 = vmatpush1.xpose.msra.mxu0 %v2219
  %2239 = vmatprep.subr.mxu0 0.0
  %2240 = vmatpush1.xpose.msra.mxu0 %v2222
  %2241 = vmatprep.subr.mxu0 0.0
  %2242 = vmatpush1.xpose.msra.mxu0 %v2225
  %2243 = vmatprep.subr.mxu0 0.0
  %2244 = vmatpush1.xpose.msra.mxu0 0.0
  %2245 = vmatprep.subr.mxu0 0.0
  %2246 = vmatpush1.xpose.msra.mxu0 0.0
  %2247 = vmatprep.subr.mxu0 0.0
  %2248 = vmatpush1.xpose.msra.mxu0 0.0
  %2249 = vmatprep.subr.mxu0 0.0
  %2250 = vmatpush1.xpose.msra.mxu0 0.0
  %2251 = vmatprep.subr.mxu0 0.0
  %2252 = vmatpush1.xpose.msra.mxu0 0.0
  %2253 = vmatprep.subr.mxu0 0.0
  %2254 = vmatpush1.xpose.msra.mxu0 0.0
  %2255 = vmatprep.subr.mxu0 0.0
  %2256 = vmatpush1.xpose.msra.mxu0 0.0
  %2257 = vmatprep.subr.mxu0 0.0
  %2258 = vmatpush1.xpose.msra.mxu0 0.0
  %2259 = vmatprep.subr.mxu0 0.0
  %2260 = vmatpush1.xpose.msra.mxu0 0.0
  %2261 = vmatprep.subr.mxu0 0.0
  %2262 = vmatpush1.xpose.msra.mxu0 0.0
  %2263 = vmatprep.subr.mxu0 0.0
  %2264 = vmatpush1.xpose.msra.mxu0 0.0
  %2265 = vmatprep.subr.mxu0 0.0
  %2266 = vmatpush1.xpose.msra.mxu0 0.0
  %2267 = vmatprep.subr.mxu0 0.0
  %2268 = vmatpush1.xpose.msra.mxu0 0.0
  %2269 = vmatprep.subr.mxu0 0.0
  %2270 = vmatpush1.xpose.msra.mxu0 0.0
  %2271 = vmatprep.subr.mxu0 0.0
  %2272 = vmatpush1.xpose.msra.mxu0 0.0
  %2273 = vmatprep.subr.mxu0 0.0
  %2274 = vmatpush1.xpose.msra.mxu0 0.0
  %2275 = vmatprep.subr.mxu0 0.0
  %2276 = vmatpush1.xpose.msra.mxu0 0.0
  %2277 = vmatprep.subr.mxu0 0.0
  %2278 = vmatpush1.xpose.msra.mxu0 0.0
  %2279 = vmatprep.subr.mxu0 0.0
  %2280 = vmatpush1.xpose.msra.mxu0 0.0
  %2281 = vmatprep.subr.mxu0 0.0
  %2282 = vmatpush1.xpose.msra.mxu0 0.0
  %2283 = vmatprep.subr.mxu0 0.0
  %2284 = vmatpush1.xpose.msra.mxu0 0.0
  %2285 = vmatprep.subr.mxu0 0.0
  %2286 = vmatpush1.xpose.msra.mxu0 0.0
  %2287 = vmatprep.subr.mxu0 0.0
  %2288 = vmatpush1.xpose.msra.mxu0 0.0
  %2289 = vmatprep.subr.mxu0 0.0
  %2290 = vmatpush1.xpose.msra.mxu0 0.0
  %2291 = vmatprep.mubr.f32.mxu0 0.0
  %2292 = vmatmul.mubr.f32.gmra.mrb[0].mxu0 %v2198
  %v2293 = vpop.f32.mrb[0].mxu0
  %v2294 = vadd.f32 %v1670, %v2293
  %v2295 = vpop.f32.mrb[0].mxu0
  %2296 = vmatprep.mubr.f32.mxu0 0.0
  %2297 = vmatmul.mubr.f32.gmra.mrb[0].mxu0 %v2201
  %v2298 = vpop.f32.mrb[0].mxu0
  %v2299 = vadd.f32 %v1671, %v2298
  %v2300 = vpop.f32.mrb[0].mxu0
  %2301 = vdwg.mxu0
  %v2303 = vsel %vm68, %v1285, 0
  %v2306 = vsel %vm68, %v1286, 0
  %v2309 = vsel %vm68, %v1590, 0
  %v2312 = vsel %vm68, %v1591, 0
  %v2315 = vsel %vm68, %v1592, 0
  %v2318 = vsel %vm68, %v1593, 0
  %v2321 = vsel %vm68, %v1594, 0
  %v2324 = vsel %vm68, %v1595, 0
  %v2327 = vsel %vm68, %v1596, 0
  %v2330 = vsel %vm68, %v1597, 0
  %2332 = vmatprep.subr.mxu0 0.0
  %2333 = vmatpush1.xpose.msra.mxu0 %v2309
  %2334 = vmatprep.subr.mxu0 0.0
  %2335 = vmatpush1.xpose.msra.mxu0 %v2312
  %2336 = vmatprep.subr.mxu0 0.0
  %2337 = vmatpush1.xpose.msra.mxu0 %v2315
  %2338 = vmatprep.subr.mxu0 0.0
  %2339 = vmatpush1.xpose.msra.mxu0 %v2318
  %2340 = vmatprep.subr.mxu0 0.0
  %2341 = vmatpush1.xpose.msra.mxu0 %v2321
  %2342 = vmatprep.subr.mxu0 0.0
  %2343 = vmatpush1.xpose.msra.mxu0 %v2324
  %2344 = vmatprep.subr.mxu0 0.0
  %2345 = vmatpush1.xpose.msra.mxu0 %v2327
  %2346 = vmatprep.subr.mxu0 0.0
  %2347 = vmatpush1.xpose.msra.mxu0 %v2330
  %2348 = vmatprep.subr.mxu0 0.0
  %2349 = vmatpush1.xpose.msra.mxu0 0.0
  %2350 = vmatprep.subr.mxu0 0.0
  %2351 = vmatpush1.xpose.msra.mxu0 0.0
  %2352 = vmatprep.subr.mxu0 0.0
  %2353 = vmatpush1.xpose.msra.mxu0 0.0
  %2354 = vmatprep.subr.mxu0 0.0
  %2355 = vmatpush1.xpose.msra.mxu0 0.0
  %2356 = vmatprep.subr.mxu0 0.0
  %2357 = vmatpush1.xpose.msra.mxu0 0.0
  %2358 = vmatprep.subr.mxu0 0.0
  %2359 = vmatpush1.xpose.msra.mxu0 0.0
  %2360 = vmatprep.subr.mxu0 0.0
  %2361 = vmatpush1.xpose.msra.mxu0 0.0
  %2362 = vmatprep.subr.mxu0 0.0
  %2363 = vmatpush1.xpose.msra.mxu0 0.0
  %2364 = vmatprep.subr.mxu0 0.0
  %2365 = vmatpush1.xpose.msra.mxu0 0.0
  %2366 = vmatprep.subr.mxu0 0.0
  %2367 = vmatpush1.xpose.msra.mxu0 0.0
  %2368 = vmatprep.subr.mxu0 0.0
  %2369 = vmatpush1.xpose.msra.mxu0 0.0
  %2370 = vmatprep.subr.mxu0 0.0
  %2371 = vmatpush1.xpose.msra.mxu0 0.0
  %2372 = vmatprep.subr.mxu0 0.0
  %2373 = vmatpush1.xpose.msra.mxu0 0.0
  %2374 = vmatprep.subr.mxu0 0.0
  %2375 = vmatpush1.xpose.msra.mxu0 0.0
  %2376 = vmatprep.subr.mxu0 0.0
  %2377 = vmatpush1.xpose.msra.mxu0 0.0
  %2378 = vmatprep.subr.mxu0 0.0
  %2379 = vmatpush1.xpose.msra.mxu0 0.0
  %2380 = vmatprep.subr.mxu0 0.0
  %2381 = vmatpush1.xpose.msra.mxu0 0.0
  %2382 = vmatprep.subr.mxu0 0.0
  %2383 = vmatpush1.xpose.msra.mxu0 0.0
  %2384 = vmatprep.subr.mxu0 0.0
  %2385 = vmatpush1.xpose.msra.mxu0 0.0
  %2386 = vmatprep.subr.mxu0 0.0
  %2387 = vmatpush1.xpose.msra.mxu0 0.0
  %2388 = vmatprep.subr.mxu0 0.0
  %2389 = vmatpush1.xpose.msra.mxu0 0.0
  %2390 = vmatprep.subr.mxu0 0.0
  %2391 = vmatpush1.xpose.msra.mxu0 0.0
  %2392 = vmatprep.subr.mxu0 0.0
  %2393 = vmatpush1.xpose.msra.mxu0 0.0
  %2394 = vmatprep.subr.mxu0 0.0
  %2395 = vmatpush1.xpose.msra.mxu0 0.0
  %2396 = vmatprep.mubr.f32.mxu0 0.0
  %2397 = vmatmul.mubr.f32.gmra.mrb[0].mxu0 %v2303
  %v2398 = vpop.f32.mrb[0].mxu0
  %v2399 = vadd.f32 %v1670, %v2398
  %v2400 = vpop.f32.mrb[0].mxu0
  %2401 = vmatprep.mubr.f32.mxu0 0.0
  %2402 = vmatmul.mubr.f32.gmra.mrb[0].mxu0 %v2306
  %v2403 = vpop.f32.mrb[0].mxu0
  %v2404 = vadd.f32 %v1671, %v2403
  %v2405 = vpop.f32.mrb[0].mxu0
  %2406 = vdwg.mxu0
  %v2408 = vsel %vm68, %v1287, 0
  %v2411 = vsel %vm68, %v1288, 0
  %v2414 = vsel %vm68, %v1598, 0
  %v2417 = vsel %vm68, %v1599, 0
  %v2420 = vsel %vm68, %v1600, 0
  %v2423 = vsel %vm68, %v1601, 0
  %v2426 = vsel %vm68, %v1602, 0
  %v2429 = vsel %vm68, %v1603, 0
  %v2432 = vsel %vm68, %v1604, 0
  %v2435 = vsel %vm68, %v1605, 0
  %2437 = vmatprep.subr.mxu0 0.0
  %2438 = vmatpush1.xpose.msra.mxu0 %v2414
  %2439 = vmatprep.subr.mxu0 0.0
  %2440 = vmatpush1.xpose.msra.mxu0 %v2417
  %2441 = vmatprep.subr.mxu0 0.0
  %2442 = vmatpush1.xpose.msra.mxu0 %v2420
  %2443 = vmatprep.subr.mxu0 0.0
  %2444 = vmatpush1.xpose.msra.mxu0 %v2423
  %2445 = vmatprep.subr.mxu0 0.0
  %2446 = vmatpush1.xpose.msra.mxu0 %v2426
  %2447 = vmatprep.subr.mxu0 0.0
  %2448 = vmatpush1.xpose.msra.mxu0 %v2429
  %2449 = vmatprep.subr.mxu0 0.0
  %2450 = vmatpush1.xpose.msra.mxu0 %v2432
  %2451 = vmatprep.subr.mxu0 0.0
  %2452 = vmatpush1.xpose.msra.mxu0 %v2435
  %2453 = vmatprep.subr.mxu0 0.0
  %2454 = vmatpush1.xpose.msra.mxu0 0.0
  %2455 = vmatprep.subr.mxu0 0.0
  %2456 = vmatpush1.xpose.msra.mxu0 0.0
  %2457 = vmatprep.subr.mxu0 0.0
  %2458 = vmatpush1.xpose.msra.mxu0 0.0
  %2459 = vmatprep.subr.mxu0 0.0
  %2460 = vmatpush1.xpose.msra.mxu0 0.0
  %2461 = vmatprep.subr.mxu0 0.0
  %2462 = vmatpush1.xpose.msra.mxu0 0.0
  %2463 = vmatprep.subr.mxu0 0.0
  %2464 = vmatpush1.xpose.msra.mxu0 0.0
  %2465 = vmatprep.subr.mxu0 0.0
  %2466 = vmatpush1.xpose.msra.mxu0 0.0
  %2467 = vmatprep.subr.mxu0 0.0
  %2468 = vmatpush1.xpose.msra.mxu0 0.0
  %2469 = vmatprep.subr.mxu0 0.0
  %2470 = vmatpush1.xpose.msra.mxu0 0.0
  %2471 = vmatprep.subr.mxu0 0.0
  %2472 = vmatpush1.xpose.msra.mxu0 0.0
  %2473 = vmatprep.subr.mxu0 0.0
  %2474 = vmatpush1.xpose.msra.mxu0 0.0
  %2475 = vmatprep.subr.mxu0 0.0
  %2476 = vmatpush1.xpose.msra.mxu0 0.0
  %2477 = vmatprep.subr.mxu0 0.0
  %2478 = vmatpush1.xpose.msra.mxu0 0.0
  %2479 = vmatprep.subr.mxu0 0.0
  %2480 = vmatpush1.xpose.msra.mxu0 0.0
  %2481 = vmatprep.subr.mxu0 0.0
  %2482 = vmatpush1.xpose.msra.mxu0 0.0
  %2483 = vmatprep.subr.mxu0 0.0
  %2484 = vmatpush1.xpose.msra.mxu0 0.0
  %2485 = vmatprep.subr.mxu0 0.0
  %2486 = vmatpush1.xpose.msra.mxu0 0.0
  %2487 = vmatprep.subr.mxu0 0.0
  %2488 = vmatpush1.xpose.msra.mxu0 0.0
  %2489 = vmatprep.subr.mxu0 0.0
  %2490 = vmatpush1.xpose.msra.mxu0 0.0
  %2491 = vmatprep.subr.mxu0 0.0
  %2492 = vmatpush1.xpose.msra.mxu0 0.0
  %2493 = vmatprep.subr.mxu0 0.0
  %2494 = vmatpush1.xpose.msra.mxu0 0.0
  %2495 = vmatprep.subr.mxu0 0.0
  %2496 = vmatpush1.xpose.msra.mxu0 0.0
  %2497 = vmatprep.subr.mxu0 0.0
  %2498 = vmatpush1.xpose.msra.mxu0 0.0
  %2499 = vmatprep.subr.mxu0 0.0
  %2500 = vmatpush1.xpose.msra.mxu0 0.0
  %2501 = vmatprep.mubr.f32.mxu0 0.0
  %2502 = vmatmul.mubr.f32.gmra.mrb[0].mxu0 %v2408
  %v2503 = vpop.f32.mrb[0].mxu0
  %v2504 = vadd.f32 %v1670, %v2503
  %v2505 = vpop.f32.mrb[0].mxu0
  %2506 = vmatprep.mubr.f32.mxu0 0.0
  %2507 = vmatmul.mubr.f32.gmra.mrb[0].mxu0 %v2411
  %v2508 = vpop.f32.mrb[0].mxu0
  %v2509 = vadd.f32 %v1671, %v2508
  %v2510 = vpop.f32.mrb[0].mxu0
  %2511 = vdwg.mxu0
  %vm2512 = vcmask 523264
  %v2513 = vsel %vm2512, %v1769, -inf
  %2514 = vmax.xlane.f32.xlu0 %v2513
  %v2515 = vpop.xlane.xlu0 %2514
  %v2516 = vsel %vm2512, %v1774, -inf
  %2517 = vmax.xlane.f32.xlu0 %v2516
  %v2518 = vpop.xlane.xlu0 %2517
  %v2519 = vsel %vm2512, %v1874, -inf
  %2520 = vmax.xlane.f32.xlu0 %v2519
  %v2521 = vpop.xlane.xlu0 %2520
  %v2522 = vsel %vm2512, %v1879, -inf
  %2523 = vmax.xlane.f32.xlu0 %v2522
  %v2524 = vpop.xlane.xlu0 %2523
  %v2525 = vsel %vm2512, %v1979, -inf
  %2526 = vmax.xlane.f32.xlu0 %v2525
  %v2527 = vpop.xlane.xlu0 %2526
  %v2528 = vsel %vm2512, %v1984, -inf
  %2529 = vmax.xlane.f32.xlu0 %v2528
  %v2530 = vpop.xlane.xlu0 %2529
  %v2531 = vsel %vm2512, %v2084, -inf
  %2532 = vmax.xlane.f32.xlu0 %v2531
  %v2533 = vpop.xlane.xlu0 %2532
  %v2534 = vsel %vm2512, %v2089, -inf
  %2535 = vmax.xlane.f32.xlu0 %v2534
  %v2536 = vpop.xlane.xlu0 %2535
  %v2537 = vsel %vm2512, %v2189, -inf
  %2538 = vmax.xlane.f32.xlu0 %v2537
  %v2539 = vpop.xlane.xlu0 %2538
  %v2540 = vsel %vm2512, %v2194, -inf
  %2541 = vmax.xlane.f32.xlu0 %v2540
  %v2542 = vpop.xlane.xlu0 %2541
  %v2543 = vsel %vm2512, %v2294, -inf
  %2544 = vmax.xlane.f32.xlu0 %v2543
  %v2545 = vpop.xlane.xlu0 %2544
  %v2546 = vsel %vm2512, %v2299, -inf
  %2547 = vmax.xlane.f32.xlu0 %v2546
  %v2548 = vpop.xlane.xlu0 %2547
  %v2549 = vsel %vm2512, %v2399, -inf
  %2550 = vmax.xlane.f32.xlu0 %v2549
  %v2551 = vpop.xlane.xlu0 %2550
  %v2552 = vsel %vm2512, %v2404, -inf
  %2553 = vmax.xlane.f32.xlu0 %v2552
  %v2554 = vpop.xlane.xlu0 %2553
  %v2555 = vsel %vm2512, %v2504, -inf
  %2556 = vmax.xlane.f32.xlu0 %v2555
  %v2557 = vpop.xlane.xlu0 %2556
  %v2558 = vsel %vm2512, %v2509, -inf
  %2559 = vmax.xlane.f32.xlu0 %v2558
  %v2560 = vpop.xlane.xlu0 %2559
  %v2561 = vsub.f32 %v1769, %v2515
  %v2562 = vsub.f32 %v1774, %v2518
  %v2563 = vsub.f32 %v1874, %v2521
  %v2564 = vsub.f32 %v1879, %v2524
  %v2565 = vsub.f32 %v1979, %v2527
  %v2566 = vsub.f32 %v1984, %v2530
  %v2567 = vsub.f32 %v2084, %v2533
  %v2568 = vsub.f32 %v2089, %v2536
  %v2569 = vsub.f32 %v2189, %v2539
  %v2570 = vsub.f32 %v2194, %v2542
  %v2571 = vsub.f32 %v2294, %v2545
  %v2572 = vsub.f32 %v2299, %v2548
  %v2573 = vsub.f32 %v2399, %v2551
  %v2574 = vsub.f32 %v2404, %v2554
  %v2575 = vsub.f32 %v2504, %v2557
  %v2576 = vsub.f32 %v2509, %v2560
  %v2577 = vmul.f32 %v2561, 1.442695
  %v2578 = vpow.pop %v2577
  %v2579 = vmul.f32 %v2562, 1.442695
  %v2580 = vpow.pop %v2579
  %v2581 = vmul.f32 %v2563, 1.442695
  %v2582 = vpow.pop %v2581
  %v2583 = vmul.f32 %v2564, 1.442695
  %v2584 = vpow.pop %v2583
  %v2585 = vmul.f32 %v2565, 1.442695
  %v2586 = vpow.pop %v2585
  %v2587 = vmul.f32 %v2566, 1.442695
  %v2588 = vpow.pop %v2587
  %v2589 = vmul.f32 %v2567, 1.442695
  %v2590 = vpow.pop %v2589
  %v2591 = vmul.f32 %v2568, 1.442695
  %v2592 = vpow.pop %v2591
  %v2593 = vmul.f32 %v2569, 1.442695
  %v2594 = vpow.pop %v2593
  %v2595 = vmul.f32 %v2570, 1.442695
  %v2596 = vpow.pop %v2595
  %v2597 = vmul.f32 %v2571, 1.442695
  %v2598 = vpow.pop %v2597
  %v2599 = vmul.f32 %v2572, 1.442695
  %v2600 = vpow.pop %v2599
  %v2601 = vmul.f32 %v2573, 1.442695
  %v2602 = vpow.pop %v2601
  %v2603 = vmul.f32 %v2574, 1.442695
  %v2604 = vpow.pop %v2603
  %v2605 = vmul.f32 %v2575, 1.442695
  %v2606 = vpow.pop %v2605
  %v2607 = vmul.f32 %v2576, 1.442695
  %v2608 = vpow.pop %v2607
  %v2609 = vld [vmem:[%s8] sm:$0xf]
  %v2611 = vsel %vm2512, %v2578, 0
  %v2614 = vsel %vm2512, %v2580, 0
  %v2617 = vsel %vm2512, %v2582, 0
  %v2620 = vsel %vm2512, %v2584, 0
  %v2623 = vsel %vm2512, %v2586, 0
  %v2626 = vsel %vm2512, %v2588, 0
  %v2629 = vsel %vm2512, %v2590, 0
  %v2632 = vsel %vm2512, %v2592, 0
  %v2635 = vsel %vm2512, %v2594, 0
  %v2638 = vsel %vm2512, %v2596, 0
  %v2641 = vsel %vm2512, %v2598, 0
  %v2644 = vsel %vm2512, %v2600, 0
  %v2647 = vsel %vm2512, %v2602, 0
  %v2650 = vsel %vm2512, %v2604, 0
  %v2653 = vsel %vm2512, %v2606, 0
  %v2656 = vsel %vm2512, %v2608, 0
  %v2659 = vsel %vm2512, %v2609, 0
  %2661 = vmatprep.subr.mxu0 0.0
  %2662 = vmatpush1.xpose.msra.mxu0 %v2659
  %2663 = vmatprep.subr.mxu0 0.0
  %2664 = vmatpush1.xpose.msra.mxu0 0.0
  %2665 = vmatprep.subr.mxu0 0.0
  %2666 = vmatpush1.xpose.msra.mxu0 0.0
  %2667 = vmatprep.subr.mxu0 0.0
  %2668 = vmatpush1.xpose.msra.mxu0 0.0
  %2669 = vmatprep.subr.mxu0 0.0
  %2670 = vmatpush1.xpose.msra.mxu0 0.0
  %2671 = vmatprep.subr.mxu0 0.0
  %2672 = vmatpush1.xpose.msra.mxu0 0.0
  %2673 = vmatprep.subr.mxu0 0.0
  %2674 = vmatpush1.xpose.msra.mxu0 0.0
  %2675 = vmatprep.subr.mxu0 0.0
  %2676 = vmatpush1.xpose.msra.mxu0 0.0
  %2677 = vmatprep.subr.mxu0 0.0
  %2678 = vmatpush1.xpose.msra.mxu0 0.0
  %2679 = vmatprep.subr.mxu0 0.0
  %2680 = vmatpush1.xpose.msra.mxu0 0.0
  %2681 = vmatprep.subr.mxu0 0.0
  %2682 = vmatpush1.xpose.msra.mxu0 0.0
  %2683 = vmatprep.subr.mxu0 0.0
  %2684 = vmatpush1.xpose.msra.mxu0 0.0
  %2685 = vmatprep.subr.mxu0 0.0
  %2686 = vmatpush1.xpose.msra.mxu0 0.0
  %2687 = vmatprep.subr.mxu0 0.0
  %2688 = vmatpush1.xpose.msra.mxu0 0.0
  %2689 = vmatprep.subr.mxu0 0.0
  %2690 = vmatpush1.xpose.msra.mxu0 0.0
  %2691 = vmatprep.subr.mxu0 0.0
  %2692 = vmatpush1.xpose.msra.mxu0 0.0
  %2693 = vmatprep.subr.mxu0 0.0
  %2694 = vmatpush1.xpose.msra.mxu0 0.0
  %2695 = vmatprep.subr.mxu0 0.0
  %2696 = vmatpush1.xpose.msra.mxu0 0.0
  %2697 = vmatprep.subr.mxu0 0.0
  %2698 = vmatpush1.xpose.msra.mxu0 0.0
  %2699 = vmatprep.subr.mxu0 0.0
  %2700 = vmatpush1.xpose.msra.mxu0 0.0
  %2701 = vmatprep.subr.mxu0 0.0
  %2702 = vmatpush1.xpose.msra.mxu0 0.0
  %2703 = vmatprep.subr.mxu0 0.0
  %2704 = vmatpush1.xpose.msra.mxu0 0.0
  %2705 = vmatprep.subr.mxu0 0.0
  %2706 = vmatpush1.xpose.msra.mxu0 0.0
  %2707 = vmatprep.subr.mxu0 0.0
  %2708 = vmatpush1.xpose.msra.mxu0 0.0
  %2709 = vmatprep.subr.mxu0 0.0
  %2710 = vmatpush1.xpose.msra.mxu0 0.0
  %2711 = vmatprep.subr.mxu0 0.0
  %2712 = vmatpush1.xpose.msra.mxu0 0.0
  %2713 = vmatprep.subr.mxu0 0.0
  %2714 = vmatpush1.xpose.msra.mxu0 0.0
  %2715 = vmatprep.subr.mxu0 0.0
  %2716 = vmatpush1.xpose.msra.mxu0 0.0
  %2717 = vmatprep.subr.mxu0 0.0
  %2718 = vmatpush1.xpose.msra.mxu0 0.0
  %2719 = vmatprep.subr.mxu0 0.0
  %2720 = vmatpush1.xpose.msra.mxu0 0.0
  %2721 = vmatprep.subr.mxu0 0.0
  %2722 = vmatpush1.xpose.msra.mxu0 0.0
  %2723 = vmatprep.subr.mxu0 0.0
  %2724 = vmatpush1.xpose.msra.mxu0 0.0
  %2725 = vmatprep.mubr.f32.mxu0 0.0
  %2726 = vmatmul.mubr.f32.gmra.mrb[0].mxu0 %v2611
  %v2727 = vpop.f32.mrb[0].mxu0
  %v2728 = vadd.f32 0.0, %v2727
  %v2729 = vpop.f32.mrb[0].mxu0
  %2730 = vmatprep.mubr.f32.mxu0 0.0
  %2731 = vmatmul.mubr.f32.gmra.mrb[0].mxu0 %v2614
  %v2732 = vpop.f32.mrb[0].mxu0
  %v2733 = vadd.f32 0.0, %v2732
  %v2734 = vpop.f32.mrb[0].mxu0
  %2735 = vmatprep.mubr.f32.mxu0 0.0
  %2736 = vmatmul.mubr.f32.gmra.mrb[0].mxu0 %v2617
  %v2737 = vpop.f32.mrb[0].mxu0
  %v2738 = vadd.f32 0.0, %v2737
  %v2739 = vpop.f32.mrb[0].mxu0
  %2740 = vmatprep.mubr.f32.mxu0 0.0
  %2741 = vmatmul.mubr.f32.gmra.mrb[0].mxu0 %v2620
  %v2742 = vpop.f32.mrb[0].mxu0
  %v2743 = vadd.f32 0.0, %v2742
  %v2744 = vpop.f32.mrb[0].mxu0
  %2745 = vmatprep.mubr.f32.mxu0 0.0
  %2746 = vmatmul.mubr.f32.gmra.mrb[0].mxu0 %v2623
  %v2747 = vpop.f32.mrb[0].mxu0
  %v2748 = vadd.f32 0.0, %v2747
  %v2749 = vpop.f32.mrb[0].mxu0
  %2750 = vmatprep.mubr.f32.mxu0 0.0
  %2751 = vmatmul.mubr.f32.gmra.mrb[0].mxu0 %v2626
  %v2752 = vpop.f32.mrb[0].mxu0
  %v2753 = vadd.f32 0.0, %v2752
  %v2754 = vpop.f32.mrb[0].mxu0
  %2755 = vmatprep.mubr.f32.mxu0 0.0
  %2756 = vmatmul.mubr.f32.gmra.mrb[0].mxu0 %v2629
  %v2757 = vpop.f32.mrb[0].mxu0
  %v2758 = vadd.f32 0.0, %v2757
  %v2759 = vpop.f32.mrb[0].mxu0
  %2760 = vmatprep.mubr.f32.mxu0 0.0
  %2761 = vmatmul.mubr.f32.gmra.mrb[0].mxu0 %v2632
  %v2762 = vpop.f32.mrb[0].mxu0
  %v2763 = vadd.f32 0.0, %v2762
  %v2764 = vpop.f32.mrb[0].mxu0
  %2765 = vmatprep.mubr.f32.mxu0 0.0
  %2766 = vmatmul.mubr.f32.gmra.mrb[0].mxu0 %v2635
  %v2767 = vpop.f32.mrb[0].mxu0
  %v2768 = vadd.f32 0.0, %v2767
  %v2769 = vpop.f32.mrb[0].mxu0
  %2770 = vmatprep.mubr.f32.mxu0 0.0
  %2771 = vmatmul.mubr.f32.gmra.mrb[0].mxu0 %v2638
  %v2772 = vpop.f32.mrb[0].mxu0
  %v2773 = vadd.f32 0.0, %v2772
  %v2774 = vpop.f32.mrb[0].mxu0
  %2775 = vmatprep.mubr.f32.mxu0 0.0
  %2776 = vmatmul.mubr.f32.gmra.mrb[0].mxu0 %v2641
  %v2777 = vpop.f32.mrb[0].mxu0
  %v2778 = vadd.f32 0.0, %v2777
  %v2779 = vpop.f32.mrb[0].mxu0
  %2780 = vmatprep.mubr.f32.mxu0 0.0
  %2781 = vmatmul.mubr.f32.gmra.mrb[0].mxu0 %v2644
  %v2782 = vpop.f32.mrb[0].mxu0
  %v2783 = vadd.f32 0.0, %v2782
  %v2784 = vpop.f32.mrb[0].mxu0
  %2785 = vmatprep.mubr.f32.mxu0 0.0
  %2786 = vmatmul.mubr.f32.gmra.mrb[0].mxu0 %v2647
  %v2787 = vpop.f32.mrb[0].mxu0
  %v2788 = vadd.f32 0.0, %v2787
  %v2789 = vpop.f32.mrb[0].mxu0
  %2790 = vmatprep.mubr.f32.mxu0 0.0
  %2791 = vmatmul.mubr.f32.gmra.mrb[0].mxu0 %v2650
  %v2792 = vpop.f32.mrb[0].mxu0
  %v2793 = vadd.f32 0.0, %v2792
  %v2794 = vpop.f32.mrb[0].mxu0
  %2795 = vmatprep.mubr.f32.mxu0 0.0
  %2796 = vmatmul.mubr.f32.gmra.mrb[0].mxu0 %v2653
  %v2797 = vpop.f32.mrb[0].mxu0
  %v2798 = vadd.f32 0.0, %v2797
  %v2799 = vpop.f32.mrb[0].mxu0
  %2800 = vmatprep.mubr.f32.mxu0 0.0
  %2801 = vmatmul.mubr.f32.gmra.mrb[0].mxu0 %v2656
  %v2802 = vpop.f32.mrb[0].mxu0
  %v2803 = vadd.f32 0.0, %v2802
  %v2804 = vpop.f32.mrb[0].mxu0
  %2805 = vdwg.mxu0
  %v2806 = vrcp.pop %v2728
  %v2807 = vrcp.pop %v2733
  %v2808 = vrcp.pop %v2738
  %v2809 = vrcp.pop %v2743
  %v2810 = vrcp.pop %v2748
  %v2811 = vrcp.pop %v2753
  %v2812 = vrcp.pop %v2758
  %v2813 = vrcp.pop %v2763
  %v2814 = vrcp.pop %v2768
  %v2815 = vrcp.pop %v2773
  %v2816 = vrcp.pop %v2778
  %v2817 = vrcp.pop %v2783
  %v2818 = vrcp.pop %v2788
  %v2819 = vrcp.pop %v2793
  %v2820 = vrcp.pop %v2798
  %v2821 = vrcp.pop %v2803
  %2822 = vmatprep.subr.mxu0 0.0
  %2823 = vmatpush1.msra.mxu0 %v1606
  %2824 = vmatprep.subr.mxu0 0.0
  %2825 = vmatpush1.msra.mxu0 %v1607
  %2826 = vmatprep.subr.mxu0 0.0
  %2827 = vmatpush1.msra.mxu0 %v1608
  %2828 = vmatprep.subr.mxu0 0.0
  %2829 = vmatpush1.msra.mxu0 %v1609
  %2830 = vmatprep.subr.mxu0 0.0
  %2831 = vmatpush1.msra.mxu0 %v1610
  %2832 = vmatprep.subr.mxu0 0.0
  %2833 = vmatpush1.msra.mxu0 %v1611
  %2834 = vmatprep.subr.mxu0 0.0
  %2835 = vmatpush1.msra.mxu0 %v1612
  %2836 = vmatprep.subr.mxu0 0.0
  %2837 = vmatpush1.msra.mxu0 %v1613
  %2838 = vmatprep.subr.mxu0 0.0
  %2839 = vmatpush1.msra.mxu0 0.0
  %2840 = vmatprep.subr.mxu0 0.0
  %2841 = vmatpush1.msra.mxu0 0.0
  %2842 = vmatprep.subr.mxu0 0.0
  %2843 = vmatpush1.msra.mxu0 0.0
  %2844 = vmatprep.subr.mxu0 0.0
  %2845 = vmatpush1.msra.mxu0 0.0
  %2846 = vmatprep.subr.mxu0 0.0
  %2847 = vmatpush1.msra.mxu0 0.0
  %2848 = vmatprep.subr.mxu0 0.0
  %2849 = vmatpush1.msra.mxu0 0.0
  %2850 = vmatprep.subr.mxu0 0.0
  %2851 = vmatpush1.msra.mxu0 0.0
  %2852 = vmatprep.subr.mxu0 0.0
  %2853 = vmatpush1.msra.mxu0 0.0
  %2854 = vmatprep.subr.mxu0 0.0
  %2855 = vmatpush1.msra.mxu0 0.0
  %2856 = vmatprep.subr.mxu0 0.0
  %2857 = vmatpush1.msra.mxu0 0.0
  %2858 = vmatprep.subr.mxu0 0.0
  %2859 = vmatpush1.msra.mxu0 0.0
  %2860 = vmatprep.subr.mxu0 0.0
  %2861 = vmatpush1.msra.mxu0 0.0
  %2862 = vmatprep.subr.mxu0 0.0
  %2863 = vmatpush1.msra.mxu0 0.0
  %2864 = vmatprep.subr.mxu0 0.0
  %2865 = vmatpush1.msra.mxu0 0.0
  %2866 = vmatprep.subr.mxu0 0.0
  %2867 = vmatpush1.msra.mxu0 0.0
  %2868 = vmatprep.subr.mxu0 0.0
  %2869 = vmatpush1.msra.mxu0 0.0
  %2870 = vmatprep.subr.mxu0 0.0
  %2871 = vmatpush1.msra.mxu0 0.0
  %2872 = vmatprep.subr.mxu0 0.0
  %2873 = vmatpush1.msra.mxu0 0.0
  %2874 = vmatprep.subr.mxu0 0.0
  %2875 = vmatpush1.msra.mxu0 0.0
  %2876 = vmatprep.subr.mxu0 0.0
  %2877 = vmatpush1.msra.mxu0 0.0
  %2878 = vmatprep.subr.mxu0 0.0
  %2879 = vmatpush1.msra.mxu0 0.0
  %2880 = vmatprep.subr.mxu0 0.0
  %2881 = vmatpush1.msra.mxu0 0.0
  %2882 = vmatprep.subr.mxu0 0.0
  %2883 = vmatpush1.msra.mxu0 0.0
  %2884 = vmatprep.subr.mxu0 0.0
  %2885 = vmatpush1.msra.mxu0 0.0
  %2886 = vmatprep.mubr.f32.mxu0 0.0
  %2887 = vmatmul.mubr.f32.gmra.mrb[0].mxu0 %v2611
  %v2888 = vpop.f32.mrb[0].mxu0
  %v2889 = vadd.f32 0.0, %v2888
  %v2890 = vpop.f32.mrb[0].mxu0
  %2891 = vmatprep.mubr.f32.mxu0 0.0
  %2892 = vmatmul.mubr.f32.gmra.mrb[0].mxu0 %v2614
  %v2893 = vpop.f32.mrb[0].mxu0
  %v2894 = vadd.f32 0.0, %v2893
  %v2895 = vpop.f32.mrb[0].mxu0
  %2896 = vdwg.mxu0
  %2897 = vmatprep.subr.mxu0 0.0
  %2898 = vmatpush1.msra.mxu0 %v1614
  %2899 = vmatprep.subr.mxu0 0.0
  %2900 = vmatpush1.msra.mxu0 %v1615
  %2901 = vmatprep.subr.mxu0 0.0
  %2902 = vmatpush1.msra.mxu0 %v1616
  %2903 = vmatprep.subr.mxu0 0.0
  %2904 = vmatpush1.msra.mxu0 %v1617
  %2905 = vmatprep.subr.mxu0 0.0
  %2906 = vmatpush1.msra.mxu0 %v1618
  %2907 = vmatprep.subr.mxu0 0.0
  %2908 = vmatpush1.msra.mxu0 %v1619
  %2909 = vmatprep.subr.mxu0 0.0
  %2910 = vmatpush1.msra.mxu0 %v1620
  %2911 = vmatprep.subr.mxu0 0.0
  %2912 = vmatpush1.msra.mxu0 %v1621
  %2913 = vmatprep.subr.mxu0 0.0
  %2914 = vmatpush1.msra.mxu0 0.0
  %2915 = vmatprep.subr.mxu0 0.0
  %2916 = vmatpush1.msra.mxu0 0.0
  %2917 = vmatprep.subr.mxu0 0.0
  %2918 = vmatpush1.msra.mxu0 0.0
  %2919 = vmatprep.subr.mxu0 0.0
  %2920 = vmatpush1.msra.mxu0 0.0
  %2921 = vmatprep.subr.mxu0 0.0
  %2922 = vmatpush1.msra.mxu0 0.0
  %2923 = vmatprep.subr.mxu0 0.0
  %2924 = vmatpush1.msra.mxu0 0.0
  %2925 = vmatprep.subr.mxu0 0.0
  %2926 = vmatpush1.msra.mxu0 0.0
  %2927 = vmatprep.subr.mxu0 0.0
  %2928 = vmatpush1.msra.mxu0 0.0
  %2929 = vmatprep.subr.mxu0 0.0
  %2930 = vmatpush1.msra.mxu0 0.0
  %2931 = vmatprep.subr.mxu0 0.0
  %2932 = vmatpush1.msra.mxu0 0.0
  %2933 = vmatprep.subr.mxu0 0.0
  %2934 = vmatpush1.msra.mxu0 0.0
  %2935 = vmatprep.subr.mxu0 0.0
  %2936 = vmatpush1.msra.mxu0 0.0
  %2937 = vmatprep.subr.mxu0 0.0
  %2938 = vmatpush1.msra.mxu0 0.0
  %2939 = vmatprep.subr.mxu0 0.0
  %2940 = vmatpush1.msra.mxu0 0.0
  %2941 = vmatprep.subr.mxu0 0.0
  %2942 = vmatpush1.msra.mxu0 0.0
  %2943 = vmatprep.subr.mxu0 0.0
  %2944 = vmatpush1.msra.mxu0 0.0
  %2945 = vmatprep.subr.mxu0 0.0
  %2946 = vmatpush1.msra.mxu0 0.0
  %2947 = vmatprep.subr.mxu0 0.0
  %2948 = vmatpush1.msra.mxu0 0.0
  %2949 = vmatprep.subr.mxu0 0.0
  %2950 = vmatpush1.msra.mxu0 0.0
  %2951 = vmatprep.subr.mxu0 0.0
  %2952 = vmatpush1.msra.mxu0 0.0
  %2953 = vmatprep.subr.mxu0 0.0
  %2954 = vmatpush1.msra.mxu0 0.0
  %2955 = vmatprep.subr.mxu0 0.0
  %2956 = vmatpush1.msra.mxu0 0.0
  %2957 = vmatprep.subr.mxu0 0.0
  %2958 = vmatpush1.msra.mxu0 0.0
  %2959 = vmatprep.subr.mxu0 0.0
  %2960 = vmatpush1.msra.mxu0 0.0
  %2961 = vmatprep.mubr.f32.mxu0 0.0
  %2962 = vmatmul.mubr.f32.gmra.mrb[0].mxu0 %v2617
  %v2963 = vpop.f32.mrb[0].mxu0
  %v2964 = vadd.f32 0.0, %v2963
  %v2965 = vpop.f32.mrb[0].mxu0
  %2966 = vmatprep.mubr.f32.mxu0 0.0
  %2967 = vmatmul.mubr.f32.gmra.mrb[0].mxu0 %v2620
  %v2968 = vpop.f32.mrb[0].mxu0
  %v2969 = vadd.f32 0.0, %v2968
  %v2970 = vpop.f32.mrb[0].mxu0
  %2971 = vdwg.mxu0
  %2972 = vmatprep.subr.mxu0 0.0
  %2973 = vmatpush1.msra.mxu0 %v1622
  %2974 = vmatprep.subr.mxu0 0.0
  %2975 = vmatpush1.msra.mxu0 %v1623
  %2976 = vmatprep.subr.mxu0 0.0
  %2977 = vmatpush1.msra.mxu0 %v1624
  %2978 = vmatprep.subr.mxu0 0.0
  %2979 = vmatpush1.msra.mxu0 %v1625
  %2980 = vmatprep.subr.mxu0 0.0
  %2981 = vmatpush1.msra.mxu0 %v1626
  %2982 = vmatprep.subr.mxu0 0.0
  %2983 = vmatpush1.msra.mxu0 %v1627
  %2984 = vmatprep.subr.mxu0 0.0
  %2985 = vmatpush1.msra.mxu0 %v1628
  %2986 = vmatprep.subr.mxu0 0.0
  %2987 = vmatpush1.msra.mxu0 %v1629
  %2988 = vmatprep.subr.mxu0 0.0
  %2989 = vmatpush1.msra.mxu0 0.0
  %2990 = vmatprep.subr.mxu0 0.0
  %2991 = vmatpush1.msra.mxu0 0.0
  %2992 = vmatprep.subr.mxu0 0.0
  %2993 = vmatpush1.msra.mxu0 0.0
  %2994 = vmatprep.subr.mxu0 0.0
  %2995 = vmatpush1.msra.mxu0 0.0
  %2996 = vmatprep.subr.mxu0 0.0
  %2997 = vmatpush1.msra.mxu0 0.0
  %2998 = vmatprep.subr.mxu0 0.0
  %2999 = vmatpush1.msra.mxu0 0.0
  %3000 = vmatprep.subr.mxu0 0.0
  %3001 = vmatpush1.msra.mxu0 0.0
  %3002 = vmatprep.subr.mxu0 0.0
  %3003 = vmatpush1.msra.mxu0 0.0
  %3004 = vmatprep.subr.mxu0 0.0
  %3005 = vmatpush1.msra.mxu0 0.0
  %3006 = vmatprep.subr.mxu0 0.0
  %3007 = vmatpush1.msra.mxu0 0.0
  %3008 = vmatprep.subr.mxu0 0.0
  %3009 = vmatpush1.msra.mxu0 0.0
  %3010 = vmatprep.subr.mxu0 0.0
  %3011 = vmatpush1.msra.mxu0 0.0
  %3012 = vmatprep.subr.mxu0 0.0
  %3013 = vmatpush1.msra.mxu0 0.0
  %3014 = vmatprep.subr.mxu0 0.0
  %3015 = vmatpush1.msra.mxu0 0.0
  %3016 = vmatprep.subr.mxu0 0.0
  %3017 = vmatpush1.msra.mxu0 0.0
  %3018 = vmatprep.subr.mxu0 0.0
  %3019 = vmatpush1.msra.mxu0 0.0
  %3020 = vmatprep.subr.mxu0 0.0
  %3021 = vmatpush1.msra.mxu0 0.0
  %3022 = vmatprep.subr.mxu0 0.0
  %3023 = vmatpush1.msra.mxu0 0.0
  %3024 = vmatprep.subr.mxu0 0.0
  %3025 = vmatpush1.msra.mxu0 0.0
  %3026 = vmatprep.subr.mxu0 0.0
  %3027 = vmatpush1.msra.mxu0 0.0
  %3028 = vmatprep.subr.mxu0 0.0
  %3029 = vmatpush1.msra.mxu0 0.0
  %3030 = vmatprep.subr.mxu0 0.0
  %3031 = vmatpush1.msra.mxu0 0.0
  %3032 = vmatprep.subr.mxu0 0.0
  %3033 = vmatpush1.msra.mxu0 0.0
  %3034 = vmatprep.subr.mxu0 0.0
  %3035 = vmatpush1.msra.mxu0 0.0
  %3036 = vmatprep.mubr.f32.mxu0 0.0
  %3037 = vmatmul.mubr.f32.gmra.mrb[0].mxu0 %v2623
  %v3038 = vpop.f32.mrb[0].mxu0
  %v3039 = vadd.f32 0.0, %v3038
  %v3040 = vpop.f32.mrb[0].mxu0
  %3041 = vmatprep.mubr.f32.mxu0 0.0
  %3042 = vmatmul.mubr.f32.gmra.mrb[0].mxu0 %v2626
  %v3043 = vpop.f32.mrb[0].mxu0
  %v3044 = vadd.f32 0.0, %v3043
  %v3045 = vpop.f32.mrb[0].mxu0
  %3046 = vdwg.mxu0
  %3047 = vmatprep.subr.mxu0 0.0
  %3048 = vmatpush1.msra.mxu0 %v1630
  %3049 = vmatprep.subr.mxu0 0.0
  %3050 = vmatpush1.msra.mxu0 %v1631
  %3051 = vmatprep.subr.mxu0 0.0
  %3052 = vmatpush1.msra.mxu0 %v1632
  %3053 = vmatprep.subr.mxu0 0.0
  %3054 = vmatpush1.msra.mxu0 %v1633
  %3055 = vmatprep.subr.mxu0 0.0
  %3056 = vmatpush1.msra.mxu0 %v1634
  %3057 = vmatprep.subr.mxu0 0.0
  %3058 = vmatpush1.msra.mxu0 %v1635
  %3059 = vmatprep.subr.mxu0 0.0
  %3060 = vmatpush1.msra.mxu0 %v1636
  %3061 = vmatprep.subr.mxu0 0.0
  %3062 = vmatpush1.msra.mxu0 %v1637
  %3063 = vmatprep.subr.mxu0 0.0
  %3064 = vmatpush1.msra.mxu0 0.0
  %3065 = vmatprep.subr.mxu0 0.0
  %3066 = vmatpush1.msra.mxu0 0.0
  %3067 = vmatprep.subr.mxu0 0.0
  %3068 = vmatpush1.msra.mxu0 0.0
  %3069 = vmatprep.subr.mxu0 0.0
  %3070 = vmatpush1.msra.mxu0 0.0
  %3071 = vmatprep.subr.mxu0 0.0
  %3072 = vmatpush1.msra.mxu0 0.0
  %3073 = vmatprep.subr.mxu0 0.0
  %3074 = vmatpush1.msra.mxu0 0.0
  %3075 = vmatprep.subr.mxu0 0.0
  %3076 = vmatpush1.msra.mxu0 0.0
  %3077 = vmatprep.subr.mxu0 0.0
  %3078 = vmatpush1.msra.mxu0 0.0
  %3079 = vmatprep.subr.mxu0 0.0
  %3080 = vmatpush1.msra.mxu0 0.0
  %3081 = vmatprep.subr.mxu0 0.0
  %3082 = vmatpush1.msra.mxu0 0.0
  %3083 = vmatprep.subr.mxu0 0.0
  %3084 = vmatpush1.msra.mxu0 0.0
  %3085 = vmatprep.subr.mxu0 0.0
  %3086 = vmatpush1.msra.mxu0 0.0
  %3087 = vmatprep.subr.mxu0 0.0
  %3088 = vmatpush1.msra.mxu0 0.0
  %3089 = vmatprep.subr.mxu0 0.0
  %3090 = vmatpush1.msra.mxu0 0.0
  %3091 = vmatprep.subr.mxu0 0.0
  %3092 = vmatpush1.msra.mxu0 0.0
  %3093 = vmatprep.subr.mxu0 0.0
  %3094 = vmatpush1.msra.mxu0 0.0
  %3095 = vmatprep.subr.mxu0 0.0
  %3096 = vmatpush1.msra.mxu0 0.0
  %3097 = vmatprep.subr.mxu0 0.0
  %3098 = vmatpush1.msra.mxu0 0.0
  %3099 = vmatprep.subr.mxu0 0.0
  %3100 = vmatpush1.msra.mxu0 0.0
  %3101 = vmatprep.subr.mxu0 0.0
  %3102 = vmatpush1.msra.mxu0 0.0
  %3103 = vmatprep.subr.mxu0 0.0
  %3104 = vmatpush1.msra.mxu0 0.0
  %3105 = vmatprep.subr.mxu0 0.0
  %3106 = vmatpush1.msra.mxu0 0.0
  %3107 = vmatprep.subr.mxu0 0.0
  %3108 = vmatpush1.msra.mxu0 0.0
  %3109 = vmatprep.subr.mxu0 0.0
  %3110 = vmatpush1.msra.mxu0 0.0
  %3111 = vmatprep.mubr.f32.mxu0 0.0
  %3112 = vmatmul.mubr.f32.gmra.mrb[0].mxu0 %v2629
  %v3113 = vpop.f32.mrb[0].mxu0
  %v3114 = vadd.f32 0.0, %v3113
  %v3115 = vpop.f32.mrb[0].mxu0
  %3116 = vmatprep.mubr.f32.mxu0 0.0
  %3117 = vmatmul.mubr.f32.gmra.mrb[0].mxu0 %v2632
  %v3118 = vpop.f32.mrb[0].mxu0
  %v3119 = vadd.f32 0.0, %v3118
  %v3120 = vpop.f32.mrb[0].mxu0
  %3121 = vdwg.mxu0
  %3122 = vmatprep.subr.mxu0 0.0
  %3123 = vmatpush1.msra.mxu0 %v1638
  %3124 = vmatprep.subr.mxu0 0.0
  %3125 = vmatpush1.msra.mxu0 %v1639
  %3126 = vmatprep.subr.mxu0 0.0
  %3127 = vmatpush1.msra.mxu0 %v1640
  %3128 = vmatprep.subr.mxu0 0.0
  %3129 = vmatpush1.msra.mxu0 %v1641
  %3130 = vmatprep.subr.mxu0 0.0
  %3131 = vmatpush1.msra.mxu0 %v1642
  %3132 = vmatprep.subr.mxu0 0.0
  %3133 = vmatpush1.msra.mxu0 %v1643
  %3134 = vmatprep.subr.mxu0 0.0
  %3135 = vmatpush1.msra.mxu0 %v1644
  %3136 = vmatprep.subr.mxu0 0.0
  %3137 = vmatpush1.msra.mxu0 %v1645
  %3138 = vmatprep.subr.mxu0 0.0
  %3139 = vmatpush1.msra.mxu0 0.0
  %3140 = vmatprep.subr.mxu0 0.0
  %3141 = vmatpush1.msra.mxu0 0.0
  %3142 = vmatprep.subr.mxu0 0.0
  %3143 = vmatpush1.msra.mxu0 0.0
  %3144 = vmatprep.subr.mxu0 0.0
  %3145 = vmatpush1.msra.mxu0 0.0
  %3146 = vmatprep.subr.mxu0 0.0
  %3147 = vmatpush1.msra.mxu0 0.0
  %3148 = vmatprep.subr.mxu0 0.0
  %3149 = vmatpush1.msra.mxu0 0.0
  %3150 = vmatprep.subr.mxu0 0.0
  %3151 = vmatpush1.msra.mxu0 0.0
  %3152 = vmatprep.subr.mxu0 0.0
  %3153 = vmatpush1.msra.mxu0 0.0
  %3154 = vmatprep.subr.mxu0 0.0
  %3155 = vmatpush1.msra.mxu0 0.0
  %3156 = vmatprep.subr.mxu0 0.0
  %3157 = vmatpush1.msra.mxu0 0.0
  %3158 = vmatprep.subr.mxu0 0.0
  %3159 = vmatpush1.msra.mxu0 0.0
  %3160 = vmatprep.subr.mxu0 0.0
  %3161 = vmatpush1.msra.mxu0 0.0
  %3162 = vmatprep.subr.mxu0 0.0
  %3163 = vmatpush1.msra.mxu0 0.0
  %3164 = vmatprep.subr.mxu0 0.0
  %3165 = vmatpush1.msra.mxu0 0.0
  %3166 = vmatprep.subr.mxu0 0.0
  %3167 = vmatpush1.msra.mxu0 0.0
  %3168 = vmatprep.subr.mxu0 0.0
  %3169 = vmatpush1.msra.mxu0 0.0
  %3170 = vmatprep.subr.mxu0 0.0
  %3171 = vmatpush1.msra.mxu0 0.0
  %3172 = vmatprep.subr.mxu0 0.0
  %3173 = vmatpush1.msra.mxu0 0.0
  %3174 = vmatprep.subr.mxu0 0.0
  %3175 = vmatpush1.msra.mxu0 0.0
  %3176 = vmatprep.subr.mxu0 0.0
  %3177 = vmatpush1.msra.mxu0 0.0
  %3178 = vmatprep.subr.mxu0 0.0
  %3179 = vmatpush1.msra.mxu0 0.0
  %3180 = vmatprep.subr.mxu0 0.0
  %3181 = vmatpush1.msra.mxu0 0.0
  %3182 = vmatprep.subr.mxu0 0.0
  %3183 = vmatpush1.msra.mxu0 0.0
  %3184 = vmatprep.subr.mxu0 0.0
  %3185 = vmatpush1.msra.mxu0 0.0
  %3186 = vmatprep.mubr.f32.mxu0 0.0
  %3187 = vmatmul.mubr.f32.gmra.mrb[0].mxu0 %v2635
  %v3188 = vpop.f32.mrb[0].mxu0
  %v3189 = vadd.f32 0.0, %v3188
  %v3190 = vpop.f32.mrb[0].mxu0
  %3191 = vmatprep.mubr.f32.mxu0 0.0
  %3192 = vmatmul.mubr.f32.gmra.mrb[0].mxu0 %v2638
  %v3193 = vpop.f32.mrb[0].mxu0
  %v3194 = vadd.f32 0.0, %v3193
  %v3195 = vpop.f32.mrb[0].mxu0
  %3196 = vdwg.mxu0
  %3197 = vmatprep.subr.mxu0 0.0
  %3198 = vmatpush1.msra.mxu0 %v1646
  %3199 = vmatprep.subr.mxu0 0.0
  %3200 = vmatpush1.msra.mxu0 %v1647
  %3201 = vmatprep.subr.mxu0 0.0
  %3202 = vmatpush1.msra.mxu0 %v1648
  %3203 = vmatprep.subr.mxu0 0.0
  %3204 = vmatpush1.msra.mxu0 %v1649
  %3205 = vmatprep.subr.mxu0 0.0
  %3206 = vmatpush1.msra.mxu0 %v1650
  %3207 = vmatprep.subr.mxu0 0.0
  %3208 = vmatpush1.msra.mxu0 %v1651
  %3209 = vmatprep.subr.mxu0 0.0
  %3210 = vmatpush1.msra.mxu0 %v1652
  %3211 = vmatprep.subr.mxu0 0.0
  %3212 = vmatpush1.msra.mxu0 %v1653
  %3213 = vmatprep.subr.mxu0 0.0
  %3214 = vmatpush1.msra.mxu0 0.0
  %3215 = vmatprep.subr.mxu0 0.0
  %3216 = vmatpush1.msra.mxu0 0.0
  %3217 = vmatprep.subr.mxu0 0.0
  %3218 = vmatpush1.msra.mxu0 0.0
  %3219 = vmatprep.subr.mxu0 0.0
  %3220 = vmatpush1.msra.mxu0 0.0
  %3221 = vmatprep.subr.mxu0 0.0
  %3222 = vmatpush1.msra.mxu0 0.0
  %3223 = vmatprep.subr.mxu0 0.0
  %3224 = vmatpush1.msra.mxu0 0.0
  %3225 = vmatprep.subr.mxu0 0.0
  %3226 = vmatpush1.msra.mxu0 0.0
  %3227 = vmatprep.subr.mxu0 0.0
  %3228 = vmatpush1.msra.mxu0 0.0
  %3229 = vmatprep.subr.mxu0 0.0
  %3230 = vmatpush1.msra.mxu0 0.0
  %3231 = vmatprep.subr.mxu0 0.0
  %3232 = vmatpush1.msra.mxu0 0.0
  %3233 = vmatprep.subr.mxu0 0.0
  %3234 = vmatpush1.msra.mxu0 0.0
  %3235 = vmatprep.subr.mxu0 0.0
  %3236 = vmatpush1.msra.mxu0 0.0
  %3237 = vmatprep.subr.mxu0 0.0
  %3238 = vmatpush1.msra.mxu0 0.0
  %3239 = vmatprep.subr.mxu0 0.0
  %3240 = vmatpush1.msra.mxu0 0.0
  %3241 = vmatprep.subr.mxu0 0.0
  %3242 = vmatpush1.msra.mxu0 0.0
  %3243 = vmatprep.subr.mxu0 0.0
  %3244 = vmatpush1.msra.mxu0 0.0
  %3245 = vmatprep.subr.mxu0 0.0
  %3246 = vmatpush1.msra.mxu0 0.0
  %3247 = vmatprep.subr.mxu0 0.0
  %3248 = vmatpush1.msra.mxu0 0.0
  %3249 = vmatprep.subr.mxu0 0.0
  %3250 = vmatpush1.msra.mxu0 0.0
  %3251 = vmatprep.subr.mxu0 0.0
  %3252 = vmatpush1.msra.mxu0 0.0
  %3253 = vmatprep.subr.mxu0 0.0
  %3254 = vmatpush1.msra.mxu0 0.0
  %3255 = vmatprep.subr.mxu0 0.0
  %3256 = vmatpush1.msra.mxu0 0.0
  %3257 = vmatprep.subr.mxu0 0.0
  %3258 = vmatpush1.msra.mxu0 0.0
  %3259 = vmatprep.subr.mxu0 0.0
  %3260 = vmatpush1.msra.mxu0 0.0
  %3261 = vmatprep.mubr.f32.mxu0 0.0
  %3262 = vmatmul.mubr.f32.gmra.mrb[0].mxu0 %v2641
  %v3263 = vpop.f32.mrb[0].mxu0
  %v3264 = vadd.f32 0.0, %v3263
  %v3265 = vpop.f32.mrb[0].mxu0
  %3266 = vmatprep.mubr.f32.mxu0 0.0
  %3267 = vmatmul.mubr.f32.gmra.mrb[0].mxu0 %v2644
  %v3268 = vpop.f32.mrb[0].mxu0
  %v3269 = vadd.f32 0.0, %v3268
  %v3270 = vpop.f32.mrb[0].mxu0
  %3271 = vdwg.mxu0
  %3272 = vmatprep.subr.mxu0 0.0
  %3273 = vmatpush1.msra.mxu0 %v1654
  %3274 = vmatprep.subr.mxu0 0.0
  %3275 = vmatpush1.msra.mxu0 %v1655
  %3276 = vmatprep.subr.mxu0 0.0
  %3277 = vmatpush1.msra.mxu0 %v1656
  %3278 = vmatprep.subr.mxu0 0.0
  %3279 = vmatpush1.msra.mxu0 %v1657
  %3280 = vmatprep.subr.mxu0 0.0
  %3281 = vmatpush1.msra.mxu0 %v1658
  %3282 = vmatprep.subr.mxu0 0.0
  %3283 = vmatpush1.msra.mxu0 %v1659
  %3284 = vmatprep.subr.mxu0 0.0
  %3285 = vmatpush1.msra.mxu0 %v1660
  %3286 = vmatprep.subr.mxu0 0.0
  %3287 = vmatpush1.msra.mxu0 %v1661
  %3288 = vmatprep.subr.mxu0 0.0
  %3289 = vmatpush1.msra.mxu0 0.0
  %3290 = vmatprep.subr.mxu0 0.0
  %3291 = vmatpush1.msra.mxu0 0.0
  %3292 = vmatprep.subr.mxu0 0.0
  %3293 = vmatpush1.msra.mxu0 0.0
  %3294 = vmatprep.subr.mxu0 0.0
  %3295 = vmatpush1.msra.mxu0 0.0
  %3296 = vmatprep.subr.mxu0 0.0
  %3297 = vmatpush1.msra.mxu0 0.0
  %3298 = vmatprep.subr.mxu0 0.0
  %3299 = vmatpush1.msra.mxu0 0.0
  %3300 = vmatprep.subr.mxu0 0.0
  %3301 = vmatpush1.msra.mxu0 0.0
  %3302 = vmatprep.subr.mxu0 0.0
  %3303 = vmatpush1.msra.mxu0 0.0
  %3304 = vmatprep.subr.mxu0 0.0
  %3305 = vmatpush1.msra.mxu0 0.0
  %3306 = vmatprep.subr.mxu0 0.0
  %3307 = vmatpush1.msra.mxu0 0.0
  %3308 = vmatprep.subr.mxu0 0.0
  %3309 = vmatpush1.msra.mxu0 0.0
  %3310 = vmatprep.subr.mxu0 0.0
  %3311 = vmatpush1.msra.mxu0 0.0
  %3312 = vmatprep.subr.mxu0 0.0
  %3313 = vmatpush1.msra.mxu0 0.0
  %3314 = vmatprep.subr.mxu0 0.0
  %3315 = vmatpush1.msra.mxu0 0.0
  %3316 = vmatprep.subr.mxu0 0.0
  %3317 = vmatpush1.msra.mxu0 0.0
  %3318 = vmatprep.subr.mxu0 0.0
  %3319 = vmatpush1.msra.mxu0 0.0
  %3320 = vmatprep.subr.mxu0 0.0
  %3321 = vmatpush1.msra.mxu0 0.0
  %3322 = vmatprep.subr.mxu0 0.0
  %3323 = vmatpush1.msra.mxu0 0.0
  %3324 = vmatprep.subr.mxu0 0.0
  %3325 = vmatpush1.msra.mxu0 0.0
  %3326 = vmatprep.subr.mxu0 0.0
  %3327 = vmatpush1.msra.mxu0 0.0
  %3328 = vmatprep.subr.mxu0 0.0
  %3329 = vmatpush1.msra.mxu0 0.0
  %3330 = vmatprep.subr.mxu0 0.0
  %3331 = vmatpush1.msra.mxu0 0.0
  %3332 = vmatprep.subr.mxu0 0.0
  %3333 = vmatpush1.msra.mxu0 0.0
  %3334 = vmatprep.subr.mxu0 0.0
  %3335 = vmatpush1.msra.mxu0 0.0
  %3336 = vmatprep.mubr.f32.mxu0 0.0
  %3337 = vmatmul.mubr.f32.gmra.mrb[0].mxu0 %v2647
  %v3338 = vpop.f32.mrb[0].mxu0
  %v3339 = vadd.f32 0.0, %v3338
  %v3340 = vpop.f32.mrb[0].mxu0
  %3341 = vmatprep.mubr.f32.mxu0 0.0
  %3342 = vmatmul.mubr.f32.gmra.mrb[0].mxu0 %v2650
  %v3343 = vpop.f32.mrb[0].mxu0
  %v3344 = vadd.f32 0.0, %v3343
  %v3345 = vpop.f32.mrb[0].mxu0
  %3346 = vdwg.mxu0
  %3347 = vmatprep.subr.mxu0 0.0
  %3348 = vmatpush1.msra.mxu0 %v1662
  %3349 = vmatprep.subr.mxu0 0.0
  %3350 = vmatpush1.msra.mxu0 %v1663
  %3351 = vmatprep.subr.mxu0 0.0
  %3352 = vmatpush1.msra.mxu0 %v1664
  %3353 = vmatprep.subr.mxu0 0.0
  %3354 = vmatpush1.msra.mxu0 %v1665
  %3355 = vmatprep.subr.mxu0 0.0
  %3356 = vmatpush1.msra.mxu0 %v1666
  %3357 = vmatprep.subr.mxu0 0.0
  %3358 = vmatpush1.msra.mxu0 %v1667
  %3359 = vmatprep.subr.mxu0 0.0
  %3360 = vmatpush1.msra.mxu0 %v1668
  %3361 = vmatprep.subr.mxu0 0.0
  %3362 = vmatpush1.msra.mxu0 %v1669
  %3363 = vmatprep.subr.mxu0 0.0
  %3364 = vmatpush1.msra.mxu0 0.0
  %3365 = vmatprep.subr.mxu0 0.0
  %3366 = vmatpush1.msra.mxu0 0.0
  %3367 = vmatprep.subr.mxu0 0.0
  %3368 = vmatpush1.msra.mxu0 0.0
  %3369 = vmatprep.subr.mxu0 0.0
  %3370 = vmatpush1.msra.mxu0 0.0
  %3371 = vmatprep.subr.mxu0 0.0
  %3372 = vmatpush1.msra.mxu0 0.0
  %3373 = vmatprep.subr.mxu0 0.0
  %3374 = vmatpush1.msra.mxu0 0.0
  %3375 = vmatprep.subr.mxu0 0.0
  %3376 = vmatpush1.msra.mxu0 0.0
  %3377 = vmatprep.subr.mxu0 0.0
  %3378 = vmatpush1.msra.mxu0 0.0
  %3379 = vmatprep.subr.mxu0 0.0
  %3380 = vmatpush1.msra.mxu0 0.0
  %3381 = vmatprep.subr.mxu0 0.0
  %3382 = vmatpush1.msra.mxu0 0.0
  %3383 = vmatprep.subr.mxu0 0.0
  %3384 = vmatpush1.msra.mxu0 0.0
  %3385 = vmatprep.subr.mxu0 0.0
  %3386 = vmatpush1.msra.mxu0 0.0
  %3387 = vmatprep.subr.mxu0 0.0
  %3388 = vmatpush1.msra.mxu0 0.0
  %3389 = vmatprep.subr.mxu0 0.0
  %3390 = vmatpush1.msra.mxu0 0.0
  %3391 = vmatprep.subr.mxu0 0.0
  %3392 = vmatpush1.msra.mxu0 0.0
  %3393 = vmatprep.subr.mxu0 0.0
  %3394 = vmatpush1.msra.mxu0 0.0
  %3395 = vmatprep.subr.mxu0 0.0
  %3396 = vmatpush1.msra.mxu0 0.0
  %3397 = vmatprep.subr.mxu0 0.0
  %3398 = vmatpush1.msra.mxu0 0.0
  %3399 = vmatprep.subr.mxu0 0.0
  %3400 = vmatpush1.msra.mxu0 0.0
  %3401 = vmatprep.subr.mxu0 0.0
  %3402 = vmatpush1.msra.mxu0 0.0
  %3403 = vmatprep.subr.mxu0 0.0
  %3404 = vmatpush1.msra.mxu0 0.0
  %3405 = vmatprep.subr.mxu0 0.0
  %3406 = vmatpush1.msra.mxu0 0.0
  %3407 = vmatprep.subr.mxu0 0.0
  %3408 = vmatpush1.msra.mxu0 0.0
  %3409 = vmatprep.subr.mxu0 0.0
  %3410 = vmatpush1.msra.mxu0 0.0
  %3411 = vmatprep.mubr.f32.mxu0 0.0
  %3412 = vmatmul.mubr.f32.gmra.mrb[0].mxu0 %v2653
  %v3413 = vpop.f32.mrb[0].mxu0
  %v3414 = vadd.f32 0.0, %v3413
  %v3415 = vpop.f32.mrb[0].mxu0
  %3416 = vmatprep.mubr.f32.mxu0 0.0
  %3417 = vmatmul.mubr.f32.gmra.mrb[0].mxu0 %v2656
  %v3418 = vpop.f32.mrb[0].mxu0
  %v3419 = vadd.f32 0.0, %v3418
  %v3420 = vpop.f32.mrb[0].mxu0
  %3421 = vdwg.mxu0
  %v3423 = vsel %vm1076, %v2806, 0
  %v3426 = vsel %vm1076, %v2807, 0
  %v3429 = vsel %vm1076, %v2808, 0
  %v3432 = vsel %vm1076, %v2809, 0
  %v3435 = vsel %vm1076, %v2810, 0
  %v3438 = vsel %vm1076, %v2811, 0
  %v3441 = vsel %vm1076, %v2812, 0
  %v3444 = vsel %vm1076, %v2813, 0
  %v3447 = vsel %vm1076, %v2814, 0
  %v3450 = vsel %vm1076, %v2815, 0
  %v3453 = vsel %vm1076, %v2816, 0
  %v3456 = vsel %vm1076, %v2817, 0
  %v3459 = vsel %vm1076, %v2818, 0
  %v3462 = vsel %vm1076, %v2819, 0
  %v3465 = vsel %vm1076, %v2820, 0
  %v3468 = vsel %vm1076, %v2821, 0
  %3470 = vmatprep.subr.mxu0 0.0
  %3471 = vmatpush1.msra.mxu0 %v1126
  %3472 = vmatprep.subr.mxu0 0.0
  %3473 = vmatpush1.msra.mxu0 0.0
  %3474 = vmatprep.subr.mxu0 0.0
  %3475 = vmatpush1.msra.mxu0 0.0
  %3476 = vmatprep.subr.mxu0 0.0
  %3477 = vmatpush1.msra.mxu0 0.0
  %3478 = vmatprep.subr.mxu0 0.0
  %3479 = vmatpush1.msra.mxu0 0.0
  %3480 = vmatprep.subr.mxu0 0.0
  %3481 = vmatpush1.msra.mxu0 0.0
  %3482 = vmatprep.subr.mxu0 0.0
  %3483 = vmatpush1.msra.mxu0 0.0
  %3484 = vmatprep.subr.mxu0 0.0
  %3485 = vmatpush1.msra.mxu0 0.0
  %3486 = vmatprep.subr.mxu0 0.0
  %3487 = vmatpush1.msra.mxu0 0.0
  %3488 = vmatprep.subr.mxu0 0.0
  %3489 = vmatpush1.msra.mxu0 0.0
  %3490 = vmatprep.subr.mxu0 0.0
  %3491 = vmatpush1.msra.mxu0 0.0
  %3492 = vmatprep.subr.mxu0 0.0
  %3493 = vmatpush1.msra.mxu0 0.0
  %3494 = vmatprep.subr.mxu0 0.0
  %3495 = vmatpush1.msra.mxu0 0.0
  %3496 = vmatprep.subr.mxu0 0.0
  %3497 = vmatpush1.msra.mxu0 0.0
  %3498 = vmatprep.subr.mxu0 0.0
  %3499 = vmatpush1.msra.mxu0 0.0
  %3500 = vmatprep.subr.mxu0 0.0
  %3501 = vmatpush1.msra.mxu0 0.0
  %3502 = vmatprep.subr.mxu0 0.0
  %3503 = vmatpush1.msra.mxu0 0.0
  %3504 = vmatprep.subr.mxu0 0.0
  %3505 = vmatpush1.msra.mxu0 0.0
  %3506 = vmatprep.subr.mxu0 0.0
  %3507 = vmatpush1.msra.mxu0 0.0
  %3508 = vmatprep.subr.mxu0 0.0
  %3509 = vmatpush1.msra.mxu0 0.0
  %3510 = vmatprep.subr.mxu0 0.0
  %3511 = vmatpush1.msra.mxu0 0.0
  %3512 = vmatprep.subr.mxu0 0.0
  %3513 = vmatpush1.msra.mxu0 0.0
  %3514 = vmatprep.subr.mxu0 0.0
  %3515 = vmatpush1.msra.mxu0 0.0
  %3516 = vmatprep.subr.mxu0 0.0
  %3517 = vmatpush1.msra.mxu0 0.0
  %3518 = vmatprep.subr.mxu0 0.0
  %3519 = vmatpush1.msra.mxu0 0.0
  %3520 = vmatprep.subr.mxu0 0.0
  %3521 = vmatpush1.msra.mxu0 0.0
  %3522 = vmatprep.subr.mxu0 0.0
  %3523 = vmatpush1.msra.mxu0 0.0
  %3524 = vmatprep.subr.mxu0 0.0
  %3525 = vmatpush1.msra.mxu0 0.0
  %3526 = vmatprep.subr.mxu0 0.0
  %3527 = vmatpush1.msra.mxu0 0.0
  %3528 = vmatprep.subr.mxu0 0.0
  %3529 = vmatpush1.msra.mxu0 0.0
  %3530 = vmatprep.subr.mxu0 0.0
  %3531 = vmatpush1.msra.mxu0 0.0
  %3532 = vmatprep.subr.mxu0 0.0
  %3533 = vmatpush1.msra.mxu0 0.0
  %3534 = vmatprep.mubr.f32.mxu0 0.0
  %3535 = vmatmul.mubr.f32.gmra.mrb[0].mxu0 %v3423
  %v3536 = vpop.f32.mrb[0].mxu0
  %v3537 = vadd.f32 0.0, %v3536
  %v3538 = vpop.f32.mrb[0].mxu0
  %3539 = vmatprep.mubr.f32.mxu0 0.0
  %3540 = vmatmul.mubr.f32.gmra.mrb[0].mxu0 %v3426
  %v3541 = vpop.f32.mrb[0].mxu0
  %v3542 = vadd.f32 0.0, %v3541
  %v3543 = vpop.f32.mrb[0].mxu0
  %3544 = vmatprep.mubr.f32.mxu0 0.0
  %3545 = vmatmul.mubr.f32.gmra.mrb[0].mxu0 %v3429
  %v3546 = vpop.f32.mrb[0].mxu0
  %v3547 = vadd.f32 0.0, %v3546
  %v3548 = vpop.f32.mrb[0].mxu0
  %3549 = vmatprep.mubr.f32.mxu0 0.0
  %3550 = vmatmul.mubr.f32.gmra.mrb[0].mxu0 %v3432
  %v3551 = vpop.f32.mrb[0].mxu0
  %v3552 = vadd.f32 0.0, %v3551
  %v3553 = vpop.f32.mrb[0].mxu0
  %3554 = vmatprep.mubr.f32.mxu0 0.0
  %3555 = vmatmul.mubr.f32.gmra.mrb[0].mxu0 %v3435
  %v3556 = vpop.f32.mrb[0].mxu0
  %v3557 = vadd.f32 0.0, %v3556
  %v3558 = vpop.f32.mrb[0].mxu0
  %3559 = vmatprep.mubr.f32.mxu0 0.0
  %3560 = vmatmul.mubr.f32.gmra.mrb[0].mxu0 %v3438
  %v3561 = vpop.f32.mrb[0].mxu0
  %v3562 = vadd.f32 0.0, %v3561
  %v3563 = vpop.f32.mrb[0].mxu0
  %3564 = vmatprep.mubr.f32.mxu0 0.0
  %3565 = vmatmul.mubr.f32.gmra.mrb[0].mxu0 %v3441
  %v3566 = vpop.f32.mrb[0].mxu0
  %v3567 = vadd.f32 0.0, %v3566
  %v3568 = vpop.f32.mrb[0].mxu0
  %3569 = vmatprep.mubr.f32.mxu0 0.0
  %3570 = vmatmul.mubr.f32.gmra.mrb[0].mxu0 %v3444
  %v3571 = vpop.f32.mrb[0].mxu0
  %v3572 = vadd.f32 0.0, %v3571
  %v3573 = vpop.f32.mrb[0].mxu0
  %3574 = vmatprep.mubr.f32.mxu0 0.0
  %3575 = vmatmul.mubr.f32.gmra.mrb[0].mxu0 %v3447
  %v3576 = vpop.f32.mrb[0].mxu0
  %v3577 = vadd.f32 0.0, %v3576
  %v3578 = vpop.f32.mrb[0].mxu0
  %3579 = vmatprep.mubr.f32.mxu0 0.0
  %3580 = vmatmul.mubr.f32.gmra.mrb[0].mxu0 %v3450
  %v3581 = vpop.f32.mrb[0].mxu0
  %v3582 = vadd.f32 0.0, %v3581
  %v3583 = vpop.f32.mrb[0].mxu0
  %3584 = vmatprep.mubr.f32.mxu0 0.0
  %3585 = vmatmul.mubr.f32.gmra.mrb[0].mxu0 %v3453
  %v3586 = vpop.f32.mrb[0].mxu0
  %v3587 = vadd.f32 0.0, %v3586
  %v3588 = vpop.f32.mrb[0].mxu0
  %3589 = vmatprep.mubr.f32.mxu0 0.0
  %3590 = vmatmul.mubr.f32.gmra.mrb[0].mxu0 %v3456
  %v3591 = vpop.f32.mrb[0].mxu0
  %v3592 = vadd.f32 0.0, %v3591
  %v3593 = vpop.f32.mrb[0].mxu0
  %3594 = vmatprep.mubr.f32.mxu0 0.0
  %3595 = vmatmul.mubr.f32.gmra.mrb[0].mxu0 %v3459
  %v3596 = vpop.f32.mrb[0].mxu0
  %v3597 = vadd.f32 0.0, %v3596
  %v3598 = vpop.f32.mrb[0].mxu0
  %3599 = vmatprep.mubr.f32.mxu0 0.0
  %3600 = vmatmul.mubr.f32.gmra.mrb[0].mxu0 %v3462
  %v3601 = vpop.f32.mrb[0].mxu0
  %v3602 = vadd.f32 0.0, %v3601
  %v3603 = vpop.f32.mrb[0].mxu0
  %3604 = vmatprep.mubr.f32.mxu0 0.0
  %3605 = vmatmul.mubr.f32.gmra.mrb[0].mxu0 %v3465
  %v3606 = vpop.f32.mrb[0].mxu0
  %v3607 = vadd.f32 0.0, %v3606
  %v3608 = vpop.f32.mrb[0].mxu0
  %3609 = vmatprep.mubr.f32.mxu0 0.0
  %3610 = vmatmul.mubr.f32.gmra.mrb[0].mxu0 %v3468
  %v3611 = vpop.f32.mrb[0].mxu0
  %v3612 = vadd.f32 0.0, %v3611
  %v3613 = vpop.f32.mrb[0].mxu0
  %3614 = vdwg.mxu0
  %v3615 = vmul.f32 %v2889, %v3537
  %v3616 = vmul.f32 %v2894, %v3542
  %v3617 = vmul.f32 %v2964, %v3547
  %v3618 = vmul.f32 %v2969, %v3552
  %v3619 = vmul.f32 %v3039, %v3557
  %v3620 = vmul.f32 %v3044, %v3562
  %v3621 = vmul.f32 %v3114, %v3567
  %v3622 = vmul.f32 %v3119, %v3572
  %v3623 = vmul.f32 %v3189, %v3577
  %v3624 = vmul.f32 %v3194, %v3582
  %v3625 = vmul.f32 %v3264, %v3587
  %v3626 = vmul.f32 %v3269, %v3592
  %v3627 = vmul.f32 %v3339, %v3597
  %v3628 = vmul.f32 %v3344, %v3602
  %v3629 = vmul.f32 %v3414, %v3607
  %v3630 = vmul.f32 %v3419, %v3612
  %v3631 = vld [vmem:[%s10] sm:$0xff]
  %v3632 = vld [vmem:[%s10 + $0x8] sm:$0xff]
  %v3633 = vld [vmem:[%s10 + $0x10] sm:$0xff]
  %v3634 = vld [vmem:[%s10 + $0x18] sm:$0xff]
  %v3635 = vld [vmem:[%s11] sm:$0x1]
  %v3637 = vlaneseq
  %v3638 = vshrl.u32 %v3637, 7
  %v3639 = vsub.s32 0, %v3638
  %v3640 = vrot.slane %v3635, %v3639
  %v3643 = vsel %vm68, %v3615, 0
  %v3646 = vsel %vm68, %v3616, 0
  %v3649 = vsel %vm68, %v3617, 0
  %v3652 = vsel %vm68, %v3618, 0
  %v3655 = vsel %vm68, %v3619, 0
  %v3658 = vsel %vm68, %v3620, 0
  %v3661 = vsel %vm68, %v3621, 0
  %v3664 = vsel %vm68, %v3622, 0
  %v3667 = vsel %vm68, %v3623, 0
  %v3670 = vsel %vm68, %v3624, 0
  %v3673 = vsel %vm68, %v3625, 0
  %v3676 = vsel %vm68, %v3626, 0
  %v3679 = vsel %vm68, %v3627, 0
  %v3682 = vsel %vm68, %v3628, 0
  %v3685 = vsel %vm68, %v3629, 0
  %v3688 = vsel %vm68, %v3630, 0
  %3690 = vmatprep.subr.mxu0 0.0
  %3691 = vmatpush1.msra.mxu0 %v3631
  %3692 = vmatprep.subr.mxu0 0.0
  %3693 = vmatpush1.msra.mxu0 %v3632
  %3694 = vmatprep.subr.mxu0 0.0
  %3695 = vmatpush1.msra.mxu0 %v3633
  %3696 = vmatprep.subr.mxu0 0.0
  %3697 = vmatpush1.msra.mxu0 %v3634
  %3698 = vmatprep.subr.mxu0 0.0
  %3699 = vmatpush1.msra.mxu0 0.0
  %3700 = vmatprep.subr.mxu0 0.0
  %3701 = vmatpush1.msra.mxu0 0.0
  %3702 = vmatprep.subr.mxu0 0.0
  %3703 = vmatpush1.msra.mxu0 0.0
  %3704 = vmatprep.subr.mxu0 0.0
  %3705 = vmatpush1.msra.mxu0 0.0
  %3706 = vmatprep.subr.mxu0 0.0
  %3707 = vmatpush1.msra.mxu0 0.0
  %3708 = vmatprep.subr.mxu0 0.0
  %3709 = vmatpush1.msra.mxu0 0.0
  %3710 = vmatprep.subr.mxu0 0.0
  %3711 = vmatpush1.msra.mxu0 0.0
  %3712 = vmatprep.subr.mxu0 0.0
  %3713 = vmatpush1.msra.mxu0 0.0
  %3714 = vmatprep.subr.mxu0 0.0
  %3715 = vmatpush1.msra.mxu0 0.0
  %3716 = vmatprep.subr.mxu0 0.0
  %3717 = vmatpush1.msra.mxu0 0.0
  %3718 = vmatprep.subr.mxu0 0.0
  %3719 = vmatpush1.msra.mxu0 0.0
  %3720 = vmatprep.subr.mxu0 0.0
  %3721 = vmatpush1.msra.mxu0 0.0
  %3722 = vmatprep.subr.mxu0 0.0
  %3723 = vmatpush1.msra.mxu0 0.0
  %3724 = vmatprep.subr.mxu0 0.0
  %3725 = vmatpush1.msra.mxu0 0.0
  %3726 = vmatprep.subr.mxu0 0.0
  %3727 = vmatpush1.msra.mxu0 0.0
  %3728 = vmatprep.subr.mxu0 0.0
  %3729 = vmatpush1.msra.mxu0 0.0
  %3730 = vmatprep.subr.mxu0 0.0
  %3731 = vmatpush1.msra.mxu0 0.0
  %3732 = vmatprep.subr.mxu0 0.0
  %3733 = vmatpush1.msra.mxu0 0.0
  %3734 = vmatprep.subr.mxu0 0.0
  %3735 = vmatpush1.msra.mxu0 0.0
  %3736 = vmatprep.subr.mxu0 0.0
  %3737 = vmatpush1.msra.mxu0 0.0
  %3738 = vmatprep.subr.mxu0 0.0
  %3739 = vmatpush1.msra.mxu0 0.0
  %3740 = vmatprep.subr.mxu0 0.0
  %3741 = vmatpush1.msra.mxu0 0.0
  %3742 = vmatprep.subr.mxu0 0.0
  %3743 = vmatpush1.msra.mxu0 0.0
  %3744 = vmatprep.subr.mxu0 0.0
  %3745 = vmatpush1.msra.mxu0 0.0
  %3746 = vmatprep.subr.mxu0 0.0
  %3747 = vmatpush1.msra.mxu0 0.0
  %3748 = vmatprep.subr.mxu0 0.0
  %3749 = vmatpush1.msra.mxu0 0.0
  %3750 = vmatprep.subr.mxu0 0.0
  %3751 = vmatpush1.msra.mxu0 0.0
  %3752 = vmatprep.subr.mxu0 0.0
  %3753 = vmatpush1.msra.mxu0 0.0
  %3754 = vmatprep.mubr.f32.mxu0 0.0
  %3755 = vmatmul.mubr.f32.gmra.mrb[0].mxu0 %v3643
  %v3756 = vpop.f32.mrb[0].mxu0
  %v3757 = vadd.f32 %v3640, %v3756
  %v3758 = vpop.f32.mrb[0].mxu0
  %3759 = vmatprep.mubr.f32.mxu0 0.0
  %3760 = vmatmul.mubr.f32.gmra.mrb[0].mxu0 %v3646
  %v3761 = vpop.f32.mrb[0].mxu0
  %v3762 = vadd.f32 %v3640, %v3761
  %v3763 = vpop.f32.mrb[0].mxu0
  %3764 = vmatprep.mubr.f32.mxu0 0.0
  %3765 = vmatmul.mubr.f32.gmra.mrb[0].mxu0 %v3649
  %v3766 = vpop.f32.mrb[0].mxu0
  %v3767 = vadd.f32 %v3640, %v3766
  %v3768 = vpop.f32.mrb[0].mxu0
  %3769 = vmatprep.mubr.f32.mxu0 0.0
  %3770 = vmatmul.mubr.f32.gmra.mrb[0].mxu0 %v3652
  %v3771 = vpop.f32.mrb[0].mxu0
  %v3772 = vadd.f32 %v3640, %v3771
  %v3773 = vpop.f32.mrb[0].mxu0
  %3774 = vmatprep.mubr.f32.mxu0 0.0
  %3775 = vmatmul.mubr.f32.gmra.mrb[0].mxu0 %v3655
  %v3776 = vpop.f32.mrb[0].mxu0
  %v3777 = vadd.f32 %v3640, %v3776
  %v3778 = vpop.f32.mrb[0].mxu0
  %3779 = vmatprep.mubr.f32.mxu0 0.0
  %3780 = vmatmul.mubr.f32.gmra.mrb[0].mxu0 %v3658
  %v3781 = vpop.f32.mrb[0].mxu0
  %v3782 = vadd.f32 %v3640, %v3781
  %v3783 = vpop.f32.mrb[0].mxu0
  %3784 = vmatprep.mubr.f32.mxu0 0.0
  %3785 = vmatmul.mubr.f32.gmra.mrb[0].mxu0 %v3661
  %v3786 = vpop.f32.mrb[0].mxu0
  %v3787 = vadd.f32 %v3640, %v3786
  %v3788 = vpop.f32.mrb[0].mxu0
  %3789 = vmatprep.mubr.f32.mxu0 0.0
  %3790 = vmatmul.mubr.f32.gmra.mrb[0].mxu0 %v3664
  %v3791 = vpop.f32.mrb[0].mxu0
  %v3792 = vadd.f32 %v3640, %v3791
  %v3793 = vpop.f32.mrb[0].mxu0
  %3794 = vmatprep.mubr.f32.mxu0 0.0
  %3795 = vmatmul.mubr.f32.gmra.mrb[0].mxu0 %v3667
  %v3796 = vpop.f32.mrb[0].mxu0
  %v3797 = vadd.f32 %v3640, %v3796
  %v3798 = vpop.f32.mrb[0].mxu0
  %3799 = vmatprep.mubr.f32.mxu0 0.0
  %3800 = vmatmul.mubr.f32.gmra.mrb[0].mxu0 %v3670
  %v3801 = vpop.f32.mrb[0].mxu0
  %v3802 = vadd.f32 %v3640, %v3801
  %v3803 = vpop.f32.mrb[0].mxu0
  %3804 = vmatprep.mubr.f32.mxu0 0.0
  %3805 = vmatmul.mubr.f32.gmra.mrb[0].mxu0 %v3673
  %v3806 = vpop.f32.mrb[0].mxu0
  %v3807 = vadd.f32 %v3640, %v3806
  %v3808 = vpop.f32.mrb[0].mxu0
  %3809 = vmatprep.mubr.f32.mxu0 0.0
  %3810 = vmatmul.mubr.f32.gmra.mrb[0].mxu0 %v3676
  %v3811 = vpop.f32.mrb[0].mxu0
  %v3812 = vadd.f32 %v3640, %v3811
  %v3813 = vpop.f32.mrb[0].mxu0
  %3814 = vmatprep.mubr.f32.mxu0 0.0
  %3815 = vmatmul.mubr.f32.gmra.mrb[0].mxu0 %v3679
  %v3816 = vpop.f32.mrb[0].mxu0
  %v3817 = vadd.f32 %v3640, %v3816
  %v3818 = vpop.f32.mrb[0].mxu0
  %3819 = vmatprep.mubr.f32.mxu0 0.0
  %3820 = vmatmul.mubr.f32.gmra.mrb[0].mxu0 %v3682
  %v3821 = vpop.f32.mrb[0].mxu0
  %v3822 = vadd.f32 %v3640, %v3821
  %v3823 = vpop.f32.mrb[0].mxu0
  %3824 = vmatprep.mubr.f32.mxu0 0.0
  %3825 = vmatmul.mubr.f32.gmra.mrb[0].mxu0 %v3685
  %v3826 = vpop.f32.mrb[0].mxu0
  %v3827 = vadd.f32 %v3640, %v3826
  %v3828 = vpop.f32.mrb[0].mxu0
  %3829 = vmatprep.mubr.f32.mxu0 0.0
  %3830 = vmatmul.mubr.f32.gmra.mrb[0].mxu0 %v3688
  %v3831 = vpop.f32.mrb[0].mxu0
  %v3832 = vadd.f32 %v3640, %v3831
  %v3833 = vpop.f32.mrb[0].mxu0
  %3834 = vdwg.mxu0
  %3835 = vst.msk [vmem:[%s12] sm:$0xff] %vm68, %v3757
  %3836 = vst.msk [vmem:[%s12 + $0x8] sm:$0xff] %vm68, %v3762
  %3837 = vst.msk [vmem:[%s12 + $0x10] sm:$0xff] %vm68, %v3767
  %3838 = vst.msk [vmem:[%s12 + $0x18] sm:$0xff] %vm68, %v3772
  %3839 = vst.msk [vmem:[%s12 + $0x20] sm:$0xff] %vm68, %v3777
  %3840 = vst.msk [vmem:[%s12 + $0x28] sm:$0xff] %vm68, %v3782
  %3841 = vst.msk [vmem:[%s12 + $0x30] sm:$0xff] %vm68, %v3787
  %3842 = vst.msk [vmem:[%s12 + $0x38] sm:$0xff] %vm68, %v3792
  %3843 = vst.msk [vmem:[%s12 + $0x40] sm:$0xff] %vm68, %v3797
  %3844 = vst.msk [vmem:[%s12 + $0x48] sm:$0xff] %vm68, %v3802
  %3845 = vst.msk [vmem:[%s12 + $0x50] sm:$0xff] %vm68, %v3807
  %3846 = vst.msk [vmem:[%s12 + $0x58] sm:$0xff] %vm68, %v3812
  %3847 = vst.msk [vmem:[%s12 + $0x60] sm:$0xff] %vm68, %v3817
  %3848 = vst.msk [vmem:[%s12 + $0x68] sm:$0xff] %vm68, %v3822
  %3849 = vst.msk [vmem:[%s12 + $0x70] sm:$0xff] %vm68, %v3827
  %3850 = vst.msk [vmem:[%s12 + $0x78] sm:$0xff] %vm68, %v3832
  // Predicated region
  $region50: #{tpu_custom_call.1} parent=0 // pred_check
    _
  $region51: #{tpu_custom_call.1} parent=0 // pred_check_branch
    %3852 = sbr.rel (0) target = $region53
  $region52: #{tpu_custom_call.1} parent=0 // pred_region
    _
  $region53: #{tpu_custom_call.1} parent=0 // pred_fallthru
    _
  // Predicated region
  $region54: #{tpu_custom_call.1} parent=0 // pred_check
    _
  $region55: #{tpu_custom_call.1} parent=0 // pred_check_branch
    %3854 = sbr.rel (0) target = $region57
  $region56: #{tpu_custom_call.1} parent=0 // pred_region
    _
  $region57: #{tpu_custom_call.1} parent=0 // pred_fallthru
    _

</llo_original>
